<compile_context>
chip_gen: v7x
topology: tpu7x:2x2x1
jax: 0.10.0
libtpu: 0.0.40
codegen_flags: <defaults>
</compile_context>

<pallas_src>
import functools

import jax
import jax.numpy as jnp
from jax.experimental import pallas as pl
from jax.experimental.pallas import tpu as pltpu

OUT_CHANNELS = 48     # per conv branch (merged conv emits 2*OUT_CHANNELS, padded to 128)
CONV_K = 13           # merged tap count (conv1's 7 taps zero-padded to 13)
CONV_PAD = 6          # "same" padding for the merged 13-tap conv


# --------------------------------------------------------------------------- #
# Kernel 1: merged conv + ReLU + (folded BN) + layer-0 LSTM input projection
# --------------------------------------------------------------------------- #
def frontend_kernel(xp_ref, wtap_ref, bconv_ref, wx_ref, wcv_ref, bg0_ref, o_ref):
    # xp_ref   : (Lp, Cin)  f32   padded input for this batch element
    # wtap_ref : (K, Cin, OCp) bf16  merged conv weights, tap-major (OCp = 128)
    # bconv_ref: (1, OCp)   f32
    # wx_ref   : (Cin, 8H)  bf16  BN-folded projection of the raw-x channels
    # wcv_ref  : (OCp, 8H)  bf16  BN-folded projection of the conv channels
    # bg0_ref  : (1, 8H)    f32   b_ih+b_hh (both dirs) + BN-shift contribution
    # o_ref    : (L, 8H)    f32   layer-0 gate pre-activations for this batch
    K = wtap_ref.shape[0]
    L = o_ref.shape[0]
    OCp = wtap_ref.shape[2]
    pad = (K - 1) // 2

    x = xp_ref[...]                                   # (Lp, Cin)
    acc = jnp.zeros((L, OCp), jnp.float32)
    for k in range(K):                                # static tap loop -> K MXU matmuls
        acc = acc + jnp.dot(x[k:k + L, :].astype(jnp.bfloat16), wtap_ref[k],
                            preferred_element_type=jnp.float32)
    conv = jnp.maximum(acc + bconv_ref[...], 0.0)     # merged [conv1|conv2] + ReLU

    gates = (jnp.dot(x[pad:pad + L, :].astype(jnp.bfloat16), wx_ref[...],
                     preferred_element_type=jnp.float32)
             + jnp.dot(conv.astype(jnp.bfloat16), wcv_ref[...],
                       preferred_element_type=jnp.float32)
             + bg0_ref[...])                          # (L, 8H), lane-dense
    o_ref[...] = gates


# --------------------------------------------------------------------------- #
# Kernel 2: 2-layer bidirectional LSTM (fused directions) + FFNN head
# --------------------------------------------------------------------------- #
def bilstm_head_kernel(g0_ref, whh0_ref, wih1_ref, bg1_ref, whh1_ref,
                       w1_ref, b1_ref, w2_ref, b2_ref, out_ref):
    # g0_ref  : (B, L, 8H) f32  precomputed layer-0 gate pre-activations (incl. bias)
    # whh*_ref: (2H, 8H)   bf16 block-diagonal recurrent weights [fwd | rev]
    # wih1_ref: (2H, 8H)   bf16 layer-1 input projection [fwd | rev]
    # bg1_ref : (1, 8H)    f32
    # w1/w2   : head linear weights (bf16), b1/b2 biases (f32)
    # out_ref : (B, 1)     f32
    B, L, _ = g0_ref.shape
    H = whh0_ref.shape[0] // 2
    H4 = 4 * H

    def gate_block(pre, c):                           # pre: (B, 4H), gate order i,f,g,o
        i = jax.nn.sigmoid(pre[:, 0:H])
        f = jax.nn.sigmoid(pre[:, H:2 * H])
        g = jnp.tanh(pre[:, 2 * H:3 * H])
        o = jax.nn.sigmoid(pre[:, 3 * H:4 * H])
        c_new = f * c + i * g
        return o * jnp.tanh(c_new), c_new

    # per-batch gate slabs (L, 8H); row t = gates for sequence position t
    g0b = [g0_ref[b] for b in range(B)]

    def rows(slabs, t, lo, hi):
        # gather the (B, hi-lo) pre-activation block for position t
        return jnp.concatenate([s[t:t + 1, lo:hi] for s in slabs], axis=0)

    # ---- layer 0: fwd + rev share one block-diagonal recurrent matmul per step
    h_cat = jnp.zeros((B, 2 * H), jnp.float32)
    c_f = jnp.zeros((B, H), jnp.float32)
    c_b = jnp.zeros((B, H), jnp.float32)
    hf = [None] * L                                   # forward hidden per position
    hb = [None] * L                                   # backward hidden per position
    for t in range(L):                                # static unroll (L is small)
        rec = jnp.dot(h_cat.astype(jnp.bfloat16), whh0_ref[...],
                      preferred_element_type=jnp.float32)        # (B, 8H)
        h_f, c_f = gate_block(rows(g0b, t, 0, H4) + rec[:, :H4], c_f)
        h_b, c_b = gate_block(rows(g0b, L - 1 - t, H4, 8 * H) + rec[:, H4:], c_b)
        hf[t] = h_f
        hb[L - 1 - t] = h_b
        h_cat = jnp.concatenate([h_f, h_b], axis=-1)

    # ---- layer 1: input projection hoisted off the recurrence (single matmul)
    h0_all = jnp.concatenate(
        [jnp.concatenate([hf[p], hb[p]], axis=-1) for p in range(L)], axis=0)  # (L*B, 2H)
    g1_all = (jnp.dot(h0_all.astype(jnp.bfloat16), wih1_ref[...],
                      preferred_element_type=jnp.float32) + bg1_ref[...])      # (L*B, 8H)

    mid = L // 2                                      # only this position feeds the head
    h_cat = jnp.zeros((B, 2 * H), jnp.float32)
    c_f = jnp.zeros((B, H), jnp.float32)
    c_b = jnp.zeros((B, H), jnp.float32)
    m_f = jnp.zeros((B, H), jnp.float32)
    m_b = jnp.zeros((B, H), jnp.float32)
    for t in range(L):
        rec = jnp.dot(h_cat.astype(jnp.bfloat16), whh1_ref[...],
                      preferred_element_type=jnp.float32)
        pre_f = g1_all[t * B:(t + 1) * B, 0:H4] + rec[:, :H4]
        pre_b = g1_all[(L - 1 - t) * B:(L - t) * B, H4:] + rec[:, H4:]
        h_f, c_f = gate_block(pre_f, c_f)
        h_b, c_b = gate_block(pre_b, c_b)
        if t == mid:
            m_f = h_f
        if L - 1 - t == mid:
            m_b = h_b
        h_cat = jnp.concatenate([h_f, h_b], axis=-1)

    # ---- FFNN head on position L//2 (full layer-1 sequence never leaves VMEM)
    feat = jnp.concatenate([m_f, m_b], axis=-1)                                # (B, 2H)
    hid = jnp.maximum(jnp.dot(feat.astype(jnp.bfloat16), w1_ref[...],
                              preferred_element_type=jnp.float32) + b1_ref[...], 0.0)
    logit = (jnp.dot(hid.astype(jnp.bfloat16), w2_ref[...],
                     preferred_element_type=jnp.float32) + b2_ref[...])
    out_ref[...] = jax.nn.sigmoid(logit)


# --------------------------------------------------------------------------- #
# Parameter construction (PyTorch layouts) + one-time kernel-layout preparation
# --------------------------------------------------------------------------- #
def init_params(key, n_input, h1, h2):
    C = n_input + 2 * OUT_CHANNELS
    keys = iter(jax.random.split(key, 64))
    nrm = lambda shape, s=0.1: (s * jax.random.normal(next(keys), shape)).astype(jnp.float32)
    params = {
        "conv1_w": nrm((OUT_CHANNELS, n_input, 7)),
        "conv1_b": nrm((OUT_CHANNELS,)),
        "conv2_w": nrm((OUT_CHANNELS, n_input, 13)),
        "conv2_b": nrm((OUT_CHANNELS,)),
        "bn_gamma": 1.0 + nrm((C,)),
        "bn_beta": nrm((C,)),
        "bn_mean": nrm((C,)),
        "bn_var": 1.0 + jnp.abs(nrm((C,))),
        "lin1_w": nrm((h2, 2 * h1)),
        "lin1_b": nrm((h2,)),
        "lin2_w": nrm((1, h2)),
        "lin2_b": nrm((1,)),
    }
    # 2-layer bidirectional LSTM weights (PyTorch shapes: Wih (4H,D), Whh (4H,H))
    in_sizes = [C, 2 * h1]
    lstm = []
    for layer in range(2):
        dirs = []
        for _ in range(2):  # forward, reverse
            D = in_sizes[layer]
            dirs.append((nrm((4 * h1, D)), nrm((4 * h1, h1)),
                         nrm((4 * h1,)), nrm((4 * h1,))))
        lstm.append(dirs)
    params["lstm"] = lstm
    return params


def prepare_params(params, n_input, h1, h2, eps=1e-5):
    """One-time prep: conv merge + lane padding, transposes, BN folding into the
    layer-0 input projection, block-diagonal recurrent weights, bf16 MXU operands."""
    H = h1
    Cin = n_input
    OC2 = 2 * OUT_CHANNELS
    OC_PAD = -(-OC2 // 128) * 128                 # pad merged conv channels -> 128 lanes
    bf16 = lambda a: a.astype(jnp.bfloat16)

    # Merge conv1 (K=7, pad=3) into a 13-tap conv by zero-padding its taps, and
    # stack output channels [conv1 | conv2] so each tap is one matmul.
    w1p = jnp.pad(params["conv1_w"], ((0, 0), (0, 0), (3, 3)))        # (OC, Cin, 13)
    w_merged = jnp.concatenate([w1p, params["conv2_w"]], axis=0)       # (2OC, Cin, 13)
    w_taps = jnp.pad(jnp.transpose(w_merged, (2, 1, 0)),
                     ((0, 0), (0, 0), (0, OC_PAD - OC2)))              # (13, Cin, 128)
    b_conv = jnp.pad(jnp.concatenate([params["conv1_b"], params["conv2_b"]]),
                     (0, OC_PAD - OC2)).reshape(1, OC_PAD)

    # BatchNorm (eval) is affine -> fold into the layer-0 LSTM input projection.
    scale = params["bn_gamma"] * jax.lax.rsqrt(params["bn_var"] + eps)   # (C,)
    shift = params["bn_beta"] - params["bn_mean"] * scale

    (wih_f, whh_f, bih_f, bhh_f), (wih_b, whh_b, bih_b, bhh_b) = params["lstm"][0]
    wih0 = jnp.concatenate([wih_f.T, wih_b.T], axis=1)                 # (C, 8H)
    bias0 = jnp.concatenate([bih_f + bhh_f, bih_b + bhh_b])            # (8H,)
    bg0 = (bias0 + shift @ wih0).reshape(1, 8 * H)                     # BN shift folded
    wih0_s = scale[:, None] * wih0                                     # BN scale folded
    w_x = wih0_s[:Cin]                                                 # (Cin, 8H)
    w_cv = jnp.pad(wih0_s[Cin:], ((0, OC_PAD - OC2), (0, 0)))          # (128, 8H)

    whh0 = jnp.zeros((2 * H, 8 * H), jnp.float32)
    whh0 = whh0.at[:H, :4 * H].set(whh_f.T).at[H:, 4 * H:].set(whh_b.T)

    (wih_f1, whh_f1, bih_f1, bhh_f1), (wih_b1, whh_b1, bih_b1, bhh_b1) = params["lstm"][1]
    wih1 = jnp.concatenate([wih_f1.T, wih_b1.T], axis=1)               # (2H, 8H)
    bg1 = jnp.concatenate([bih_f1 + bhh_f1, bih_b1 + bhh_b1]).reshape(1, 8 * H)
    whh1 = jnp.zeros((2 * H, 8 * H), jnp.float32)
    whh1 = whh1.at[:H, :4 * H].set(whh_f1.T).at[H:, 4 * H:].set(whh_b1.T)

    return {
        "w_taps": bf16(w_taps), "b_conv": b_conv,
        "w_x": bf16(w_x), "w_cv": bf16(w_cv), "bg0": bg0,
        "whh0": bf16(whh0),
        "wih1": bf16(wih1), "bg1": bg1, "whh1": bf16(whh1),
        "w1": bf16(params["lin1_w"].T), "b1": params["lin1_b"].reshape(1, h2),
        "w2": bf16(params["lin2_w"].T), "b2": params["lin2_b"].reshape(1, 1),
    }


# --------------------------------------------------------------------------- #
# Full forward
# --------------------------------------------------------------------------- #
def cnn_rnn_ffnn_forward(prep, x):
    # x: (B, L, n_input).  Dropout layers are identity (eval mode).
    B, L, Cin = x.shape
    H8 = prep["whh0"].shape[1]                     # 8 * hidden
    Lp = L + 2 * CONV_PAD
    OCp = prep["w_taps"].shape[2]

    x_pad = jnp.pad(x, ((0, 0), (CONV_PAD, CONV_PAD), (0, 0)))

    def full_spec(arr):
        nd = arr.ndim
        return pl.BlockSpec(arr.shape, lambda b, _nd=nd: (0,) * _nd)

    # Kernel 1: per-batch grid (marked parallel -> lands on both v7x TensorCores).
    gates0 = pl.pallas_call(
        frontend_kernel,
        out_shape=jax.ShapeDtypeStruct((B, L, H8), jnp.float32),
        grid=(B,),
        in_specs=[
            pl.BlockSpec((None, Lp, Cin), lambda b: (b, 0, 0)),
            full_spec(prep["w_taps"]),
            full_spec(prep["b_conv"]),
            full_spec(prep["w_x"]),
            full_spec(prep["w_cv"]),
            full_spec(prep["bg0"]),
        ],
        out_specs=pl.BlockSpec((None, L, H8), lambda b: (b, 0, 0)),
        compiler_params=pltpu.CompilerParams(dimension_semantics=("parallel",)),
    )(x_pad, prep["w_taps"], prep["b_conv"], prep["w_x"], prep["w_cv"], prep["bg0"])

    # Kernel 2: whole BiLSTM stack + head in one launch (inherently serial recurrence).
    out = pl.pallas_call(
        bilstm_head_kernel,
        out_shape=jax.ShapeDtypeStruct((B, 1), jnp.float32),
    )(gates0, prep["whh0"], prep["wih1"], prep["bg1"], prep["whh1"],
      prep["w1"], prep["b1"], prep["w2"], prep["b2"])
    return out


if __name__ == "__main__":
    B, L, n_input = 2, 8, 4
    hidden_linear_1, hidden_linear_2 = 32, 16

    key = jax.random.PRNGKey(0)
    pkey, xkey = jax.random.split(key)
    params = init_params(pkey, n_input, hidden_linear_1, hidden_linear_2)
    prep = prepare_params(params, n_input, hidden_linear_1, hidden_linear_2)
    x = jax.random.normal(xkey, (B, L, n_input), dtype=jnp.float32)

    fwd = jax.jit(cnn_rnn_ffnn_forward)
    out = fwd(prep, x)
    jax.block_until_ready(out)
    assert out.shape == (B, 1), out.shape
    assert bool(jnp.all(jnp.isfinite(out))), "non-finite output"
    print("KERNEL_OK")
</pallas_src>

<mosaic_0001>
module attributes {stable_mosaic.version = 11 : i64} {
  func.func @frontend_kernel(%arg0: i32, %arg1: memref<1x20x4xf32, #tpu.memory_space<vmem>>, %arg2: memref<13x4x128xbf16, #tpu.memory_space<vmem>>, %arg3: memref<1x128xf32, #tpu.memory_space<vmem>>, %arg4: memref<4x256xbf16, #tpu.memory_space<vmem>>, %arg5: memref<128x256xbf16, #tpu.memory_space<vmem>>, %arg6: memref<1x256xf32, #tpu.memory_space<vmem>>, %arg7: memref<1x8x256xf32, #tpu.memory_space<vmem>>) attributes {dimension_semantics = [#tpu.dimension_semantics<parallel>], iteration_bounds = array<i64: 2>, scalar_prefetch = 0 : i64, scratch_operands = 0 : i64, tpu.core_type = #tpu.core_type<tc>, window_params = [{transform_indices = @transform_0, window_bounds = array<i64: 1, 20, 4>}, {pipeline_mode = #tpu.pipeline_mode<synchronous>, transform_indices = @transform_1, window_bounds = array<i64: 13, 4, 128>}, {pipeline_mode = #tpu.pipeline_mode<synchronous>, transform_indices = @transform_2, window_bounds = array<i64: 1, 128>}, {pipeline_mode = #tpu.pipeline_mode<synchronous>, transform_indices = @transform_3, window_bounds = array<i64: 4, 256>}, {pipeline_mode = #tpu.pipeline_mode<synchronous>, transform_indices = @transform_4, window_bounds = array<i64: 128, 256>}, {pipeline_mode = #tpu.pipeline_mode<synchronous>, transform_indices = @transform_5, window_bounds = array<i64: 1, 256>}, {transform_indices = @transform_6, window_bounds = array<i64: 1, 8, 256>}]} {
    %c0 = arith.constant 0 : index
    %c0_0 = arith.constant 0 : index
    %c0_1 = arith.constant 0 : index
    %0 = vector.load %arg1[%c0, %c0_0, %c0_1] : memref<1x20x4xf32, #tpu.memory_space<vmem>>, vector<1x20x4xf32>
    %1 = vector.shape_cast %0 : vector<1x20x4xf32> to vector<20x4xf32>
    %cst = arith.constant 0.000000e+00 : f32
    %2 = vector.broadcast %cst : f32 to vector<8x128xf32>
    %3 = vector.extract_strided_slice %1 {offsets = [0, 0], sizes = [8, 4], strides = [1, 1]} : vector<20x4xf32> to vector<8x4xf32>
    %4 = arith.truncf %3 : vector<8x4xf32> to vector<8x4xbf16>
    %c0_2 = arith.constant 0 : index
    %c0_3 = arith.constant 0 : index
    %c0_4 = arith.constant 0 : index
    %5 = vector.load %arg2[%c0_2, %c0_3, %c0_4] : memref<13x4x128xbf16, #tpu.memory_space<vmem>>, vector<1x4x128xbf16>
    %6 = vector.shape_cast %5 : vector<1x4x128xbf16> to vector<4x128xbf16>
    %cst_5 = arith.constant dense<0.000000e+00> : vector<8x128xf32>
    %7 = tpu.matmul %4, %6, %cst_5 {dimension_numbers = #tpu.dot_dimension_numbers<[1], [0], [0], [1], [0, 0, 1, 1], [], []>} : vector<8x4xbf16>, vector<4x128xbf16>, vector<8x128xf32> -> vector<8x128xf32>
    %8 = arith.addf %2, %7 : vector<8x128xf32>
    %9 = vector.extract_strided_slice %1 {offsets = [1, 0], sizes = [8, 4], strides = [1, 1]} : vector<20x4xf32> to vector<8x4xf32>
    %10 = arith.truncf %9 : vector<8x4xf32> to vector<8x4xbf16>
    %c1 = arith.constant 1 : index
    %c0_6 = arith.constant 0 : index
    %c0_7 = arith.constant 0 : index
    %11 = vector.load %arg2[%c1, %c0_6, %c0_7] : memref<13x4x128xbf16, #tpu.memory_space<vmem>>, vector<1x4x128xbf16>
    %12 = vector.shape_cast %11 : vector<1x4x128xbf16> to vector<4x128xbf16>
    %cst_8 = arith.constant dense<0.000000e+00> : vector<8x128xf32>
    %13 = tpu.matmul %10, %12, %cst_8 {dimension_numbers = #tpu.dot_dimension_numbers<[1], [0], [0], [1], [0, 0, 1, 1], [], []>} : vector<8x4xbf16>, vector<4x128xbf16>, vector<8x128xf32> -> vector<8x128xf32>
    %14 = arith.addf %8, %13 : vector<8x128xf32>
    %15 = vector.extract_strided_slice %1 {offsets = [2, 0], sizes = [8, 4], strides = [1, 1]} : vector<20x4xf32> to vector<8x4xf32>
    %16 = arith.truncf %15 : vector<8x4xf32> to vector<8x4xbf16>
    %c2 = arith.constant 2 : index
    %c0_9 = arith.constant 0 : index
    %c0_10 = arith.constant 0 : index
    %17 = vector.load %arg2[%c2, %c0_9, %c0_10] : memref<13x4x128xbf16, #tpu.memory_space<vmem>>, vector<1x4x128xbf16>
    %18 = vector.shape_cast %17 : vector<1x4x128xbf16> to vector<4x128xbf16>
    %cst_11 = arith.constant dense<0.000000e+00> : vector<8x128xf32>
    %19 = tpu.matmul %16, %18, %cst_11 {dimension_numbers = #tpu.dot_dimension_numbers<[1], [0], [0], [1], [0, 0, 1, 1], [], []>} : vector<8x4xbf16>, vector<4x128xbf16>, vector<8x128xf32> -> vector<8x128xf32>
    %20 = arith.addf %14, %19 : vector<8x128xf32>
    %21 = vector.extract_strided_slice %1 {offsets = [3, 0], sizes = [8, 4], strides = [1, 1]} : vector<20x4xf32> to vector<8x4xf32>
    %22 = arith.truncf %21 : vector<8x4xf32> to vector<8x4xbf16>
    %c3 = arith.constant 3 : index
    %c0_12 = arith.constant 0 : index
    %c0_13 = arith.constant 0 : index
    %23 = vector.load %arg2[%c3, %c0_12, %c0_13] : memref<13x4x128xbf16, #tpu.memory_space<vmem>>, vector<1x4x128xbf16>
    %24 = vector.shape_cast %23 : vector<1x4x128xbf16> to vector<4x128xbf16>
    %cst_14 = arith.constant dense<0.000000e+00> : vector<8x128xf32>
    %25 = tpu.matmul %22, %24, %cst_14 {dimension_numbers = #tpu.dot_dimension_numbers<[1], [0], [0], [1], [0, 0, 1, 1], [], []>} : vector<8x4xbf16>, vector<4x128xbf16>, vector<8x128xf32> -> vector<8x128xf32>
    %26 = arith.addf %20, %25 : vector<8x128xf32>
    %27 = vector.extract_strided_slice %1 {offsets = [4, 0], sizes = [8, 4], strides = [1, 1]} : vector<20x4xf32> to vector<8x4xf32>
    %28 = arith.truncf %27 : vector<8x4xf32> to vector<8x4xbf16>
    %c4 = arith.constant 4 : index
    %c0_15 = arith.constant 0 : index
    %c0_16 = arith.constant 0 : index
    %29 = vector.load %arg2[%c4, %c0_15, %c0_16] : memref<13x4x128xbf16, #tpu.memory_space<vmem>>, vector<1x4x128xbf16>
    %30 = vector.shape_cast %29 : vector<1x4x128xbf16> to vector<4x128xbf16>
    %cst_17 = arith.constant dense<0.000000e+00> : vector<8x128xf32>
    %31 = tpu.matmul %28, %30, %cst_17 {dimension_numbers = #tpu.dot_dimension_numbers<[1], [0], [0], [1], [0, 0, 1, 1], [], []>} : vector<8x4xbf16>, vector<4x128xbf16>, vector<8x128xf32> -> vector<8x128xf32>
    %32 = arith.addf %26, %31 : vector<8x128xf32>
    %33 = vector.extract_strided_slice %1 {offsets = [5, 0], sizes = [8, 4], strides = [1, 1]} : vector<20x4xf32> to vector<8x4xf32>
    %34 = arith.truncf %33 : vector<8x4xf32> to vector<8x4xbf16>
    %c5 = arith.constant 5 : index
    %c0_18 = arith.constant 0 : index
    %c0_19 = arith.constant 0 : index
    %35 = vector.load %arg2[%c5, %c0_18, %c0_19] : memref<13x4x128xbf16, #tpu.memory_space<vmem>>, vector<1x4x128xbf16>
    %36 = vector.shape_cast %35 : vector<1x4x128xbf16> to vector<4x128xbf16>
    %cst_20 = arith.constant dense<0.000000e+00> : vector<8x128xf32>
    %37 = tpu.matmul %34, %36, %cst_20 {dimension_numbers = #tpu.dot_dimension_numbers<[1], [0], [0], [1], [0, 0, 1, 1], [], []>} : vector<8x4xbf16>, vector<4x128xbf16>, vector<8x128xf32> -> vector<8x128xf32>
    %38 = arith.addf %32, %37 : vector<8x128xf32>
    %39 = vector.extract_strided_slice %1 {offsets = [6, 0], sizes = [8, 4], strides = [1, 1]} : vector<20x4xf32> to vector<8x4xf32>
    %40 = arith.truncf %39 : vector<8x4xf32> to vector<8x4xbf16>
    %c6 = arith.constant 6 : index
    %c0_21 = arith.constant 0 : index
    %c0_22 = arith.constant 0 : index
    %41 = vector.load %arg2[%c6, %c0_21, %c0_22] : memref<13x4x128xbf16, #tpu.memory_space<vmem>>, vector<1x4x128xbf16>
    %42 = vector.shape_cast %41 : vector<1x4x128xbf16> to vector<4x128xbf16>
    %cst_23 = arith.constant dense<0.000000e+00> : vector<8x128xf32>
    %43 = tpu.matmul %40, %42, %cst_23 {dimension_numbers = #tpu.dot_dimension_numbers<[1], [0], [0], [1], [0, 0, 1, 1], [], []>} : vector<8x4xbf16>, vector<4x128xbf16>, vector<8x128xf32> -> vector<8x128xf32>
    %44 = arith.addf %38, %43 : vector<8x128xf32>
    %45 = vector.extract_strided_slice %1 {offsets = [7, 0], sizes = [8, 4], strides = [1, 1]} : vector<20x4xf32> to vector<8x4xf32>
    %46 = arith.truncf %45 : vector<8x4xf32> to vector<8x4xbf16>
    %c7 = arith.constant 7 : index
    %c0_24 = arith.constant 0 : index
    %c0_25 = arith.constant 0 : index
    %47 = vector.load %arg2[%c7, %c0_24, %c0_25] : memref<13x4x128xbf16, #tpu.memory_space<vmem>>, vector<1x4x128xbf16>
    %48 = vector.shape_cast %47 : vector<1x4x128xbf16> to vector<4x128xbf16>
    %cst_26 = arith.constant dense<0.000000e+00> : vector<8x128xf32>
    %49 = tpu.matmul %46, %48, %cst_26 {dimension_numbers = #tpu.dot_dimension_numbers<[1], [0], [0], [1], [0, 0, 1, 1], [], []>} : vector<8x4xbf16>, vector<4x128xbf16>, vector<8x128xf32> -> vector<8x128xf32>
    %50 = arith.addf %44, %49 : vector<8x128xf32>
    %51 = vector.extract_strided_slice %1 {offsets = [8, 0], sizes = [8, 4], strides = [1, 1]} : vector<20x4xf32> to vector<8x4xf32>
    %52 = arith.truncf %51 : vector<8x4xf32> to vector<8x4xbf16>
    %c8 = arith.constant 8 : index
    %c0_27 = arith.constant 0 : index
    %c0_28 = arith.constant 0 : index
    %53 = vector.load %arg2[%c8, %c0_27, %c0_28] : memref<13x4x128xbf16, #tpu.memory_space<vmem>>, vector<1x4x128xbf16>
    %54 = vector.shape_cast %53 : vector<1x4x128xbf16> to vector<4x128xbf16>
    %cst_29 = arith.constant dense<0.000000e+00> : vector<8x128xf32>
    %55 = tpu.matmul %52, %54, %cst_29 {dimension_numbers = #tpu.dot_dimension_numbers<[1], [0], [0], [1], [0, 0, 1, 1], [], []>} : vector<8x4xbf16>, vector<4x128xbf16>, vector<8x128xf32> -> vector<8x128xf32>
    %56 = arith.addf %50, %55 : vector<8x128xf32>
    %57 = vector.extract_strided_slice %1 {offsets = [9, 0], sizes = [8, 4], strides = [1, 1]} : vector<20x4xf32> to vector<8x4xf32>
    %58 = arith.truncf %57 : vector<8x4xf32> to vector<8x4xbf16>
    %c9 = arith.constant 9 : index
    %c0_30 = arith.constant 0 : index
    %c0_31 = arith.constant 0 : index
    %59 = vector.load %arg2[%c9, %c0_30, %c0_31] : memref<13x4x128xbf16, #tpu.memory_space<vmem>>, vector<1x4x128xbf16>
    %60 = vector.shape_cast %59 : vector<1x4x128xbf16> to vector<4x128xbf16>
    %cst_32 = arith.constant dense<0.000000e+00> : vector<8x128xf32>
    %61 = tpu.matmul %58, %60, %cst_32 {dimension_numbers = #tpu.dot_dimension_numbers<[1], [0], [0], [1], [0, 0, 1, 1], [], []>} : vector<8x4xbf16>, vector<4x128xbf16>, vector<8x128xf32> -> vector<8x128xf32>
    %62 = arith.addf %56, %61 : vector<8x128xf32>
    %63 = vector.extract_strided_slice %1 {offsets = [10, 0], sizes = [8, 4], strides = [1, 1]} : vector<20x4xf32> to vector<8x4xf32>
    %64 = arith.truncf %63 : vector<8x4xf32> to vector<8x4xbf16>
    %c10 = arith.constant 10 : index
    %c0_33 = arith.constant 0 : index
    %c0_34 = arith.constant 0 : index
    %65 = vector.load %arg2[%c10, %c0_33, %c0_34] : memref<13x4x128xbf16, #tpu.memory_space<vmem>>, vector<1x4x128xbf16>
    %66 = vector.shape_cast %65 : vector<1x4x128xbf16> to vector<4x128xbf16>
    %cst_35 = arith.constant dense<0.000000e+00> : vector<8x128xf32>
    %67 = tpu.matmul %64, %66, %cst_35 {dimension_numbers = #tpu.dot_dimension_numbers<[1], [0], [0], [1], [0, 0, 1, 1], [], []>} : vector<8x4xbf16>, vector<4x128xbf16>, vector<8x128xf32> -> vector<8x128xf32>
    %68 = arith.addf %62, %67 : vector<8x128xf32>
    %69 = vector.extract_strided_slice %1 {offsets = [11, 0], sizes = [8, 4], strides = [1, 1]} : vector<20x4xf32> to vector<8x4xf32>
    %70 = arith.truncf %69 : vector<8x4xf32> to vector<8x4xbf16>
    %c11 = arith.constant 11 : index
    %c0_36 = arith.constant 0 : index
    %c0_37 = arith.constant 0 : index
    %71 = vector.load %arg2[%c11, %c0_36, %c0_37] : memref<13x4x128xbf16, #tpu.memory_space<vmem>>, vector<1x4x128xbf16>
    %72 = vector.shape_cast %71 : vector<1x4x128xbf16> to vector<4x128xbf16>
    %cst_38 = arith.constant dense<0.000000e+00> : vector<8x128xf32>
    %73 = tpu.matmul %70, %72, %cst_38 {dimension_numbers = #tpu.dot_dimension_numbers<[1], [0], [0], [1], [0, 0, 1, 1], [], []>} : vector<8x4xbf16>, vector<4x128xbf16>, vector<8x128xf32> -> vector<8x128xf32>
    %74 = arith.addf %68, %73 : vector<8x128xf32>
    %75 = vector.extract_strided_slice %1 {offsets = [12, 0], sizes = [8, 4], strides = [1, 1]} : vector<20x4xf32> to vector<8x4xf32>
    %76 = arith.truncf %75 : vector<8x4xf32> to vector<8x4xbf16>
    %c12 = arith.constant 12 : index
    %c0_39 = arith.constant 0 : index
    %c0_40 = arith.constant 0 : index
    %77 = vector.load %arg2[%c12, %c0_39, %c0_40] : memref<13x4x128xbf16, #tpu.memory_space<vmem>>, vector<1x4x128xbf16>
    %78 = vector.shape_cast %77 : vector<1x4x128xbf16> to vector<4x128xbf16>
    %cst_41 = arith.constant dense<0.000000e+00> : vector<8x128xf32>
    %79 = tpu.matmul %76, %78, %cst_41 {dimension_numbers = #tpu.dot_dimension_numbers<[1], [0], [0], [1], [0, 0, 1, 1], [], []>} : vector<8x4xbf16>, vector<4x128xbf16>, vector<8x128xf32> -> vector<8x128xf32>
    %80 = arith.addf %74, %79 : vector<8x128xf32>
    %c0_42 = arith.constant 0 : index
    %c0_43 = arith.constant 0 : index
    %81 = vector.load %arg3[%c0_42, %c0_43] : memref<1x128xf32, #tpu.memory_space<vmem>>, vector<1x128xf32>
    %82 = vector.broadcast %81 : vector<1x128xf32> to vector<8x128xf32>
    %83 = arith.addf %80, %82 : vector<8x128xf32>
    %cst_44 = arith.constant 0.000000e+00 : f32
    %84 = vector.broadcast %cst_44 : f32 to vector<8x128xf32>
    %85 = arith.maximumf %83, %84 : vector<8x128xf32>
    %86 = vector.extract_strided_slice %1 {offsets = [6, 0], sizes = [8, 4], strides = [1, 1]} : vector<20x4xf32> to vector<8x4xf32>
    %87 = arith.truncf %86 : vector<8x4xf32> to vector<8x4xbf16>
    %c0_45 = arith.constant 0 : index
    %c0_46 = arith.constant 0 : index
    %88 = vector.load %arg4[%c0_45, %c0_46] : memref<4x256xbf16, #tpu.memory_space<vmem>>, vector<4x256xbf16>
    %cst_47 = arith.constant dense<0.000000e+00> : vector<8x256xf32>
    %89 = tpu.matmul %87, %88, %cst_47 {dimension_numbers = #tpu.dot_dimension_numbers<[1], [0], [0], [1], [0, 0, 1, 1], [], []>} : vector<8x4xbf16>, vector<4x256xbf16>, vector<8x256xf32> -> vector<8x256xf32>
    %90 = arith.truncf %85 : vector<8x128xf32> to vector<8x128xbf16>
    %c0_48 = arith.constant 0 : index
    %c0_49 = arith.constant 0 : index
    %91 = vector.load %arg5[%c0_48, %c0_49] : memref<128x256xbf16, #tpu.memory_space<vmem>>, vector<128x256xbf16>
    %cst_50 = arith.constant dense<0.000000e+00> : vector<8x256xf32>
    %92 = tpu.matmul %90, %91, %cst_50 {dimension_numbers = #tpu.dot_dimension_numbers<[1], [0], [0], [1], [0, 0, 1, 1], [], []>} : vector<8x128xbf16>, vector<128x256xbf16>, vector<8x256xf32> -> vector<8x256xf32>
    %93 = arith.addf %89, %92 : vector<8x256xf32>
    %c0_51 = arith.constant 0 : index
    %c0_52 = arith.constant 0 : index
    %94 = vector.load %arg6[%c0_51, %c0_52] : memref<1x256xf32, #tpu.memory_space<vmem>>, vector<1x256xf32>
    %95 = vector.broadcast %94 : vector<1x256xf32> to vector<8x256xf32>
    %96 = arith.addf %93, %95 : vector<8x256xf32>
    %c0_53 = arith.constant 0 : index
    %c0_54 = arith.constant 0 : index
    %c0_55 = arith.constant 0 : index
    %97 = vector.load %arg7[%c0_53, %c0_54, %c0_55] : memref<1x8x256xf32, #tpu.memory_space<vmem>>, vector<1x8x256xf32>
    %98 = vector.shape_cast %97 : vector<1x8x256xf32> to vector<8x256xf32>
    %99 = vector.shape_cast %96 : vector<8x256xf32> to vector<1x8x256xf32>
    tpu.vector_store %arg7[%c0_53, %c0_54, %c0_55], %99 {strides = array<i32>} : memref<1x8x256xf32, #tpu.memory_space<vmem>>, vector<1x8x256xf32>,
    return
  }
  func.func @transform_0(%arg0: i32) -> (i32, i32, i32) {
    %c0_i32 = arith.constant 0 : i32
    %c0_i32_0 = arith.constant 0 : i32
    %c0_i32_1 = arith.constant 0 : i32
    return %arg0, %c0_i32, %c0_i32_0 : i32, i32, i32
  }
  func.func @transform_1(%arg0: i32) -> (i32, i32, i32) {
    %c0_i32 = arith.constant 0 : i32
    %c0_i32_0 = arith.constant 0 : i32
    %c0_i32_1 = arith.constant 0 : i32
    %c0_i32_2 = arith.constant 0 : i32
    return %c0_i32, %c0_i32_0, %c0_i32_1 : i32, i32, i32
  }
  func.func @transform_2(%arg0: i32) -> (i32, i32) {
    %c0_i32 = arith.constant 0 : i32
    %c0_i32_0 = arith.constant 0 : i32
    %c0_i32_1 = arith.constant 0 : i32
    return %c0_i32, %c0_i32_0 : i32, i32
  }
  func.func @transform_3(%arg0: i32) -> (i32, i32) {
    %c0_i32 = arith.constant 0 : i32
    %c0_i32_0 = arith.constant 0 : i32
    %c0_i32_1 = arith.constant 0 : i32
    return %c0_i32, %c0_i32_0 : i32, i32
  }
  func.func @transform_4(%arg0: i32) -> (i32, i32) {
    %c0_i32 = arith.constant 0 : i32
    %c0_i32_0 = arith.constant 0 : i32
    %c0_i32_1 = arith.constant 0 : i32
    return %c0_i32, %c0_i32_0 : i32, i32
  }
  func.func @transform_5(%arg0: i32) -> (i32, i32) {
    %c0_i32 = arith.constant 0 : i32
    %c0_i32_0 = arith.constant 0 : i32
    %c0_i32_1 = arith.constant 0 : i32
    return %c0_i32, %c0_i32_0 : i32, i32
  }
  func.func @transform_6(%arg0: i32) -> (i32, i32, i32) {
    %c0_i32 = arith.constant 0 : i32
    %c0_i32_0 = arith.constant 0 : i32
    %c0_i32_1 = arith.constant 0 : i32
    return %arg0, %c0_i32, %c0_i32_0 : i32, i32, i32
  }
}

module attributes {stable_mosaic.version = 11 : i64} {
  func.func @bilstm_head_kernel(%arg0: memref<2x8x256xf32, #tpu.memory_space<vmem>>, %arg1: memref<64x256xbf16, #tpu.memory_space<vmem>>, %arg2: memref<64x256xbf16, #tpu.memory_space<vmem>>, %arg3: memref<1x256xf32, #tpu.memory_space<vmem>>, %arg4: memref<64x256xbf16, #tpu.memory_space<vmem>>, %arg5: memref<64x16xbf16, #tpu.memory_space<vmem>>, %arg6: memref<1x16xf32, #tpu.memory_space<vmem>>, %arg7: memref<16x1xbf16, #tpu.memory_space<vmem>>, %arg8: memref<1x1xf32, #tpu.memory_space<vmem>>, %arg9: memref<2x1xf32, #tpu.memory_space<vmem>>) attributes {dimension_semantics = [], scalar_prefetch = 0 : i64, scratch_operands = 0 : i64, tpu.core_type = #tpu.core_type<tc>} {
    %c0 = arith.constant 0 : index
    %c0_0 = arith.constant 0 : index
    %c0_1 = arith.constant 0 : index
    %0 = vector.load %arg0[%c0, %c0_0, %c0_1] : memref<2x8x256xf32, #tpu.memory_space<vmem>>, vector<1x8x256xf32>
    %1 = vector.shape_cast %0 : vector<1x8x256xf32> to vector<8x256xf32>
    %c1 = arith.constant 1 : index
    %c0_2 = arith.constant 0 : index
    %c0_3 = arith.constant 0 : index
    %2 = vector.load %arg0[%c1, %c0_2, %c0_3] : memref<2x8x256xf32, #tpu.memory_space<vmem>>, vector<1x8x256xf32>
    %3 = vector.shape_cast %2 : vector<1x8x256xf32> to vector<8x256xf32>
    %cst = arith.constant 0.000000e+00 : f32
    %4 = vector.broadcast %cst : f32 to vector<2x64xf32>
    %cst_4 = arith.constant 0.000000e+00 : f32
    %5 = vector.broadcast %cst_4 : f32 to vector<2x32xf32>
    %cst_5 = arith.constant 0.000000e+00 : f32
    %6 = vector.broadcast %cst_5 : f32 to vector<2x32xf32>
    %7 = arith.truncf %4 : vector<2x64xf32> to vector<2x64xbf16>
    %c0_6 = arith.constant 0 : index
    %c0_7 = arith.constant 0 : index
    %8 = vector.load %arg1[%c0_6, %c0_7] : memref<64x256xbf16, #tpu.memory_space<vmem>>, vector<64x256xbf16>
    %cst_8 = arith.constant dense<0.000000e+00> : vector<2x256xf32>
    %9 = tpu.matmul %7, %8, %cst_8 {dimension_numbers = #tpu.dot_dimension_numbers<[1], [0], [0], [1], [0, 0, 1, 1], [], []>} : vector<2x64xbf16>, vector<64x256xbf16>, vector<2x256xf32> -> vector<2x256xf32>
    %10 = vector.extract_strided_slice %1 {offsets = [0, 0], sizes = [1, 128], strides = [1, 1]} : vector<8x256xf32> to vector<1x128xf32>
    %11 = vector.extract_strided_slice %3 {offsets = [0, 0], sizes = [1, 128], strides = [1, 1]} : vector<8x256xf32> to vector<1x128xf32>
    %12 = tpu.concatenate %10, %11 in 0 : vector<1x128xf32>, vector<1x128xf32> -> vector<2x128xf32>
    %13 = vector.extract_strided_slice %9 {offsets = [0, 0], sizes = [2, 128], strides = [1, 1]} : vector<2x256xf32> to vector<2x128xf32>
    %14 = arith.addf %12, %13 : vector<2x128xf32>
    %15 = vector.extract_strided_slice %14 {offsets = [0, 0], sizes = [2, 32], strides = [1, 1]} : vector<2x128xf32> to vector<2x32xf32>
    %16 = arith.negf %15 : vector<2x32xf32>
    %17 = math.exp %16 : vector<2x32xf32>
    %cst_9 = arith.constant 1.000000e+00 : f32
    %18 = vector.broadcast %cst_9 : f32 to vector<2x32xf32>
    %19 = arith.addf %18, %17 : vector<2x32xf32>
    %20 = arith.divf %18, %19 : vector<2x32xf32>
    %21 = vector.extract_strided_slice %14 {offsets = [0, 32], sizes = [2, 32], strides = [1, 1]} : vector<2x128xf32> to vector<2x32xf32>
    %22 = arith.negf %21 : vector<2x32xf32>
    %23 = math.exp %22 : vector<2x32xf32>
    %cst_10 = arith.constant 1.000000e+00 : f32
    %24 = vector.broadcast %cst_10 : f32 to vector<2x32xf32>
    %25 = arith.addf %24, %23 : vector<2x32xf32>
    %26 = arith.divf %24, %25 : vector<2x32xf32>
    %27 = vector.extract_strided_slice %14 {offsets = [0, 64], sizes = [2, 32], strides = [1, 1]} : vector<2x128xf32> to vector<2x32xf32>
    %28 = math.tanh %27 : vector<2x32xf32>
    %29 = vector.extract_strided_slice %14 {offsets = [0, 96], sizes = [2, 32], strides = [1, 1]} : vector<2x128xf32> to vector<2x32xf32>
    %30 = arith.negf %29 : vector<2x32xf32>
    %31 = math.exp %30 : vector<2x32xf32>
    %cst_11 = arith.constant 1.000000e+00 : f32
    %32 = vector.broadcast %cst_11 : f32 to vector<2x32xf32>
    %33 = arith.addf %32, %31 : vector<2x32xf32>
    %34 = arith.divf %32, %33 : vector<2x32xf32>
    %35 = arith.mulf %26, %5 : vector<2x32xf32>
    %36 = arith.mulf %20, %28 : vector<2x32xf32>
    %37 = arith.addf %35, %36 : vector<2x32xf32>
    %38 = math.tanh %37 : vector<2x32xf32>
    %39 = arith.mulf %34, %38 : vector<2x32xf32>
    %40 = vector.extract_strided_slice %1 {offsets = [7, 128], sizes = [1, 128], strides = [1, 1]} : vector<8x256xf32> to vector<1x128xf32>
    %41 = vector.extract_strided_slice %3 {offsets = [7, 128], sizes = [1, 128], strides = [1, 1]} : vector<8x256xf32> to vector<1x128xf32>
    %42 = tpu.concatenate %40, %41 in 0 : vector<1x128xf32>, vector<1x128xf32> -> vector<2x128xf32>
    %43 = vector.extract_strided_slice %9 {offsets = [0, 128], sizes = [2, 128], strides = [1, 1]} : vector<2x256xf32> to vector<2x128xf32>
    %44 = arith.addf %42, %43 : vector<2x128xf32>
    %45 = vector.extract_strided_slice %44 {offsets = [0, 0], sizes = [2, 32], strides = [1, 1]} : vector<2x128xf32> to vector<2x32xf32>
    %46 = arith.negf %45 : vector<2x32xf32>
    %47 = math.exp %46 : vector<2x32xf32>
    %cst_12 = arith.constant 1.000000e+00 : f32
    %48 = vector.broadcast %cst_12 : f32 to vector<2x32xf32>
    %49 = arith.addf %48, %47 : vector<2x32xf32>
    %50 = arith.divf %48, %49 : vector<2x32xf32>
    %51 = vector.extract_strided_slice %44 {offsets = [0, 32], sizes = [2, 32], strides = [1, 1]} : vector<2x128xf32> to vector<2x32xf32>
    %52 = arith.negf %51 : vector<2x32xf32>
    %53 = math.exp %52 : vector<2x32xf32>
    %cst_13 = arith.constant 1.000000e+00 : f32
    %54 = vector.broadcast %cst_13 : f32 to vector<2x32xf32>
    %55 = arith.addf %54, %53 : vector<2x32xf32>
    %56 = arith.divf %54, %55 : vector<2x32xf32>
    %57 = vector.extract_strided_slice %44 {offsets = [0, 64], sizes = [2, 32], strides = [1, 1]} : vector<2x128xf32> to vector<2x32xf32>
    %58 = math.tanh %57 : vector<2x32xf32>
    %59 = vector.extract_strided_slice %44 {offsets = [0, 96], sizes = [2, 32], strides = [1, 1]} : vector<2x128xf32> to vector<2x32xf32>
    %60 = arith.negf %59 : vector<2x32xf32>
    %61 = math.exp %60 : vector<2x32xf32>
    %cst_14 = arith.constant 1.000000e+00 : f32
    %62 = vector.broadcast %cst_14 : f32 to vector<2x32xf32>
    %63 = arith.addf %62, %61 : vector<2x32xf32>
    %64 = arith.divf %62, %63 : vector<2x32xf32>
    %65 = arith.mulf %56, %6 : vector<2x32xf32>
    %66 = arith.mulf %50, %58 : vector<2x32xf32>
    %67 = arith.addf %65, %66 : vector<2x32xf32>
    %68 = math.tanh %67 : vector<2x32xf32>
    %69 = arith.mulf %64, %68 : vector<2x32xf32>
    %70 = tpu.concatenate %39, %69 in 1 : vector<2x32xf32>, vector<2x32xf32> -> vector<2x64xf32>
    %71 = arith.truncf %70 : vector<2x64xf32> to vector<2x64xbf16>
    %c0_15 = arith.constant 0 : index
    %c0_16 = arith.constant 0 : index
    %72 = vector.load %arg1[%c0_15, %c0_16] : memref<64x256xbf16, #tpu.memory_space<vmem>>, vector<64x256xbf16>
    %cst_17 = arith.constant dense<0.000000e+00> : vector<2x256xf32>
    %73 = tpu.matmul %71, %72, %cst_17 {dimension_numbers = #tpu.dot_dimension_numbers<[1], [0], [0], [1], [0, 0, 1, 1], [], []>} : vector<2x64xbf16>, vector<64x256xbf16>, vector<2x256xf32> -> vector<2x256xf32>
    %74 = vector.extract_strided_slice %1 {offsets = [1, 0], sizes = [1, 128], strides = [1, 1]} : vector<8x256xf32> to vector<1x128xf32>
    %75 = vector.extract_strided_slice %3 {offsets = [1, 0], sizes = [1, 128], strides = [1, 1]} : vector<8x256xf32> to vector<1x128xf32>
    %76 = tpu.concatenate %74, %75 in 0 : vector<1x128xf32>, vector<1x128xf32> -> vector<2x128xf32>
    %77 = vector.extract_strided_slice %73 {offsets = [0, 0], sizes = [2, 128], strides = [1, 1]} : vector<2x256xf32> to vector<2x128xf32>
    %78 = arith.addf %76, %77 : vector<2x128xf32>
    %79 = vector.extract_strided_slice %78 {offsets = [0, 0], sizes = [2, 32], strides = [1, 1]} : vector<2x128xf32> to vector<2x32xf32>
    %80 = arith.negf %79 : vector<2x32xf32>
    %81 = math.exp %80 : vector<2x32xf32>
    %cst_18 = arith.constant 1.000000e+00 : f32
    %82 = vector.broadcast %cst_18 : f32 to vector<2x32xf32>
    %83 = arith.addf %82, %81 : vector<2x32xf32>
    %84 = arith.divf %82, %83 : vector<2x32xf32>
    %85 = vector.extract_strided_slice %78 {offsets = [0, 32], sizes = [2, 32], strides = [1, 1]} : vector<2x128xf32> to vector<2x32xf32>
    %86 = arith.negf %85 : vector<2x32xf32>
    %87 = math.exp %86 : vector<2x32xf32>
    %cst_19 = arith.constant 1.000000e+00 : f32
    %88 = vector.broadcast %cst_19 : f32 to vector<2x32xf32>
    %89 = arith.addf %88, %87 : vector<2x32xf32>
    %90 = arith.divf %88, %89 : vector<2x32xf32>
    %91 = vector.extract_strided_slice %78 {offsets = [0, 64], sizes = [2, 32], strides = [1, 1]} : vector<2x128xf32> to vector<2x32xf32>
    %92 = math.tanh %91 : vector<2x32xf32>
    %93 = vector.extract_strided_slice %78 {offsets = [0, 96], sizes = [2, 32], strides = [1, 1]} : vector<2x128xf32> to vector<2x32xf32>
    %94 = arith.negf %93 : vector<2x32xf32>
    %95 = math.exp %94 : vector<2x32xf32>
    %cst_20 = arith.constant 1.000000e+00 : f32
    %96 = vector.broadcast %cst_20 : f32 to vector<2x32xf32>
    %97 = arith.addf %96, %95 : vector<2x32xf32>
    %98 = arith.divf %96, %97 : vector<2x32xf32>
    %99 = arith.mulf %90, %37 : vector<2x32xf32>
    %100 = arith.mulf %84, %92 : vector<2x32xf32>
    %101 = arith.addf %99, %100 : vector<2x32xf32>
    %102 = math.tanh %101 : vector<2x32xf32>
    %103 = arith.mulf %98, %102 : vector<2x32xf32>
    %104 = vector.extract_strided_slice %1 {offsets = [6, 128], sizes = [1, 128], strides = [1, 1]} : vector<8x256xf32> to vector<1x128xf32>
    %105 = vector.extract_strided_slice %3 {offsets = [6, 128], sizes = [1, 128], strides = [1, 1]} : vector<8x256xf32> to vector<1x128xf32>
    %106 = tpu.concatenate %104, %105 in 0 : vector<1x128xf32>, vector<1x128xf32> -> vector<2x128xf32>
    %107 = vector.extract_strided_slice %73 {offsets = [0, 128], sizes = [2, 128], strides = [1, 1]} : vector<2x256xf32> to vector<2x128xf32>
    %108 = arith.addf %106, %107 : vector<2x128xf32>
    %109 = vector.extract_strided_slice %108 {offsets = [0, 0], sizes = [2, 32], strides = [1, 1]} : vector<2x128xf32> to vector<2x32xf32>
    %110 = arith.negf %109 : vector<2x32xf32>
    %111 = math.exp %110 : vector<2x32xf32>
    %cst_21 = arith.constant 1.000000e+00 : f32
    %112 = vector.broadcast %cst_21 : f32 to vector<2x32xf32>
    %113 = arith.addf %112, %111 : vector<2x32xf32>
    %114 = arith.divf %112, %113 : vector<2x32xf32>
    %115 = vector.extract_strided_slice %108 {offsets = [0, 32], sizes = [2, 32], strides = [1, 1]} : vector<2x128xf32> to vector<2x32xf32>
    %116 = arith.negf %115 : vector<2x32xf32>
    %117 = math.exp %116 : vector<2x32xf32>
    %cst_22 = arith.constant 1.000000e+00 : f32
    %118 = vector.broadcast %cst_22 : f32 to vector<2x32xf32>
    %119 = arith.addf %118, %117 : vector<2x32xf32>
    %120 = arith.divf %118, %119 : vector<2x32xf32>
    %121 = vector.extract_strided_slice %108 {offsets = [0, 64], sizes = [2, 32], strides = [1, 1]} : vector<2x128xf32> to vector<2x32xf32>
    %122 = math.tanh %121 : vector<2x32xf32>
    %123 = vector.extract_strided_slice %108 {offsets = [0, 96], sizes = [2, 32], strides = [1, 1]} : vector<2x128xf32> to vector<2x32xf32>
    %124 = arith.negf %123 : vector<2x32xf32>
    %125 = math.exp %124 : vector<2x32xf32>
    %cst_23 = arith.constant 1.000000e+00 : f32
    %126 = vector.broadcast %cst_23 : f32 to vector<2x32xf32>
    %127 = arith.addf %126, %125 : vector<2x32xf32>
    %128 = arith.divf %126, %127 : vector<2x32xf32>
    %129 = arith.mulf %120, %67 : vector<2x32xf32>
    %130 = arith.mulf %114, %122 : vector<2x32xf32>
    %131 = arith.addf %129, %130 : vector<2x32xf32>
    %132 = math.tanh %131 : vector<2x32xf32>
    %133 = arith.mulf %128, %132 : vector<2x32xf32>
    %134 = tpu.concatenate %103, %133 in 1 : vector<2x32xf32>, vector<2x32xf32> -> vector<2x64xf32>
    %135 = arith.truncf %134 : vector<2x64xf32> to vector<2x64xbf16>
    %c0_24 = arith.constant 0 : index
    %c0_25 = arith.constant 0 : index
    %136 = vector.load %arg1[%c0_24, %c0_25] : memref<64x256xbf16, #tpu.memory_space<vmem>>, vector<64x256xbf16>
    %cst_26 = arith.constant dense<0.000000e+00> : vector<2x256xf32>
    %137 = tpu.matmul %135, %136, %cst_26 {dimension_numbers = #tpu.dot_dimension_numbers<[1], [0], [0], [1], [0, 0, 1, 1], [], []>} : vector<2x64xbf16>, vector<64x256xbf16>, vector<2x256xf32> -> vector<2x256xf32>
    %138 = vector.extract_strided_slice %1 {offsets = [2, 0], sizes = [1, 128], strides = [1, 1]} : vector<8x256xf32> to vector<1x128xf32>
    %139 = vector.extract_strided_slice %3 {offsets = [2, 0], sizes = [1, 128], strides = [1, 1]} : vector<8x256xf32> to vector<1x128xf32>
    %140 = tpu.concatenate %138, %139 in 0 : vector<1x128xf32>, vector<1x128xf32> -> vector<2x128xf32>
    %141 = vector.extract_strided_slice %137 {offsets = [0, 0], sizes = [2, 128], strides = [1, 1]} : vector<2x256xf32> to vector<2x128xf32>
    %142 = arith.addf %140, %141 : vector<2x128xf32>
    %143 = vector.extract_strided_slice %142 {offsets = [0, 0], sizes = [2, 32], strides = [1, 1]} : vector<2x128xf32> to vector<2x32xf32>
    %144 = arith.negf %143 : vector<2x32xf32>
    %145 = math.exp %144 : vector<2x32xf32>
    %cst_27 = arith.constant 1.000000e+00 : f32
    %146 = vector.broadcast %cst_27 : f32 to vector<2x32xf32>
    %147 = arith.addf %146, %145 : vector<2x32xf32>
    %148 = arith.divf %146, %147 : vector<2x32xf32>
    %149 = vector.extract_strided_slice %142 {offsets = [0, 32], sizes = [2, 32], strides = [1, 1]} : vector<2x128xf32> to vector<2x32xf32>
    %150 = arith.negf %149 : vector<2x32xf32>
    %151 = math.exp %150 : vector<2x32xf32>
    %cst_28 = arith.constant 1.000000e+00 : f32
    %152 = vector.broadcast %cst_28 : f32 to vector<2x32xf32>
    %153 = arith.addf %152, %151 : vector<2x32xf32>
    %154 = arith.divf %152, %153 : vector<2x32xf32>
    %155 = vector.extract_strided_slice %142 {offsets = [0, 64], sizes = [2, 32], strides = [1, 1]} : vector<2x128xf32> to vector<2x32xf32>
    %156 = math.tanh %155 : vector<2x32xf32>
    %157 = vector.extract_strided_slice %142 {offsets = [0, 96], sizes = [2, 32], strides = [1, 1]} : vector<2x128xf32> to vector<2x32xf32>
    %158 = arith.negf %157 : vector<2x32xf32>
    %159 = math.exp %158 : vector<2x32xf32>
    %cst_29 = arith.constant 1.000000e+00 : f32
    %160 = vector.broadcast %cst_29 : f32 to vector<2x32xf32>
    %161 = arith.addf %160, %159 : vector<2x32xf32>
    %162 = arith.divf %160, %161 : vector<2x32xf32>
    %163 = arith.mulf %154, %101 : vector<2x32xf32>
    %164 = arith.mulf %148, %156 : vector<2x32xf32>
    %165 = arith.addf %163, %164 : vector<2x32xf32>
    %166 = math.tanh %165 : vector<2x32xf32>
    %167 = arith.mulf %162, %166 : vector<2x32xf32>
    %168 = vector.extract_strided_slice %1 {offsets = [5, 128], sizes = [1, 128], strides = [1, 1]} : vector<8x256xf32> to vector<1x128xf32>
    %169 = vector.extract_strided_slice %3 {offsets = [5, 128], sizes = [1, 128], strides = [1, 1]} : vector<8x256xf32> to vector<1x128xf32>
    %170 = tpu.concatenate %168, %169 in 0 : vector<1x128xf32>, vector<1x128xf32> -> vector<2x128xf32>
    %171 = vector.extract_strided_slice %137 {offsets = [0, 128], sizes = [2, 128], strides = [1, 1]} : vector<2x256xf32> to vector<2x128xf32>
    %172 = arith.addf %170, %171 : vector<2x128xf32>
    %173 = vector.extract_strided_slice %172 {offsets = [0, 0], sizes = [2, 32], strides = [1, 1]} : vector<2x128xf32> to vector<2x32xf32>
    %174 = arith.negf %173 : vector<2x32xf32>
    %175 = math.exp %174 : vector<2x32xf32>
    %cst_30 = arith.constant 1.000000e+00 : f32
    %176 = vector.broadcast %cst_30 : f32 to vector<2x32xf32>
    %177 = arith.addf %176, %175 : vector<2x32xf32>
    %178 = arith.divf %176, %177 : vector<2x32xf32>
    %179 = vector.extract_strided_slice %172 {offsets = [0, 32], sizes = [2, 32], strides = [1, 1]} : vector<2x128xf32> to vector<2x32xf32>
    %180 = arith.negf %179 : vector<2x32xf32>
    %181 = math.exp %180 : vector<2x32xf32>
    %cst_31 = arith.constant 1.000000e+00 : f32
    %182 = vector.broadcast %cst_31 : f32 to vector<2x32xf32>
    %183 = arith.addf %182, %181 : vector<2x32xf32>
    %184 = arith.divf %182, %183 : vector<2x32xf32>
    %185 = vector.extract_strided_slice %172 {offsets = [0, 64], sizes = [2, 32], strides = [1, 1]} : vector<2x128xf32> to vector<2x32xf32>
    %186 = math.tanh %185 : vector<2x32xf32>
    %187 = vector.extract_strided_slice %172 {offsets = [0, 96], sizes = [2, 32], strides = [1, 1]} : vector<2x128xf32> to vector<2x32xf32>
    %188 = arith.negf %187 : vector<2x32xf32>
    %189 = math.exp %188 : vector<2x32xf32>
    %cst_32 = arith.constant 1.000000e+00 : f32
    %190 = vector.broadcast %cst_32 : f32 to vector<2x32xf32>
    %191 = arith.addf %190, %189 : vector<2x32xf32>
    %192 = arith.divf %190, %191 : vector<2x32xf32>
    %193 = arith.mulf %184, %131 : vector<2x32xf32>
    %194 = arith.mulf %178, %186 : vector<2x32xf32>
    %195 = arith.addf %193, %194 : vector<2x32xf32>
    %196 = math.tanh %195 : vector<2x32xf32>
    %197 = arith.mulf %192, %196 : vector<2x32xf32>
    %198 = tpu.concatenate %167, %197 in 1 : vector<2x32xf32>, vector<2x32xf32> -> vector<2x64xf32>
    %199 = arith.truncf %198 : vector<2x64xf32> to vector<2x64xbf16>
    %c0_33 = arith.constant 0 : index
    %c0_34 = arith.constant 0 : index
    %200 = vector.load %arg1[%c0_33, %c0_34] : memref<64x256xbf16, #tpu.memory_space<vmem>>, vector<64x256xbf16>
    %cst_35 = arith.constant dense<0.000000e+00> : vector<2x256xf32>
    %201 = tpu.matmul %199, %200, %cst_35 {dimension_numbers = #tpu.dot_dimension_numbers<[1], [0], [0], [1], [0, 0, 1, 1], [], []>} : vector<2x64xbf16>, vector<64x256xbf16>, vector<2x256xf32> -> vector<2x256xf32>
    %202 = vector.extract_strided_slice %1 {offsets = [3, 0], sizes = [1, 128], strides = [1, 1]} : vector<8x256xf32> to vector<1x128xf32>
    %203 = vector.extract_strided_slice %3 {offsets = [3, 0], sizes = [1, 128], strides = [1, 1]} : vector<8x256xf32> to vector<1x128xf32>
    %204 = tpu.concatenate %202, %203 in 0 : vector<1x128xf32>, vector<1x128xf32> -> vector<2x128xf32>
    %205 = vector.extract_strided_slice %201 {offsets = [0, 0], sizes = [2, 128], strides = [1, 1]} : vector<2x256xf32> to vector<2x128xf32>
    %206 = arith.addf %204, %205 : vector<2x128xf32>
    %207 = vector.extract_strided_slice %206 {offsets = [0, 0], sizes = [2, 32], strides = [1, 1]} : vector<2x128xf32> to vector<2x32xf32>
    %208 = arith.negf %207 : vector<2x32xf32>
    %209 = math.exp %208 : vector<2x32xf32>
    %cst_36 = arith.constant 1.000000e+00 : f32
    %210 = vector.broadcast %cst_36 : f32 to vector<2x32xf32>
    %211 = arith.addf %210, %209 : vector<2x32xf32>
    %212 = arith.divf %210, %211 : vector<2x32xf32>
    %213 = vector.extract_strided_slice %206 {offsets = [0, 32], sizes = [2, 32], strides = [1, 1]} : vector<2x128xf32> to vector<2x32xf32>
    %214 = arith.negf %213 : vector<2x32xf32>
    %215 = math.exp %214 : vector<2x32xf32>
    %cst_37 = arith.constant 1.000000e+00 : f32
    %216 = vector.broadcast %cst_37 : f32 to vector<2x32xf32>
    %217 = arith.addf %216, %215 : vector<2x32xf32>
    %218 = arith.divf %216, %217 : vector<2x32xf32>
    %219 = vector.extract_strided_slice %206 {offsets = [0, 64], sizes = [2, 32], strides = [1, 1]} : vector<2x128xf32> to vector<2x32xf32>
    %220 = math.tanh %219 : vector<2x32xf32>
    %221 = vector.extract_strided_slice %206 {offsets = [0, 96], sizes = [2, 32], strides = [1, 1]} : vector<2x128xf32> to vector<2x32xf32>
    %222 = arith.negf %221 : vector<2x32xf32>
    %223 = math.exp %222 : vector<2x32xf32>
    %cst_38 = arith.constant 1.000000e+00 : f32
    %224 = vector.broadcast %cst_38 : f32 to vector<2x32xf32>
    %225 = arith.addf %224, %223 : vector<2x32xf32>
    %226 = arith.divf %224, %225 : vector<2x32xf32>
    %227 = arith.mulf %218, %165 : vector<2x32xf32>
    %228 = arith.mulf %212, %220 : vector<2x32xf32>
    %229 = arith.addf %227, %228 : vector<2x32xf32>
    %230 = math.tanh %229 : vector<2x32xf32>
    %231 = arith.mulf %226, %230 : vector<2x32xf32>
    %232 = vector.extract_strided_slice %1 {offsets = [4, 128], sizes = [1, 128], strides = [1, 1]} : vector<8x256xf32> to vector<1x128xf32>
    %233 = vector.extract_strided_slice %3 {offsets = [4, 128], sizes = [1, 128], strides = [1, 1]} : vector<8x256xf32> to vector<1x128xf32>
    %234 = tpu.concatenate %232, %233 in 0 : vector<1x128xf32>, vector<1x128xf32> -> vector<2x128xf32>
    %235 = vector.extract_strided_slice %201 {offsets = [0, 128], sizes = [2, 128], strides = [1, 1]} : vector<2x256xf32> to vector<2x128xf32>
    %236 = arith.addf %234, %235 : vector<2x128xf32>
    %237 = vector.extract_strided_slice %236 {offsets = [0, 0], sizes = [2, 32], strides = [1, 1]} : vector<2x128xf32> to vector<2x32xf32>
    %238 = arith.negf %237 : vector<2x32xf32>
    %239 = math.exp %238 : vector<2x32xf32>
    %cst_39 = arith.constant 1.000000e+00 : f32
    %240 = vector.broadcast %cst_39 : f32 to vector<2x32xf32>
    %241 = arith.addf %240, %239 : vector<2x32xf32>
    %242 = arith.divf %240, %241 : vector<2x32xf32>
    %243 = vector.extract_strided_slice %236 {offsets = [0, 32], sizes = [2, 32], strides = [1, 1]} : vector<2x128xf32> to vector<2x32xf32>
    %244 = arith.negf %243 : vector<2x32xf32>
    %245 = math.exp %244 : vector<2x32xf32>
    %cst_40 = arith.constant 1.000000e+00 : f32
    %246 = vector.broadcast %cst_40 : f32 to vector<2x32xf32>
    %247 = arith.addf %246, %245 : vector<2x32xf32>
    %248 = arith.divf %246, %247 : vector<2x32xf32>
    %249 = vector.extract_strided_slice %236 {offsets = [0, 64], sizes = [2, 32], strides = [1, 1]} : vector<2x128xf32> to vector<2x32xf32>
    %250 = math.tanh %249 : vector<2x32xf32>
    %251 = vector.extract_strided_slice %236 {offsets = [0, 96], sizes = [2, 32], strides = [1, 1]} : vector<2x128xf32> to vector<2x32xf32>
    %252 = arith.negf %251 : vector<2x32xf32>
    %253 = math.exp %252 : vector<2x32xf32>
    %cst_41 = arith.constant 1.000000e+00 : f32
    %254 = vector.broadcast %cst_41 : f32 to vector<2x32xf32>
    %255 = arith.addf %254, %253 : vector<2x32xf32>
    %256 = arith.divf %254, %255 : vector<2x32xf32>
    %257 = arith.mulf %248, %195 : vector<2x32xf32>
    %258 = arith.mulf %242, %250 : vector<2x32xf32>
    %259 = arith.addf %257, %258 : vector<2x32xf32>
    %260 = math.tanh %259 : vector<2x32xf32>
    %261 = arith.mulf %256, %260 : vector<2x32xf32>
    %262 = tpu.concatenate %231, %261 in 1 : vector<2x32xf32>, vector<2x32xf32> -> vector<2x64xf32>
    %263 = arith.truncf %262 : vector<2x64xf32> to vector<2x64xbf16>
    %c0_42 = arith.constant 0 : index
    %c0_43 = arith.constant 0 : index
    %264 = vector.load %arg1[%c0_42, %c0_43] : memref<64x256xbf16, #tpu.memory_space<vmem>>, vector<64x256xbf16>
    %cst_44 = arith.constant dense<0.000000e+00> : vector<2x256xf32>
    %265 = tpu.matmul %263, %264, %cst_44 {dimension_numbers = #tpu.dot_dimension_numbers<[1], [0], [0], [1], [0, 0, 1, 1], [], []>} : vector<2x64xbf16>, vector<64x256xbf16>, vector<2x256xf32> -> vector<2x256xf32>
    %266 = vector.extract_strided_slice %1 {offsets = [4, 0], sizes = [1, 128], strides = [1, 1]} : vector<8x256xf32> to vector<1x128xf32>
    %267 = vector.extract_strided_slice %3 {offsets = [4, 0], sizes = [1, 128], strides = [1, 1]} : vector<8x256xf32> to vector<1x128xf32>
    %268 = tpu.concatenate %266, %267 in 0 : vector<1x128xf32>, vector<1x128xf32> -> vector<2x128xf32>
    %269 = vector.extract_strided_slice %265 {offsets = [0, 0], sizes = [2, 128], strides = [1, 1]} : vector<2x256xf32> to vector<2x128xf32>
    %270 = arith.addf %268, %269 : vector<2x128xf32>
    %271 = vector.extract_strided_slice %270 {offsets = [0, 0], sizes = [2, 32], strides = [1, 1]} : vector<2x128xf32> to vector<2x32xf32>
    %272 = arith.negf %271 : vector<2x32xf32>
    %273 = math.exp %272 : vector<2x32xf32>
    %cst_45 = arith.constant 1.000000e+00 : f32
    %274 = vector.broadcast %cst_45 : f32 to vector<2x32xf32>
    %275 = arith.addf %274, %273 : vector<2x32xf32>
    %276 = arith.divf %274, %275 : vector<2x32xf32>
    %277 = vector.extract_strided_slice %270 {offsets = [0, 32], sizes = [2, 32], strides = [1, 1]} : vector<2x128xf32> to vector<2x32xf32>
    %278 = arith.negf %277 : vector<2x32xf32>
    %279 = math.exp %278 : vector<2x32xf32>
    %cst_46 = arith.constant 1.000000e+00 : f32
    %280 = vector.broadcast %cst_46 : f32 to vector<2x32xf32>
    %281 = arith.addf %280, %279 : vector<2x32xf32>
    %282 = arith.divf %280, %281 : vector<2x32xf32>
    %283 = vector.extract_strided_slice %270 {offsets = [0, 64], sizes = [2, 32], strides = [1, 1]} : vector<2x128xf32> to vector<2x32xf32>
    %284 = math.tanh %283 : vector<2x32xf32>
    %285 = vector.extract_strided_slice %270 {offsets = [0, 96], sizes = [2, 32], strides = [1, 1]} : vector<2x128xf32> to vector<2x32xf32>
    %286 = arith.negf %285 : vector<2x32xf32>
    %287 = math.exp %286 : vector<2x32xf32>
    %cst_47 = arith.constant 1.000000e+00 : f32
    %288 = vector.broadcast %cst_47 : f32 to vector<2x32xf32>
    %289 = arith.addf %288, %287 : vector<2x32xf32>
    %290 = arith.divf %288, %289 : vector<2x32xf32>
    %291 = arith.mulf %282, %229 : vector<2x32xf32>
    %292 = arith.mulf %276, %284 : vector<2x32xf32>
    %293 = arith.addf %291, %292 : vector<2x32xf32>
    %294 = math.tanh %293 : vector<2x32xf32>
    %295 = arith.mulf %290, %294 : vector<2x32xf32>
    %296 = vector.extract_strided_slice %1 {offsets = [3, 128], sizes = [1, 128], strides = [1, 1]} : vector<8x256xf32> to vector<1x128xf32>
    %297 = vector.extract_strided_slice %3 {offsets = [3, 128], sizes = [1, 128], strides = [1, 1]} : vector<8x256xf32> to vector<1x128xf32>
    %298 = tpu.concatenate %296, %297 in 0 : vector<1x128xf32>, vector<1x128xf32> -> vector<2x128xf32>
    %299 = vector.extract_strided_slice %265 {offsets = [0, 128], sizes = [2, 128], strides = [1, 1]} : vector<2x256xf32> to vector<2x128xf32>
    %300 = arith.addf %298, %299 : vector<2x128xf32>
    %301 = vector.extract_strided_slice %300 {offsets = [0, 0], sizes = [2, 32], strides = [1, 1]} : vector<2x128xf32> to vector<2x32xf32>
    %302 = arith.negf %301 : vector<2x32xf32>
    %303 = math.exp %302 : vector<2x32xf32>
    %cst_48 = arith.constant 1.000000e+00 : f32
    %304 = vector.broadcast %cst_48 : f32 to vector<2x32xf32>
    %305 = arith.addf %304, %303 : vector<2x32xf32>
    %306 = arith.divf %304, %305 : vector<2x32xf32>
    %307 = vector.extract_strided_slice %300 {offsets = [0, 32], sizes = [2, 32], strides = [1, 1]} : vector<2x128xf32> to vector<2x32xf32>
    %308 = arith.negf %307 : vector<2x32xf32>
    %309 = math.exp %308 : vector<2x32xf32>
    %cst_49 = arith.constant 1.000000e+00 : f32
    %310 = vector.broadcast %cst_49 : f32 to vector<2x32xf32>
    %311 = arith.addf %310, %309 : vector<2x32xf32>
    %312 = arith.divf %310, %311 : vector<2x32xf32>
    %313 = vector.extract_strided_slice %300 {offsets = [0, 64], sizes = [2, 32], strides = [1, 1]} : vector<2x128xf32> to vector<2x32xf32>
    %314 = math.tanh %313 : vector<2x32xf32>
    %315 = vector.extract_strided_slice %300 {offsets = [0, 96], sizes = [2, 32], strides = [1, 1]} : vector<2x128xf32> to vector<2x32xf32>
    %316 = arith.negf %315 : vector<2x32xf32>
    %317 = math.exp %316 : vector<2x32xf32>
    %cst_50 = arith.constant 1.000000e+00 : f32
    %318 = vector.broadcast %cst_50 : f32 to vector<2x32xf32>
    %319 = arith.addf %318, %317 : vector<2x32xf32>
    %320 = arith.divf %318, %319 : vector<2x32xf32>
    %321 = arith.mulf %312, %259 : vector<2x32xf32>
    %322 = arith.mulf %306, %314 : vector<2x32xf32>
    %323 = arith.addf %321, %322 : vector<2x32xf32>
    %324 = math.tanh %323 : vector<2x32xf32>
    %325 = arith.mulf %320, %324 : vector<2x32xf32>
    %326 = tpu.concatenate %295, %325 in 1 : vector<2x32xf32>, vector<2x32xf32> -> vector<2x64xf32>
    %327 = arith.truncf %326 : vector<2x64xf32> to vector<2x64xbf16>
    %c0_51 = arith.constant 0 : index
    %c0_52 = arith.constant 0 : index
    %328 = vector.load %arg1[%c0_51, %c0_52] : memref<64x256xbf16, #tpu.memory_space<vmem>>, vector<64x256xbf16>
    %cst_53 = arith.constant dense<0.000000e+00> : vector<2x256xf32>
    %329 = tpu.matmul %327, %328, %cst_53 {dimension_numbers = #tpu.dot_dimension_numbers<[1], [0], [0], [1], [0, 0, 1, 1], [], []>} : vector<2x64xbf16>, vector<64x256xbf16>, vector<2x256xf32> -> vector<2x256xf32>
    %330 = vector.extract_strided_slice %1 {offsets = [5, 0], sizes = [1, 128], strides = [1, 1]} : vector<8x256xf32> to vector<1x128xf32>
    %331 = vector.extract_strided_slice %3 {offsets = [5, 0], sizes = [1, 128], strides = [1, 1]} : vector<8x256xf32> to vector<1x128xf32>
    %332 = tpu.concatenate %330, %331 in 0 : vector<1x128xf32>, vector<1x128xf32> -> vector<2x128xf32>
    %333 = vector.extract_strided_slice %329 {offsets = [0, 0], sizes = [2, 128], strides = [1, 1]} : vector<2x256xf32> to vector<2x128xf32>
    %334 = arith.addf %332, %333 : vector<2x128xf32>
    %335 = vector.extract_strided_slice %334 {offsets = [0, 0], sizes = [2, 32], strides = [1, 1]} : vector<2x128xf32> to vector<2x32xf32>
    %336 = arith.negf %335 : vector<2x32xf32>
    %337 = math.exp %336 : vector<2x32xf32>
    %cst_54 = arith.constant 1.000000e+00 : f32
    %338 = vector.broadcast %cst_54 : f32 to vector<2x32xf32>
    %339 = arith.addf %338, %337 : vector<2x32xf32>
    %340 = arith.divf %338, %339 : vector<2x32xf32>
    %341 = vector.extract_strided_slice %334 {offsets = [0, 32], sizes = [2, 32], strides = [1, 1]} : vector<2x128xf32> to vector<2x32xf32>
    %342 = arith.negf %341 : vector<2x32xf32>
    %343 = math.exp %342 : vector<2x32xf32>
    %cst_55 = arith.constant 1.000000e+00 : f32
    %344 = vector.broadcast %cst_55 : f32 to vector<2x32xf32>
    %345 = arith.addf %344, %343 : vector<2x32xf32>
    %346 = arith.divf %344, %345 : vector<2x32xf32>
    %347 = vector.extract_strided_slice %334 {offsets = [0, 64], sizes = [2, 32], strides = [1, 1]} : vector<2x128xf32> to vector<2x32xf32>
    %348 = math.tanh %347 : vector<2x32xf32>
    %349 = vector.extract_strided_slice %334 {offsets = [0, 96], sizes = [2, 32], strides = [1, 1]} : vector<2x128xf32> to vector<2x32xf32>
    %350 = arith.negf %349 : vector<2x32xf32>
    %351 = math.exp %350 : vector<2x32xf32>
    %cst_56 = arith.constant 1.000000e+00 : f32
    %352 = vector.broadcast %cst_56 : f32 to vector<2x32xf32>
    %353 = arith.addf %352, %351 : vector<2x32xf32>
    %354 = arith.divf %352, %353 : vector<2x32xf32>
    %355 = arith.mulf %346, %293 : vector<2x32xf32>
    %356 = arith.mulf %340, %348 : vector<2x32xf32>
    %357 = arith.addf %355, %356 : vector<2x32xf32>
    %358 = math.tanh %357 : vector<2x32xf32>
    %359 = arith.mulf %354, %358 : vector<2x32xf32>
    %360 = vector.extract_strided_slice %1 {offsets = [2, 128], sizes = [1, 128], strides = [1, 1]} : vector<8x256xf32> to vector<1x128xf32>
    %361 = vector.extract_strided_slice %3 {offsets = [2, 128], sizes = [1, 128], strides = [1, 1]} : vector<8x256xf32> to vector<1x128xf32>
    %362 = tpu.concatenate %360, %361 in 0 : vector<1x128xf32>, vector<1x128xf32> -> vector<2x128xf32>
    %363 = vector.extract_strided_slice %329 {offsets = [0, 128], sizes = [2, 128], strides = [1, 1]} : vector<2x256xf32> to vector<2x128xf32>
    %364 = arith.addf %362, %363 : vector<2x128xf32>
    %365 = vector.extract_strided_slice %364 {offsets = [0, 0], sizes = [2, 32], strides = [1, 1]} : vector<2x128xf32> to vector<2x32xf32>
    %366 = arith.negf %365 : vector<2x32xf32>
    %367 = math.exp %366 : vector<2x32xf32>
    %cst_57 = arith.constant 1.000000e+00 : f32
    %368 = vector.broadcast %cst_57 : f32 to vector<2x32xf32>
    %369 = arith.addf %368, %367 : vector<2x32xf32>
    %370 = arith.divf %368, %369 : vector<2x32xf32>
    %371 = vector.extract_strided_slice %364 {offsets = [0, 32], sizes = [2, 32], strides = [1, 1]} : vector<2x128xf32> to vector<2x32xf32>
    %372 = arith.negf %371 : vector<2x32xf32>
    %373 = math.exp %372 : vector<2x32xf32>
    %cst_58 = arith.constant 1.000000e+00 : f32
    %374 = vector.broadcast %cst_58 : f32 to vector<2x32xf32>
    %375 = arith.addf %374, %373 : vector<2x32xf32>
    %376 = arith.divf %374, %375 : vector<2x32xf32>
    %377 = vector.extract_strided_slice %364 {offsets = [0, 64], sizes = [2, 32], strides = [1, 1]} : vector<2x128xf32> to vector<2x32xf32>
    %378 = math.tanh %377 : vector<2x32xf32>
    %379 = vector.extract_strided_slice %364 {offsets = [0, 96], sizes = [2, 32], strides = [1, 1]} : vector<2x128xf32> to vector<2x32xf32>
    %380 = arith.negf %379 : vector<2x32xf32>
    %381 = math.exp %380 : vector<2x32xf32>
    %cst_59 = arith.constant 1.000000e+00 : f32
    %382 = vector.broadcast %cst_59 : f32 to vector<2x32xf32>
    %383 = arith.addf %382, %381 : vector<2x32xf32>
    %384 = arith.divf %382, %383 : vector<2x32xf32>
    %385 = arith.mulf %376, %323 : vector<2x32xf32>
    %386 = arith.mulf %370, %378 : vector<2x32xf32>
    %387 = arith.addf %385, %386 : vector<2x32xf32>
    %388 = math.tanh %387 : vector<2x32xf32>
    %389 = arith.mulf %384, %388 : vector<2x32xf32>
    %390 = tpu.concatenate %359, %389 in 1 : vector<2x32xf32>, vector<2x32xf32> -> vector<2x64xf32>
    %391 = arith.truncf %390 : vector<2x64xf32> to vector<2x64xbf16>
    %c0_60 = arith.constant 0 : index
    %c0_61 = arith.constant 0 : index
    %392 = vector.load %arg1[%c0_60, %c0_61] : memref<64x256xbf16, #tpu.memory_space<vmem>>, vector<64x256xbf16>
    %cst_62 = arith.constant dense<0.000000e+00> : vector<2x256xf32>
    %393 = tpu.matmul %391, %392, %cst_62 {dimension_numbers = #tpu.dot_dimension_numbers<[1], [0], [0], [1], [0, 0, 1, 1], [], []>} : vector<2x64xbf16>, vector<64x256xbf16>, vector<2x256xf32> -> vector<2x256xf32>
    %394 = vector.extract_strided_slice %1 {offsets = [6, 0], sizes = [1, 128], strides = [1, 1]} : vector<8x256xf32> to vector<1x128xf32>
    %395 = vector.extract_strided_slice %3 {offsets = [6, 0], sizes = [1, 128], strides = [1, 1]} : vector<8x256xf32> to vector<1x128xf32>
    %396 = tpu.concatenate %394, %395 in 0 : vector<1x128xf32>, vector<1x128xf32> -> vector<2x128xf32>
    %397 = vector.extract_strided_slice %393 {offsets = [0, 0], sizes = [2, 128], strides = [1, 1]} : vector<2x256xf32> to vector<2x128xf32>
    %398 = arith.addf %396, %397 : vector<2x128xf32>
    %399 = vector.extract_strided_slice %398 {offsets = [0, 0], sizes = [2, 32], strides = [1, 1]} : vector<2x128xf32> to vector<2x32xf32>
    %400 = arith.negf %399 : vector<2x32xf32>
    %401 = math.exp %400 : vector<2x32xf32>
    %cst_63 = arith.constant 1.000000e+00 : f32
    %402 = vector.broadcast %cst_63 : f32 to vector<2x32xf32>
    %403 = arith.addf %402, %401 : vector<2x32xf32>
    %404 = arith.divf %402, %403 : vector<2x32xf32>
    %405 = vector.extract_strided_slice %398 {offsets = [0, 32], sizes = [2, 32], strides = [1, 1]} : vector<2x128xf32> to vector<2x32xf32>
    %406 = arith.negf %405 : vector<2x32xf32>
    %407 = math.exp %406 : vector<2x32xf32>
    %cst_64 = arith.constant 1.000000e+00 : f32
    %408 = vector.broadcast %cst_64 : f32 to vector<2x32xf32>
    %409 = arith.addf %408, %407 : vector<2x32xf32>
    %410 = arith.divf %408, %409 : vector<2x32xf32>
    %411 = vector.extract_strided_slice %398 {offsets = [0, 64], sizes = [2, 32], strides = [1, 1]} : vector<2x128xf32> to vector<2x32xf32>
    %412 = math.tanh %411 : vector<2x32xf32>
    %413 = vector.extract_strided_slice %398 {offsets = [0, 96], sizes = [2, 32], strides = [1, 1]} : vector<2x128xf32> to vector<2x32xf32>
    %414 = arith.negf %413 : vector<2x32xf32>
    %415 = math.exp %414 : vector<2x32xf32>
    %cst_65 = arith.constant 1.000000e+00 : f32
    %416 = vector.broadcast %cst_65 : f32 to vector<2x32xf32>
    %417 = arith.addf %416, %415 : vector<2x32xf32>
    %418 = arith.divf %416, %417 : vector<2x32xf32>
    %419 = arith.mulf %410, %357 : vector<2x32xf32>
    %420 = arith.mulf %404, %412 : vector<2x32xf32>
    %421 = arith.addf %419, %420 : vector<2x32xf32>
    %422 = math.tanh %421 : vector<2x32xf32>
    %423 = arith.mulf %418, %422 : vector<2x32xf32>
    %424 = vector.extract_strided_slice %1 {offsets = [1, 128], sizes = [1, 128], strides = [1, 1]} : vector<8x256xf32> to vector<1x128xf32>
    %425 = vector.extract_strided_slice %3 {offsets = [1, 128], sizes = [1, 128], strides = [1, 1]} : vector<8x256xf32> to vector<1x128xf32>
    %426 = tpu.concatenate %424, %425 in 0 : vector<1x128xf32>, vector<1x128xf32> -> vector<2x128xf32>
    %427 = vector.extract_strided_slice %393 {offsets = [0, 128], sizes = [2, 128], strides = [1, 1]} : vector<2x256xf32> to vector<2x128xf32>
    %428 = arith.addf %426, %427 : vector<2x128xf32>
    %429 = vector.extract_strided_slice %428 {offsets = [0, 0], sizes = [2, 32], strides = [1, 1]} : vector<2x128xf32> to vector<2x32xf32>
    %430 = arith.negf %429 : vector<2x32xf32>
    %431 = math.exp %430 : vector<2x32xf32>
    %cst_66 = arith.constant 1.000000e+00 : f32
    %432 = vector.broadcast %cst_66 : f32 to vector<2x32xf32>
    %433 = arith.addf %432, %431 : vector<2x32xf32>
    %434 = arith.divf %432, %433 : vector<2x32xf32>
    %435 = vector.extract_strided_slice %428 {offsets = [0, 32], sizes = [2, 32], strides = [1, 1]} : vector<2x128xf32> to vector<2x32xf32>
    %436 = arith.negf %435 : vector<2x32xf32>
    %437 = math.exp %436 : vector<2x32xf32>
    %cst_67 = arith.constant 1.000000e+00 : f32
    %438 = vector.broadcast %cst_67 : f32 to vector<2x32xf32>
    %439 = arith.addf %438, %437 : vector<2x32xf32>
    %440 = arith.divf %438, %439 : vector<2x32xf32>
    %441 = vector.extract_strided_slice %428 {offsets = [0, 64], sizes = [2, 32], strides = [1, 1]} : vector<2x128xf32> to vector<2x32xf32>
    %442 = math.tanh %441 : vector<2x32xf32>
    %443 = vector.extract_strided_slice %428 {offsets = [0, 96], sizes = [2, 32], strides = [1, 1]} : vector<2x128xf32> to vector<2x32xf32>
    %444 = arith.negf %443 : vector<2x32xf32>
    %445 = math.exp %444 : vector<2x32xf32>
    %cst_68 = arith.constant 1.000000e+00 : f32
    %446 = vector.broadcast %cst_68 : f32 to vector<2x32xf32>
    %447 = arith.addf %446, %445 : vector<2x32xf32>
    %448 = arith.divf %446, %447 : vector<2x32xf32>
    %449 = arith.mulf %440, %387 : vector<2x32xf32>
    %450 = arith.mulf %434, %442 : vector<2x32xf32>
    %451 = arith.addf %449, %450 : vector<2x32xf32>
    %452 = math.tanh %451 : vector<2x32xf32>
    %453 = arith.mulf %448, %452 : vector<2x32xf32>
    %454 = tpu.concatenate %423, %453 in 1 : vector<2x32xf32>, vector<2x32xf32> -> vector<2x64xf32>
    %455 = arith.truncf %454 : vector<2x64xf32> to vector<2x64xbf16>
    %c0_69 = arith.constant 0 : index
    %c0_70 = arith.constant 0 : index
    %456 = vector.load %arg1[%c0_69, %c0_70] : memref<64x256xbf16, #tpu.memory_space<vmem>>, vector<64x256xbf16>
    %cst_71 = arith.constant dense<0.000000e+00> : vector<2x256xf32>
    %457 = tpu.matmul %455, %456, %cst_71 {dimension_numbers = #tpu.dot_dimension_numbers<[1], [0], [0], [1], [0, 0, 1, 1], [], []>} : vector<2x64xbf16>, vector<64x256xbf16>, vector<2x256xf32> -> vector<2x256xf32>
    %458 = vector.extract_strided_slice %1 {offsets = [7, 0], sizes = [1, 128], strides = [1, 1]} : vector<8x256xf32> to vector<1x128xf32>
    %459 = vector.extract_strided_slice %3 {offsets = [7, 0], sizes = [1, 128], strides = [1, 1]} : vector<8x256xf32> to vector<1x128xf32>
    %460 = tpu.concatenate %458, %459 in 0 : vector<1x128xf32>, vector<1x128xf32> -> vector<2x128xf32>
    %461 = vector.extract_strided_slice %457 {offsets = [0, 0], sizes = [2, 128], strides = [1, 1]} : vector<2x256xf32> to vector<2x128xf32>
    %462 = arith.addf %460, %461 : vector<2x128xf32>
    %463 = vector.extract_strided_slice %462 {offsets = [0, 0], sizes = [2, 32], strides = [1, 1]} : vector<2x128xf32> to vector<2x32xf32>
    %464 = arith.negf %463 : vector<2x32xf32>
    %465 = math.exp %464 : vector<2x32xf32>
    %cst_72 = arith.constant 1.000000e+00 : f32
    %466 = vector.broadcast %cst_72 : f32 to vector<2x32xf32>
    %467 = arith.addf %466, %465 : vector<2x32xf32>
    %468 = arith.divf %466, %467 : vector<2x32xf32>
    %469 = vector.extract_strided_slice %462 {offsets = [0, 32], sizes = [2, 32], strides = [1, 1]} : vector<2x128xf32> to vector<2x32xf32>
    %470 = arith.negf %469 : vector<2x32xf32>
    %471 = math.exp %470 : vector<2x32xf32>
    %cst_73 = arith.constant 1.000000e+00 : f32
    %472 = vector.broadcast %cst_73 : f32 to vector<2x32xf32>
    %473 = arith.addf %472, %471 : vector<2x32xf32>
    %474 = arith.divf %472, %473 : vector<2x32xf32>
    %475 = vector.extract_strided_slice %462 {offsets = [0, 64], sizes = [2, 32], strides = [1, 1]} : vector<2x128xf32> to vector<2x32xf32>
    %476 = math.tanh %475 : vector<2x32xf32>
    %477 = vector.extract_strided_slice %462 {offsets = [0, 96], sizes = [2, 32], strides = [1, 1]} : vector<2x128xf32> to vector<2x32xf32>
    %478 = arith.negf %477 : vector<2x32xf32>
    %479 = math.exp %478 : vector<2x32xf32>
    %cst_74 = arith.constant 1.000000e+00 : f32
    %480 = vector.broadcast %cst_74 : f32 to vector<2x32xf32>
    %481 = arith.addf %480, %479 : vector<2x32xf32>
    %482 = arith.divf %480, %481 : vector<2x32xf32>
    %483 = arith.mulf %474, %421 : vector<2x32xf32>
    %484 = arith.mulf %468, %476 : vector<2x32xf32>
    %485 = arith.addf %483, %484 : vector<2x32xf32>
    %486 = math.tanh %485 : vector<2x32xf32>
    %487 = arith.mulf %482, %486 : vector<2x32xf32>
    %488 = vector.extract_strided_slice %1 {offsets = [0, 128], sizes = [1, 128], strides = [1, 1]} : vector<8x256xf32> to vector<1x128xf32>
    %489 = vector.extract_strided_slice %3 {offsets = [0, 128], sizes = [1, 128], strides = [1, 1]} : vector<8x256xf32> to vector<1x128xf32>
    %490 = tpu.concatenate %488, %489 in 0 : vector<1x128xf32>, vector<1x128xf32> -> vector<2x128xf32>
    %491 = vector.extract_strided_slice %457 {offsets = [0, 128], sizes = [2, 128], strides = [1, 1]} : vector<2x256xf32> to vector<2x128xf32>
    %492 = arith.addf %490, %491 : vector<2x128xf32>
    %493 = vector.extract_strided_slice %492 {offsets = [0, 0], sizes = [2, 32], strides = [1, 1]} : vector<2x128xf32> to vector<2x32xf32>
    %494 = arith.negf %493 : vector<2x32xf32>
    %495 = math.exp %494 : vector<2x32xf32>
    %cst_75 = arith.constant 1.000000e+00 : f32
    %496 = vector.broadcast %cst_75 : f32 to vector<2x32xf32>
    %497 = arith.addf %496, %495 : vector<2x32xf32>
    %498 = arith.divf %496, %497 : vector<2x32xf32>
    %499 = vector.extract_strided_slice %492 {offsets = [0, 32], sizes = [2, 32], strides = [1, 1]} : vector<2x128xf32> to vector<2x32xf32>
    %500 = arith.negf %499 : vector<2x32xf32>
    %501 = math.exp %500 : vector<2x32xf32>
    %cst_76 = arith.constant 1.000000e+00 : f32
    %502 = vector.broadcast %cst_76 : f32 to vector<2x32xf32>
    %503 = arith.addf %502, %501 : vector<2x32xf32>
    %504 = arith.divf %502, %503 : vector<2x32xf32>
    %505 = vector.extract_strided_slice %492 {offsets = [0, 64], sizes = [2, 32], strides = [1, 1]} : vector<2x128xf32> to vector<2x32xf32>
    %506 = math.tanh %505 : vector<2x32xf32>
    %507 = vector.extract_strided_slice %492 {offsets = [0, 96], sizes = [2, 32], strides = [1, 1]} : vector<2x128xf32> to vector<2x32xf32>
    %508 = arith.negf %507 : vector<2x32xf32>
    %509 = math.exp %508 : vector<2x32xf32>
    %cst_77 = arith.constant 1.000000e+00 : f32
    %510 = vector.broadcast %cst_77 : f32 to vector<2x32xf32>
    %511 = arith.addf %510, %509 : vector<2x32xf32>
    %512 = arith.divf %510, %511 : vector<2x32xf32>
    %513 = arith.mulf %504, %451 : vector<2x32xf32>
    %514 = arith.mulf %498, %506 : vector<2x32xf32>
    %515 = arith.addf %513, %514 : vector<2x32xf32>
    %516 = math.tanh %515 : vector<2x32xf32>
    %517 = arith.mulf %512, %516 : vector<2x32xf32>
    %518 = tpu.concatenate %39, %517 in 1 : vector<2x32xf32>, vector<2x32xf32> -> vector<2x64xf32>
    %519 = tpu.concatenate %103, %453 in 1 : vector<2x32xf32>, vector<2x32xf32> -> vector<2x64xf32>
    %520 = tpu.concatenate %167, %389 in 1 : vector<2x32xf32>, vector<2x32xf32> -> vector<2x64xf32>
    %521 = tpu.concatenate %231, %325 in 1 : vector<2x32xf32>, vector<2x32xf32> -> vector<2x64xf32>
    %522 = tpu.concatenate %295, %261 in 1 : vector<2x32xf32>, vector<2x32xf32> -> vector<2x64xf32>
    %523 = tpu.concatenate %359, %197 in 1 : vector<2x32xf32>, vector<2x32xf32> -> vector<2x64xf32>
    %524 = tpu.concatenate %423, %133 in 1 : vector<2x32xf32>, vector<2x32xf32> -> vector<2x64xf32>
    %525 = tpu.concatenate %487, %69 in 1 : vector<2x32xf32>, vector<2x32xf32> -> vector<2x64xf32>
    %526 = tpu.concatenate %518, %519, %520, %521, %522, %523, %524, %525 in 0 : vector<2x64xf32>, vector<2x64xf32>, vector<2x64xf32>, vector<2x64xf32>, vector<2x64xf32>, vector<2x64xf32>, vector<2x64xf32>, vector<2x64xf32> -> vector<16x64xf32>
    %527 = arith.truncf %526 : vector<16x64xf32> to vector<16x64xbf16>
    %c0_78 = arith.constant 0 : index
    %c0_79 = arith.constant 0 : index
    %528 = vector.load %arg2[%c0_78, %c0_79] : memref<64x256xbf16, #tpu.memory_space<vmem>>, vector<64x256xbf16>
    %cst_80 = arith.constant dense<0.000000e+00> : vector<16x256xf32>
    %529 = tpu.matmul %527, %528, %cst_80 {dimension_numbers = #tpu.dot_dimension_numbers<[1], [0], [0], [1], [0, 0, 1, 1], [], []>} : vector<16x64xbf16>, vector<64x256xbf16>, vector<16x256xf32> -> vector<16x256xf32>
    %c0_81 = arith.constant 0 : index
    %c0_82 = arith.constant 0 : index
    %530 = vector.load %arg3[%c0_81, %c0_82] : memref<1x256xf32, #tpu.memory_space<vmem>>, vector<1x256xf32>
    %531 = vector.broadcast %530 : vector<1x256xf32> to vector<16x256xf32>
    %532 = arith.addf %529, %531 : vector<16x256xf32>
    %cst_83 = arith.constant 0.000000e+00 : f32
    %533 = vector.broadcast %cst_83 : f32 to vector<2x64xf32>
    %cst_84 = arith.constant 0.000000e+00 : f32
    %534 = vector.broadcast %cst_84 : f32 to vector<2x32xf32>
    %cst_85 = arith.constant 0.000000e+00 : f32
    %535 = vector.broadcast %cst_85 : f32 to vector<2x32xf32>
    %536 = arith.truncf %533 : vector<2x64xf32> to vector<2x64xbf16>
    %c0_86 = arith.constant 0 : index
    %c0_87 = arith.constant 0 : index
    %537 = vector.load %arg4[%c0_86, %c0_87] : memref<64x256xbf16, #tpu.memory_space<vmem>>, vector<64x256xbf16>
    %cst_88 = arith.constant dense<0.000000e+00> : vector<2x256xf32>
    %538 = tpu.matmul %536, %537, %cst_88 {dimension_numbers = #tpu.dot_dimension_numbers<[1], [0], [0], [1], [0, 0, 1, 1], [], []>} : vector<2x64xbf16>, vector<64x256xbf16>, vector<2x256xf32> -> vector<2x256xf32>
    %539 = vector.extract_strided_slice %532 {offsets = [0, 0], sizes = [2, 128], strides = [1, 1]} : vector<16x256xf32> to vector<2x128xf32>
    %540 = vector.extract_strided_slice %538 {offsets = [0, 0], sizes = [2, 128], strides = [1, 1]} : vector<2x256xf32> to vector<2x128xf32>
    %541 = arith.addf %539, %540 : vector<2x128xf32>
    %542 = vector.extract_strided_slice %532 {offsets = [14, 128], sizes = [2, 128], strides = [1, 1]} : vector<16x256xf32> to vector<2x128xf32>
    %543 = vector.extract_strided_slice %538 {offsets = [0, 128], sizes = [2, 128], strides = [1, 1]} : vector<2x256xf32> to vector<2x128xf32>
    %544 = arith.addf %542, %543 : vector<2x128xf32>
    %545 = vector.extract_strided_slice %541 {offsets = [0, 0], sizes = [2, 32], strides = [1, 1]} : vector<2x128xf32> to vector<2x32xf32>
    %546 = arith.negf %545 : vector<2x32xf32>
    %547 = math.exp %546 : vector<2x32xf32>
    %cst_89 = arith.constant 1.000000e+00 : f32
    %548 = vector.broadcast %cst_89 : f32 to vector<2x32xf32>
    %549 = arith.addf %548, %547 : vector<2x32xf32>
    %550 = arith.divf %548, %549 : vector<2x32xf32>
    %551 = vector.extract_strided_slice %541 {offsets = [0, 32], sizes = [2, 32], strides = [1, 1]} : vector<2x128xf32> to vector<2x32xf32>
    %552 = arith.negf %551 : vector<2x32xf32>
    %553 = math.exp %552 : vector<2x32xf32>
    %cst_90 = arith.constant 1.000000e+00 : f32
    %554 = vector.broadcast %cst_90 : f32 to vector<2x32xf32>
    %555 = arith.addf %554, %553 : vector<2x32xf32>
    %556 = arith.divf %554, %555 : vector<2x32xf32>
    %557 = vector.extract_strided_slice %541 {offsets = [0, 64], sizes = [2, 32], strides = [1, 1]} : vector<2x128xf32> to vector<2x32xf32>
    %558 = math.tanh %557 : vector<2x32xf32>
    %559 = vector.extract_strided_slice %541 {offsets = [0, 96], sizes = [2, 32], strides = [1, 1]} : vector<2x128xf32> to vector<2x32xf32>
    %560 = arith.negf %559 : vector<2x32xf32>
    %561 = math.exp %560 : vector<2x32xf32>
    %cst_91 = arith.constant 1.000000e+00 : f32
    %562 = vector.broadcast %cst_91 : f32 to vector<2x32xf32>
    %563 = arith.addf %562, %561 : vector<2x32xf32>
    %564 = arith.divf %562, %563 : vector<2x32xf32>
    %565 = arith.mulf %556, %534 : vector<2x32xf32>
    %566 = arith.mulf %550, %558 : vector<2x32xf32>
    %567 = arith.addf %565, %566 : vector<2x32xf32>
    %568 = math.tanh %567 : vector<2x32xf32>
    %569 = arith.mulf %564, %568 : vector<2x32xf32>
    %570 = vector.extract_strided_slice %544 {offsets = [0, 0], sizes = [2, 32], strides = [1, 1]} : vector<2x128xf32> to vector<2x32xf32>
    %571 = arith.negf %570 : vector<2x32xf32>
    %572 = math.exp %571 : vector<2x32xf32>
    %cst_92 = arith.constant 1.000000e+00 : f32
    %573 = vector.broadcast %cst_92 : f32 to vector<2x32xf32>
    %574 = arith.addf %573, %572 : vector<2x32xf32>
    %575 = arith.divf %573, %574 : vector<2x32xf32>
    %576 = vector.extract_strided_slice %544 {offsets = [0, 32], sizes = [2, 32], strides = [1, 1]} : vector<2x128xf32> to vector<2x32xf32>
    %577 = arith.negf %576 : vector<2x32xf32>
    %578 = math.exp %577 : vector<2x32xf32>
    %cst_93 = arith.constant 1.000000e+00 : f32
    %579 = vector.broadcast %cst_93 : f32 to vector<2x32xf32>
    %580 = arith.addf %579, %578 : vector<2x32xf32>
    %581 = arith.divf %579, %580 : vector<2x32xf32>
    %582 = vector.extract_strided_slice %544 {offsets = [0, 64], sizes = [2, 32], strides = [1, 1]} : vector<2x128xf32> to vector<2x32xf32>
    %583 = math.tanh %582 : vector<2x32xf32>
    %584 = vector.extract_strided_slice %544 {offsets = [0, 96], sizes = [2, 32], strides = [1, 1]} : vector<2x128xf32> to vector<2x32xf32>
    %585 = arith.negf %584 : vector<2x32xf32>
    %586 = math.exp %585 : vector<2x32xf32>
    %cst_94 = arith.constant 1.000000e+00 : f32
    %587 = vector.broadcast %cst_94 : f32 to vector<2x32xf32>
    %588 = arith.addf %587, %586 : vector<2x32xf32>
    %589 = arith.divf %587, %588 : vector<2x32xf32>
    %590 = arith.mulf %581, %535 : vector<2x32xf32>
    %591 = arith.mulf %575, %583 : vector<2x32xf32>
    %592 = arith.addf %590, %591 : vector<2x32xf32>
    %593 = math.tanh %592 : vector<2x32xf32>
    %594 = arith.mulf %589, %593 : vector<2x32xf32>
    %595 = tpu.concatenate %569, %594 in 1 : vector<2x32xf32>, vector<2x32xf32> -> vector<2x64xf32>
    %596 = arith.truncf %595 : vector<2x64xf32> to vector<2x64xbf16>
    %c0_95 = arith.constant 0 : index
    %c0_96 = arith.constant 0 : index
    %597 = vector.load %arg4[%c0_95, %c0_96] : memref<64x256xbf16, #tpu.memory_space<vmem>>, vector<64x256xbf16>
    %cst_97 = arith.constant dense<0.000000e+00> : vector<2x256xf32>
    %598 = tpu.matmul %596, %597, %cst_97 {dimension_numbers = #tpu.dot_dimension_numbers<[1], [0], [0], [1], [0, 0, 1, 1], [], []>} : vector<2x64xbf16>, vector<64x256xbf16>, vector<2x256xf32> -> vector<2x256xf32>
    %599 = vector.extract_strided_slice %532 {offsets = [2, 0], sizes = [2, 128], strides = [1, 1]} : vector<16x256xf32> to vector<2x128xf32>
    %600 = vector.extract_strided_slice %598 {offsets = [0, 0], sizes = [2, 128], strides = [1, 1]} : vector<2x256xf32> to vector<2x128xf32>
    %601 = arith.addf %599, %600 : vector<2x128xf32>
    %602 = vector.extract_strided_slice %532 {offsets = [12, 128], sizes = [2, 128], strides = [1, 1]} : vector<16x256xf32> to vector<2x128xf32>
    %603 = vector.extract_strided_slice %598 {offsets = [0, 128], sizes = [2, 128], strides = [1, 1]} : vector<2x256xf32> to vector<2x128xf32>
    %604 = arith.addf %602, %603 : vector<2x128xf32>
    %605 = vector.extract_strided_slice %601 {offsets = [0, 0], sizes = [2, 32], strides = [1, 1]} : vector<2x128xf32> to vector<2x32xf32>
    %606 = arith.negf %605 : vector<2x32xf32>
    %607 = math.exp %606 : vector<2x32xf32>
    %cst_98 = arith.constant 1.000000e+00 : f32
    %608 = vector.broadcast %cst_98 : f32 to vector<2x32xf32>
    %609 = arith.addf %608, %607 : vector<2x32xf32>
    %610 = arith.divf %608, %609 : vector<2x32xf32>
    %611 = vector.extract_strided_slice %601 {offsets = [0, 32], sizes = [2, 32], strides = [1, 1]} : vector<2x128xf32> to vector<2x32xf32>
    %612 = arith.negf %611 : vector<2x32xf32>
    %613 = math.exp %612 : vector<2x32xf32>
    %cst_99 = arith.constant 1.000000e+00 : f32
    %614 = vector.broadcast %cst_99 : f32 to vector<2x32xf32>
    %615 = arith.addf %614, %613 : vector<2x32xf32>
    %616 = arith.divf %614, %615 : vector<2x32xf32>
    %617 = vector.extract_strided_slice %601 {offsets = [0, 64], sizes = [2, 32], strides = [1, 1]} : vector<2x128xf32> to vector<2x32xf32>
    %618 = math.tanh %617 : vector<2x32xf32>
    %619 = vector.extract_strided_slice %601 {offsets = [0, 96], sizes = [2, 32], strides = [1, 1]} : vector<2x128xf32> to vector<2x32xf32>
    %620 = arith.negf %619 : vector<2x32xf32>
    %621 = math.exp %620 : vector<2x32xf32>
    %cst_100 = arith.constant 1.000000e+00 : f32
    %622 = vector.broadcast %cst_100 : f32 to vector<2x32xf32>
    %623 = arith.addf %622, %621 : vector<2x32xf32>
    %624 = arith.divf %622, %623 : vector<2x32xf32>
    %625 = arith.mulf %616, %567 : vector<2x32xf32>
    %626 = arith.mulf %610, %618 : vector<2x32xf32>
    %627 = arith.addf %625, %626 : vector<2x32xf32>
    %628 = math.tanh %627 : vector<2x32xf32>
    %629 = arith.mulf %624, %628 : vector<2x32xf32>
    %630 = vector.extract_strided_slice %604 {offsets = [0, 0], sizes = [2, 32], strides = [1, 1]} : vector<2x128xf32> to vector<2x32xf32>
    %631 = arith.negf %630 : vector<2x32xf32>
    %632 = math.exp %631 : vector<2x32xf32>
    %cst_101 = arith.constant 1.000000e+00 : f32
    %633 = vector.broadcast %cst_101 : f32 to vector<2x32xf32>
    %634 = arith.addf %633, %632 : vector<2x32xf32>
    %635 = arith.divf %633, %634 : vector<2x32xf32>
    %636 = vector.extract_strided_slice %604 {offsets = [0, 32], sizes = [2, 32], strides = [1, 1]} : vector<2x128xf32> to vector<2x32xf32>
    %637 = arith.negf %636 : vector<2x32xf32>
    %638 = math.exp %637 : vector<2x32xf32>
    %cst_102 = arith.constant 1.000000e+00 : f32
    %639 = vector.broadcast %cst_102 : f32 to vector<2x32xf32>
    %640 = arith.addf %639, %638 : vector<2x32xf32>
    %641 = arith.divf %639, %640 : vector<2x32xf32>
    %642 = vector.extract_strided_slice %604 {offsets = [0, 64], sizes = [2, 32], strides = [1, 1]} : vector<2x128xf32> to vector<2x32xf32>
    %643 = math.tanh %642 : vector<2x32xf32>
    %644 = vector.extract_strided_slice %604 {offsets = [0, 96], sizes = [2, 32], strides = [1, 1]} : vector<2x128xf32> to vector<2x32xf32>
    %645 = arith.negf %644 : vector<2x32xf32>
    %646 = math.exp %645 : vector<2x32xf32>
    %cst_103 = arith.constant 1.000000e+00 : f32
    %647 = vector.broadcast %cst_103 : f32 to vector<2x32xf32>
    %648 = arith.addf %647, %646 : vector<2x32xf32>
    %649 = arith.divf %647, %648 : vector<2x32xf32>
    %650 = arith.mulf %641, %592 : vector<2x32xf32>
    %651 = arith.mulf %635, %643 : vector<2x32xf32>
    %652 = arith.addf %650, %651 : vector<2x32xf32>
    %653 = math.tanh %652 : vector<2x32xf32>
    %654 = arith.mulf %649, %653 : vector<2x32xf32>
    %655 = tpu.concatenate %629, %654 in 1 : vector<2x32xf32>, vector<2x32xf32> -> vector<2x64xf32>
    %656 = arith.truncf %655 : vector<2x64xf32> to vector<2x64xbf16>
    %c0_104 = arith.constant 0 : index
    %c0_105 = arith.constant 0 : index
    %657 = vector.load %arg4[%c0_104, %c0_105] : memref<64x256xbf16, #tpu.memory_space<vmem>>, vector<64x256xbf16>
    %cst_106 = arith.constant dense<0.000000e+00> : vector<2x256xf32>
    %658 = tpu.matmul %656, %657, %cst_106 {dimension_numbers = #tpu.dot_dimension_numbers<[1], [0], [0], [1], [0, 0, 1, 1], [], []>} : vector<2x64xbf16>, vector<64x256xbf16>, vector<2x256xf32> -> vector<2x256xf32>
    %659 = vector.extract_strided_slice %532 {offsets = [4, 0], sizes = [2, 128], strides = [1, 1]} : vector<16x256xf32> to vector<2x128xf32>
    %660 = vector.extract_strided_slice %658 {offsets = [0, 0], sizes = [2, 128], strides = [1, 1]} : vector<2x256xf32> to vector<2x128xf32>
    %661 = arith.addf %659, %660 : vector<2x128xf32>
    %662 = vector.extract_strided_slice %532 {offsets = [10, 128], sizes = [2, 128], strides = [1, 1]} : vector<16x256xf32> to vector<2x128xf32>
    %663 = vector.extract_strided_slice %658 {offsets = [0, 128], sizes = [2, 128], strides = [1, 1]} : vector<2x256xf32> to vector<2x128xf32>
    %664 = arith.addf %662, %663 : vector<2x128xf32>
    %665 = vector.extract_strided_slice %661 {offsets = [0, 0], sizes = [2, 32], strides = [1, 1]} : vector<2x128xf32> to vector<2x32xf32>
    %666 = arith.negf %665 : vector<2x32xf32>
    %667 = math.exp %666 : vector<2x32xf32>
    %cst_107 = arith.constant 1.000000e+00 : f32
    %668 = vector.broadcast %cst_107 : f32 to vector<2x32xf32>
    %669 = arith.addf %668, %667 : vector<2x32xf32>
    %670 = arith.divf %668, %669 : vector<2x32xf32>
    %671 = vector.extract_strided_slice %661 {offsets = [0, 32], sizes = [2, 32], strides = [1, 1]} : vector<2x128xf32> to vector<2x32xf32>
    %672 = arith.negf %671 : vector<2x32xf32>
    %673 = math.exp %672 : vector<2x32xf32>
    %cst_108 = arith.constant 1.000000e+00 : f32
    %674 = vector.broadcast %cst_108 : f32 to vector<2x32xf32>
    %675 = arith.addf %674, %673 : vector<2x32xf32>
    %676 = arith.divf %674, %675 : vector<2x32xf32>
    %677 = vector.extract_strided_slice %661 {offsets = [0, 64], sizes = [2, 32], strides = [1, 1]} : vector<2x128xf32> to vector<2x32xf32>
    %678 = math.tanh %677 : vector<2x32xf32>
    %679 = vector.extract_strided_slice %661 {offsets = [0, 96], sizes = [2, 32], strides = [1, 1]} : vector<2x128xf32> to vector<2x32xf32>
    %680 = arith.negf %679 : vector<2x32xf32>
    %681 = math.exp %680 : vector<2x32xf32>
    %cst_109 = arith.constant 1.000000e+00 : f32
    %682 = vector.broadcast %cst_109 : f32 to vector<2x32xf32>
    %683 = arith.addf %682, %681 : vector<2x32xf32>
    %684 = arith.divf %682, %683 : vector<2x32xf32>
    %685 = arith.mulf %676, %627 : vector<2x32xf32>
    %686 = arith.mulf %670, %678 : vector<2x32xf32>
    %687 = arith.addf %685, %686 : vector<2x32xf32>
    %688 = math.tanh %687 : vector<2x32xf32>
    %689 = arith.mulf %684, %688 : vector<2x32xf32>
    %690 = vector.extract_strided_slice %664 {offsets = [0, 0], sizes = [2, 32], strides = [1, 1]} : vector<2x128xf32> to vector<2x32xf32>
    %691 = arith.negf %690 : vector<2x32xf32>
    %692 = math.exp %691 : vector<2x32xf32>
    %cst_110 = arith.constant 1.000000e+00 : f32
    %693 = vector.broadcast %cst_110 : f32 to vector<2x32xf32>
    %694 = arith.addf %693, %692 : vector<2x32xf32>
    %695 = arith.divf %693, %694 : vector<2x32xf32>
    %696 = vector.extract_strided_slice %664 {offsets = [0, 32], sizes = [2, 32], strides = [1, 1]} : vector<2x128xf32> to vector<2x32xf32>
    %697 = arith.negf %696 : vector<2x32xf32>
    %698 = math.exp %697 : vector<2x32xf32>
    %cst_111 = arith.constant 1.000000e+00 : f32
    %699 = vector.broadcast %cst_111 : f32 to vector<2x32xf32>
    %700 = arith.addf %699, %698 : vector<2x32xf32>
    %701 = arith.divf %699, %700 : vector<2x32xf32>
    %702 = vector.extract_strided_slice %664 {offsets = [0, 64], sizes = [2, 32], strides = [1, 1]} : vector<2x128xf32> to vector<2x32xf32>
    %703 = math.tanh %702 : vector<2x32xf32>
    %704 = vector.extract_strided_slice %664 {offsets = [0, 96], sizes = [2, 32], strides = [1, 1]} : vector<2x128xf32> to vector<2x32xf32>
    %705 = arith.negf %704 : vector<2x32xf32>
    %706 = math.exp %705 : vector<2x32xf32>
    %cst_112 = arith.constant 1.000000e+00 : f32
    %707 = vector.broadcast %cst_112 : f32 to vector<2x32xf32>
    %708 = arith.addf %707, %706 : vector<2x32xf32>
    %709 = arith.divf %707, %708 : vector<2x32xf32>
    %710 = arith.mulf %701, %652 : vector<2x32xf32>
    %711 = arith.mulf %695, %703 : vector<2x32xf32>
    %712 = arith.addf %710, %711 : vector<2x32xf32>
    %713 = math.tanh %712 : vector<2x32xf32>
    %714 = arith.mulf %709, %713 : vector<2x32xf32>
    %715 = tpu.concatenate %689, %714 in 1 : vector<2x32xf32>, vector<2x32xf32> -> vector<2x64xf32>
    %716 = arith.truncf %715 : vector<2x64xf32> to vector<2x64xbf16>
    %c0_113 = arith.constant 0 : index
    %c0_114 = arith.constant 0 : index
    %717 = vector.load %arg4[%c0_113, %c0_114] : memref<64x256xbf16, #tpu.memory_space<vmem>>, vector<64x256xbf16>
    %cst_115 = arith.constant dense<0.000000e+00> : vector<2x256xf32>
    %718 = tpu.matmul %716, %717, %cst_115 {dimension_numbers = #tpu.dot_dimension_numbers<[1], [0], [0], [1], [0, 0, 1, 1], [], []>} : vector<2x64xbf16>, vector<64x256xbf16>, vector<2x256xf32> -> vector<2x256xf32>
    %719 = vector.extract_strided_slice %532 {offsets = [6, 0], sizes = [2, 128], strides = [1, 1]} : vector<16x256xf32> to vector<2x128xf32>
    %720 = vector.extract_strided_slice %718 {offsets = [0, 0], sizes = [2, 128], strides = [1, 1]} : vector<2x256xf32> to vector<2x128xf32>
    %721 = arith.addf %719, %720 : vector<2x128xf32>
    %722 = vector.extract_strided_slice %532 {offsets = [8, 128], sizes = [2, 128], strides = [1, 1]} : vector<16x256xf32> to vector<2x128xf32>
    %723 = vector.extract_strided_slice %718 {offsets = [0, 128], sizes = [2, 128], strides = [1, 1]} : vector<2x256xf32> to vector<2x128xf32>
    %724 = arith.addf %722, %723 : vector<2x128xf32>
    %725 = vector.extract_strided_slice %721 {offsets = [0, 0], sizes = [2, 32], strides = [1, 1]} : vector<2x128xf32> to vector<2x32xf32>
    %726 = arith.negf %725 : vector<2x32xf32>
    %727 = math.exp %726 : vector<2x32xf32>
    %cst_116 = arith.constant 1.000000e+00 : f32
    %728 = vector.broadcast %cst_116 : f32 to vector<2x32xf32>
    %729 = arith.addf %728, %727 : vector<2x32xf32>
    %730 = arith.divf %728, %729 : vector<2x32xf32>
    %731 = vector.extract_strided_slice %721 {offsets = [0, 32], sizes = [2, 32], strides = [1, 1]} : vector<2x128xf32> to vector<2x32xf32>
    %732 = arith.negf %731 : vector<2x32xf32>
    %733 = math.exp %732 : vector<2x32xf32>
    %cst_117 = arith.constant 1.000000e+00 : f32
    %734 = vector.broadcast %cst_117 : f32 to vector<2x32xf32>
    %735 = arith.addf %734, %733 : vector<2x32xf32>
    %736 = arith.divf %734, %735 : vector<2x32xf32>
    %737 = vector.extract_strided_slice %721 {offsets = [0, 64], sizes = [2, 32], strides = [1, 1]} : vector<2x128xf32> to vector<2x32xf32>
    %738 = math.tanh %737 : vector<2x32xf32>
    %739 = vector.extract_strided_slice %721 {offsets = [0, 96], sizes = [2, 32], strides = [1, 1]} : vector<2x128xf32> to vector<2x32xf32>
    %740 = arith.negf %739 : vector<2x32xf32>
    %741 = math.exp %740 : vector<2x32xf32>
    %cst_118 = arith.constant 1.000000e+00 : f32
    %742 = vector.broadcast %cst_118 : f32 to vector<2x32xf32>
    %743 = arith.addf %742, %741 : vector<2x32xf32>
    %744 = arith.divf %742, %743 : vector<2x32xf32>
    %745 = arith.mulf %736, %687 : vector<2x32xf32>
    %746 = arith.mulf %730, %738 : vector<2x32xf32>
    %747 = arith.addf %745, %746 : vector<2x32xf32>
    %748 = math.tanh %747 : vector<2x32xf32>
    %749 = arith.mulf %744, %748 : vector<2x32xf32>
    %750 = vector.extract_strided_slice %724 {offsets = [0, 0], sizes = [2, 32], strides = [1, 1]} : vector<2x128xf32> to vector<2x32xf32>
    %751 = arith.negf %750 : vector<2x32xf32>
    %752 = math.exp %751 : vector<2x32xf32>
    %cst_119 = arith.constant 1.000000e+00 : f32
    %753 = vector.broadcast %cst_119 : f32 to vector<2x32xf32>
    %754 = arith.addf %753, %752 : vector<2x32xf32>
    %755 = arith.divf %753, %754 : vector<2x32xf32>
    %756 = vector.extract_strided_slice %724 {offsets = [0, 32], sizes = [2, 32], strides = [1, 1]} : vector<2x128xf32> to vector<2x32xf32>
    %757 = arith.negf %756 : vector<2x32xf32>
    %758 = math.exp %757 : vector<2x32xf32>
    %cst_120 = arith.constant 1.000000e+00 : f32
    %759 = vector.broadcast %cst_120 : f32 to vector<2x32xf32>
    %760 = arith.addf %759, %758 : vector<2x32xf32>
    %761 = arith.divf %759, %760 : vector<2x32xf32>
    %762 = vector.extract_strided_slice %724 {offsets = [0, 64], sizes = [2, 32], strides = [1, 1]} : vector<2x128xf32> to vector<2x32xf32>
    %763 = math.tanh %762 : vector<2x32xf32>
    %764 = vector.extract_strided_slice %724 {offsets = [0, 96], sizes = [2, 32], strides = [1, 1]} : vector<2x128xf32> to vector<2x32xf32>
    %765 = arith.negf %764 : vector<2x32xf32>
    %766 = math.exp %765 : vector<2x32xf32>
    %cst_121 = arith.constant 1.000000e+00 : f32
    %767 = vector.broadcast %cst_121 : f32 to vector<2x32xf32>
    %768 = arith.addf %767, %766 : vector<2x32xf32>
    %769 = arith.divf %767, %768 : vector<2x32xf32>
    %770 = arith.mulf %761, %712 : vector<2x32xf32>
    %771 = arith.mulf %755, %763 : vector<2x32xf32>
    %772 = arith.addf %770, %771 : vector<2x32xf32>
    %773 = math.tanh %772 : vector<2x32xf32>
    %774 = arith.mulf %769, %773 : vector<2x32xf32>
    %775 = tpu.concatenate %749, %774 in 1 : vector<2x32xf32>, vector<2x32xf32> -> vector<2x64xf32>
    %776 = arith.truncf %775 : vector<2x64xf32> to vector<2x64xbf16>
    %c0_122 = arith.constant 0 : index
    %c0_123 = arith.constant 0 : index
    %777 = vector.load %arg4[%c0_122, %c0_123] : memref<64x256xbf16, #tpu.memory_space<vmem>>, vector<64x256xbf16>
    %cst_124 = arith.constant dense<0.000000e+00> : vector<2x256xf32>
    %778 = tpu.matmul %776, %777, %cst_124 {dimension_numbers = #tpu.dot_dimension_numbers<[1], [0], [0], [1], [0, 0, 1, 1], [], []>} : vector<2x64xbf16>, vector<64x256xbf16>, vector<2x256xf32> -> vector<2x256xf32>
    %779 = vector.extract_strided_slice %532 {offsets = [8, 0], sizes = [2, 128], strides = [1, 1]} : vector<16x256xf32> to vector<2x128xf32>
    %780 = vector.extract_strided_slice %778 {offsets = [0, 0], sizes = [2, 128], strides = [1, 1]} : vector<2x256xf32> to vector<2x128xf32>
    %781 = arith.addf %779, %780 : vector<2x128xf32>
    %782 = vector.extract_strided_slice %781 {offsets = [0, 0], sizes = [2, 32], strides = [1, 1]} : vector<2x128xf32> to vector<2x32xf32>
    %783 = arith.negf %782 : vector<2x32xf32>
    %784 = math.exp %783 : vector<2x32xf32>
    %cst_125 = arith.constant 1.000000e+00 : f32
    %785 = vector.broadcast %cst_125 : f32 to vector<2x32xf32>
    %786 = arith.addf %785, %784 : vector<2x32xf32>
    %787 = arith.divf %785, %786 : vector<2x32xf32>
    %788 = vector.extract_strided_slice %781 {offsets = [0, 32], sizes = [2, 32], strides = [1, 1]} : vector<2x128xf32> to vector<2x32xf32>
    %789 = arith.negf %788 : vector<2x32xf32>
    %790 = math.exp %789 : vector<2x32xf32>
    %cst_126 = arith.constant 1.000000e+00 : f32
    %791 = vector.broadcast %cst_126 : f32 to vector<2x32xf32>
    %792 = arith.addf %791, %790 : vector<2x32xf32>
    %793 = arith.divf %791, %792 : vector<2x32xf32>
    %794 = vector.extract_strided_slice %781 {offsets = [0, 64], sizes = [2, 32], strides = [1, 1]} : vector<2x128xf32> to vector<2x32xf32>
    %795 = math.tanh %794 : vector<2x32xf32>
    %796 = vector.extract_strided_slice %781 {offsets = [0, 96], sizes = [2, 32], strides = [1, 1]} : vector<2x128xf32> to vector<2x32xf32>
    %797 = arith.negf %796 : vector<2x32xf32>
    %798 = math.exp %797 : vector<2x32xf32>
    %cst_127 = arith.constant 1.000000e+00 : f32
    %799 = vector.broadcast %cst_127 : f32 to vector<2x32xf32>
    %800 = arith.addf %799, %798 : vector<2x32xf32>
    %801 = arith.divf %799, %800 : vector<2x32xf32>
    %802 = arith.mulf %793, %747 : vector<2x32xf32>
    %803 = arith.mulf %787, %795 : vector<2x32xf32>
    %804 = arith.addf %802, %803 : vector<2x32xf32>
    %805 = math.tanh %804 : vector<2x32xf32>
    %806 = arith.mulf %801, %805 : vector<2x32xf32>
    %807 = tpu.concatenate %806, %774 in 1 : vector<2x32xf32>, vector<2x32xf32> -> vector<2x64xf32>
    %808 = arith.truncf %807 : vector<2x64xf32> to vector<2x64xbf16>
    %c0_128 = arith.constant 0 : index
    %c0_129 = arith.constant 0 : index
    %809 = vector.load %arg5[%c0_128, %c0_129] : memref<64x16xbf16, #tpu.memory_space<vmem>>, vector<64x16xbf16>
    %cst_130 = arith.constant dense<0.000000e+00> : vector<2x16xf32>
    %810 = tpu.matmul %808, %809, %cst_130 {dimension_numbers = #tpu.dot_dimension_numbers<[1], [0], [0], [1], [0, 0, 1, 1], [], []>} : vector<2x64xbf16>, vector<64x16xbf16>, vector<2x16xf32> -> vector<2x16xf32>
    %c0_131 = arith.constant 0 : index
    %c0_132 = arith.constant 0 : index
    %811 = vector.load %arg6[%c0_131, %c0_132] : memref<1x16xf32, #tpu.memory_space<vmem>>, vector<1x16xf32>
    %812 = vector.broadcast %811 : vector<1x16xf32> to vector<2x16xf32>
    %813 = arith.addf %810, %812 : vector<2x16xf32>
    %cst_133 = arith.constant 0.000000e+00 : f32
    %814 = vector.broadcast %cst_133 : f32 to vector<2x16xf32>
    %815 = arith.maximumf %813, %814 : vector<2x16xf32>
    %816 = arith.truncf %815 : vector<2x16xf32> to vector<2x16xbf16>
    %c0_134 = arith.constant 0 : index
    %c0_135 = arith.constant 0 : index
    %817 = vector.load %arg7[%c0_134, %c0_135] : memref<16x1xbf16, #tpu.memory_space<vmem>>, vector<16x1xbf16>
    %cst_136 = arith.constant dense<0.000000e+00> : vector<2x1xf32>
    %818 = tpu.matmul %816, %817, %cst_136 {dimension_numbers = #tpu.dot_dimension_numbers<[1], [0], [0], [1], [0, 0, 1, 1], [], []>} : vector<2x16xbf16>, vector<16x1xbf16>, vector<2x1xf32> -> vector<2x1xf32>
    %c0_137 = arith.constant 0 : index
    %c0_138 = arith.constant 0 : index
    %819 = vector.load %arg8[%c0_137, %c0_138] : memref<1x1xf32, #tpu.memory_space<vmem>>, vector<1x1xf32>
    %820 = vector.broadcast %819 : vector<1x1xf32> to vector<2x1xf32>
    %821 = arith.addf %818, %820 : vector<2x1xf32>
    %822 = arith.negf %821 : vector<2x1xf32>
    %823 = math.exp %822 : vector<2x1xf32>
    %cst_139 = arith.constant 1.000000e+00 : f32
    %824 = vector.broadcast %cst_139 : f32 to vector<2x1xf32>
    %825 = arith.addf %824, %823 : vector<2x1xf32>
    %826 = arith.divf %824, %825 : vector<2x1xf32>
    %c0_140 = arith.constant 0 : index
    %c0_141 = arith.constant 0 : index
    %827 = vector.load %arg9[%c0_140, %c0_141] : memref<2x1xf32, #tpu.memory_space<vmem>>, vector<2x1xf32>
    tpu.vector_store %arg9[%c0_140, %c0_141], %826 {strides = array<i32>} : memref<2x1xf32, #tpu.memory_space<vmem>>, vector<2x1xf32>,
    return
  }
}

</mosaic_0001>

<llo_original>
// kernel: cnn_rnn_ffnn_forward.2
$region0: #{cnn_rnn_ffnn_forward.2}
  #allocation0 [shape = 'u32[]', space=smem, size = 0x4, offset = 0x4, fixed_abs, tag = 'smem constant byte address 0x4 - core index']
  #allocation1 [shape = 'u32[144,128]{1,0:T(1,128)}', space=vmem, size = 0x12000, scoped, tag = 'internal scratch']
  %s0 = inlined_call_operand.vmem [shape: f32[2,20,4], index: 0, kind: input, shape index: {}]
  %s1 = inlined_call_operand.vmem [shape: bf16[13,4,128], index: 1, kind: input, shape index: {}]
  %s2 = inlined_call_operand.vmem [shape: f32[1,128], index: 2, kind: input, shape index: {}]
  %s3 = inlined_call_operand.vmem [shape: bf16[4,256], index: 3, kind: input, shape index: {}]
  %s4 = inlined_call_operand.hbm [shape: bf16[128,256], index: 4, kind: input, shape index: {}]
  %s5 = inlined_call_operand.vmem [shape: f32[1,256], index: 5, kind: input, shape index: {}]
  %s6 = inlined_call_operand.vmem [shape: f32[2,8,256], index: 6, kind: output, shape index: {}]
  %s7 = sld [smem:[#allocation0]]
  $region61: #{cnn_rnn_ffnn_forward.2} parent=0
    _
  %s9 = ssub.s32 1, %s7
  %s10 = scalar_select 0, %s9, %s7
  $region1: #{cnn_rnn_ffnn_forward.2} parent=0
    #allocation2 [shape = 'u8[65536]{0}', space=vmem, size = 0x10000, scoped, tag = 'input window, operand 4, single buffered']
    #allocation3 [shape = 's32[2]{0}', space=sflag, size = 0x8, scoped, tag = 'scoped memory for cnn_rnn_ffnn_forward.2']
    %11 = vsyncpa [#allocation3], 0
    loop: start=0, step=1, limit=4
    $region2: #{cnn_rnn_ffnn_forward.2} parent=1 // loop_pre_header
      _
    $region3: #{cnn_rnn_ffnn_forward.2} parent=1 // loop_header
      %s13 = sphi 0, %s17
      %p14 = scmp.ge.s32.totalorder %s13, 4
      %s23 = sphi 0, %s25
      %s26 = sphi 0, %s23
      %s27 = sphi 0, %s26
      %s43 = sphi 0, %s27
      %s47 = sphi 0, %s47
      %s49 = sphi 0, %s47
      %s50 = sphi 0, %s49
      %s64 = sphi 0, %s50
      %s68 = sphi 0, %s68
      %s70 = sphi 0, %s68
      %s71 = sphi 0, %s70
      %s85 = sphi 0, %s71
      %s89 = sphi 0, %s89
      %s91 = sphi 0, %s89
      %s92 = sphi 0, %s91
      %s106 = sphi 0, %s92
      %s110 = sphi 0, %s110
      %s112 = sphi 0, %s110
      %s113 = sphi 0, %s112
      %s127 = sphi 0, %s113
      %s131 = sphi 0, %s131
      %s133 = sphi 0, %s131
      %s134 = sphi 0, %s133
      %s148 = sphi 0, %s134
      %s154 = sphi 0, %s156
      %s157 = sphi 0, %s154
      %s158 = sphi 0, %s157
      %s174 = sphi 0, %s158
    $region4: #{cnn_rnn_ffnn_forward.2} parent=1 // loop_header_branch
      %16 = sbr.rel (%p14) target = $region8
    $region5: #{cnn_rnn_ffnn_forward.2} parent=1 // loop_body
      %s18 = ssub.s32 %s13, 1
      %s19 = ssub.s32 %s13, 2
      %s20 = sadd.s32 %s13, 1
      %s21 = ssub.s32 %s13, %s20
      %p22 = scmp.eq.s32.totalorder %s21, 0
      %s24 = sadd.s32 %s23, 1
      %s25 = scalar_select %p22, %s23, %s24
      %p28 = pneg %p22
      %p29 = scmp.eq.s32.totalorder %s13, 1
      %p30 = por %p28, %p29
      %p31 = scmp.ne.s32.totalorder %s23, %s26
      %p32 = scmp.eq.s32.totalorder %s13, 0
      %p33 = por %p31, %p32
      %p34 = scmp.ne.s32.totalorder %s23, %s26
      %p35 = scmp.eq.s32.totalorder %s18, 1
      %p36 = por %p34, %p35
      %p37 = scmp.ne.s32.totalorder %s26, %s27
      %p38 = scmp.eq.s32.totalorder %s18, 0
      %p39 = por %p37, %p38
      %p40 = scmp.ne.s32.totalorder %s26, %s27
      %p41 = scmp.eq.s32.totalorder %s19, 1
      %p42 = por %p40, %p41
      %p44 = scmp.ne.s32.totalorder %s27, %s43
      %p45 = scmp.eq.s32.totalorder %s19, 0
      %p46 = por %p44, %p45
      %s48 = sadd.s32 %s47, 1
      %p51 = scmp.eq.s32.totalorder %s13, 1
      %p52 = scmp.ne.s32.totalorder %s47, %s49
      %p53 = scmp.eq.s32.totalorder %s13, 0
      %p54 = por %p52, %p53
      %p55 = scmp.ne.s32.totalorder %s47, %s49
      %p56 = scmp.eq.s32.totalorder %s18, 1
      %p57 = por %p55, %p56
      %p58 = scmp.ne.s32.totalorder %s49, %s50
      %p59 = scmp.eq.s32.totalorder %s18, 0
      %p60 = por %p58, %p59
      %p61 = scmp.ne.s32.totalorder %s49, %s50
      %p62 = scmp.eq.s32.totalorder %s19, 1
      %p63 = por %p61, %p62
      %p65 = scmp.ne.s32.totalorder %s50, %s64
      %p66 = scmp.eq.s32.totalorder %s19, 0
      %p67 = por %p65, %p66
      %s69 = sadd.s32 %s68, 1
      %p72 = scmp.eq.s32.totalorder %s13, 1
      %p73 = scmp.ne.s32.totalorder %s68, %s70
      %p74 = scmp.eq.s32.totalorder %s13, 0
      %p75 = por %p73, %p74
      %p76 = scmp.ne.s32.totalorder %s68, %s70
      %p77 = scmp.eq.s32.totalorder %s18, 1
      %p78 = por %p76, %p77
      %p79 = scmp.ne.s32.totalorder %s70, %s71
      %p80 = scmp.eq.s32.totalorder %s18, 0
      %p81 = por %p79, %p80
      %p82 = scmp.ne.s32.totalorder %s70, %s71
      %p83 = scmp.eq.s32.totalorder %s19, 1
      %p84 = por %p82, %p83
      %p86 = scmp.ne.s32.totalorder %s71, %s85
      %p87 = scmp.eq.s32.totalorder %s19, 0
      %p88 = por %p86, %p87
      %s90 = sadd.s32 %s89, 1
      %p93 = scmp.eq.s32.totalorder %s13, 1
      %p94 = scmp.ne.s32.totalorder %s89, %s91
      %p95 = scmp.eq.s32.totalorder %s13, 0
      %p96 = por %p94, %p95
      %p97 = scmp.ne.s32.totalorder %s89, %s91
      %p98 = scmp.eq.s32.totalorder %s18, 1
      %p99 = por %p97, %p98
      %p100 = scmp.ne.s32.totalorder %s91, %s92
      %p101 = scmp.eq.s32.totalorder %s18, 0
      %p102 = por %p100, %p101
      %p103 = scmp.ne.s32.totalorder %s91, %s92
      %p104 = scmp.eq.s32.totalorder %s19, 1
      %p105 = por %p103, %p104
      %p107 = scmp.ne.s32.totalorder %s92, %s106
      %p108 = scmp.eq.s32.totalorder %s19, 0
      %p109 = por %p107, %p108
      %s111 = sadd.s32 %s110, 1
      %p114 = scmp.eq.s32.totalorder %s13, 1
      %p115 = scmp.ne.s32.totalorder %s110, %s112
      %p116 = scmp.eq.s32.totalorder %s13, 0
      %p117 = por %p115, %p116
      %p118 = scmp.ne.s32.totalorder %s110, %s112
      %p119 = scmp.eq.s32.totalorder %s18, 1
      %p120 = por %p118, %p119
      %p121 = scmp.ne.s32.totalorder %s112, %s113
      %p122 = scmp.eq.s32.totalorder %s18, 0
      %p123 = por %p121, %p122
      %p124 = scmp.ne.s32.totalorder %s112, %s113
      %p125 = scmp.eq.s32.totalorder %s19, 1
      %p126 = por %p124, %p125
      %p128 = scmp.ne.s32.totalorder %s113, %s127
      %p129 = scmp.eq.s32.totalorder %s19, 0
      %p130 = por %p128, %p129
      %s132 = sadd.s32 %s131, 1
      %p135 = scmp.eq.s32.totalorder %s13, 1
      %p136 = scmp.ne.s32.totalorder %s131, %s133
      %p137 = scmp.eq.s32.totalorder %s13, 0
      %p138 = por %p136, %p137
      %p139 = scmp.ne.s32.totalorder %s131, %s133
      %p140 = scmp.eq.s32.totalorder %s18, 1
      %p141 = por %p139, %p140
      %p142 = scmp.ne.s32.totalorder %s133, %s134
      %p143 = scmp.eq.s32.totalorder %s18, 0
      %p144 = por %p142, %p143
      %p145 = scmp.ne.s32.totalorder %s133, %s134
      %p146 = scmp.eq.s32.totalorder %s19, 1
      %p147 = por %p145, %p146
      %p149 = scmp.ne.s32.totalorder %s134, %s148
      %p150 = scmp.eq.s32.totalorder %s19, 0
      %p151 = por %p149, %p150
      %s152 = ssub.s32 %s13, %s20
      %p153 = scmp.eq.s32.totalorder %s152, 0
      %s155 = sadd.s32 %s154, 1
      %s156 = scalar_select %p153, %s154, %s155
      %p159 = pneg %p153
      %p160 = scmp.eq.s32.totalorder %s13, 1
      %p161 = por %p159, %p160
      %p162 = scmp.ne.s32.totalorder %s154, %s157
      %p163 = scmp.eq.s32.totalorder %s13, 0
      %p164 = por %p162, %p163
      %p165 = scmp.ne.s32.totalorder %s154, %s157
      %p166 = scmp.eq.s32.totalorder %s18, 1
      %p167 = por %p165, %p166
      %p168 = scmp.ne.s32.totalorder %s157, %s158
      %p169 = scmp.eq.s32.totalorder %s18, 0
      %p170 = por %p168, %p169
      %p171 = scmp.ne.s32.totalorder %s157, %s158
      %p172 = scmp.eq.s32.totalorder %s19, 1
      %p173 = por %p171, %p172
      %p175 = scmp.ne.s32.totalorder %s158, %s174
      %p176 = scmp.eq.s32.totalorder %s19, 0
      %p177 = por %p175, %p176
      %p178 = scmp.le.s32.totalorder 1, %s13
      %p179 = scmp.lt.s32.totalorder %s13, 3
      %p180 = pnand %p178, %p179
      %p181 = pneg %p180
      // Predicated region
      $region9: #{cnn_rnn_ffnn_forward.2} parent=5 // pred_check
        _
      $region10: #{cnn_rnn_ffnn_forward.2} parent=5 // pred_check_branch
        %183 = sbr.rel (%p180) target = $region12
      $region11: #{cnn_rnn_ffnn_forward.2} parent=5 // pred_region
        %s184 = ssub.s32 %s13, 1
        // Predicated region
        $region13: #{cnn_rnn_ffnn_forward.2} parent=11 // pred_check
          %p185 = pneg %p60
        $region14: #{cnn_rnn_ffnn_forward.2} parent=11 // pred_check_branch
          %187 = sbr.rel (%p185) target = $region16
        $region15: #{cnn_rnn_ffnn_forward.2} parent=11 // pred_region
          _
        $region16: #{cnn_rnn_ffnn_forward.2} parent=11 // pred_fallthru
          _
        // Predicated region
        $region17: #{cnn_rnn_ffnn_forward.2} parent=11 // pred_check
          %p188 = pneg %p81
        $region18: #{cnn_rnn_ffnn_forward.2} parent=11 // pred_check_branch
          %190 = sbr.rel (%p188) target = $region20
        $region19: #{cnn_rnn_ffnn_forward.2} parent=11 // pred_region
          _
        $region20: #{cnn_rnn_ffnn_forward.2} parent=11 // pred_fallthru
          _
        // Predicated region
        $region21: #{cnn_rnn_ffnn_forward.2} parent=11 // pred_check
          %p191 = pneg %p102
        $region22: #{cnn_rnn_ffnn_forward.2} parent=11 // pred_check_branch
          %193 = sbr.rel (%p191) target = $region24
        $region23: #{cnn_rnn_ffnn_forward.2} parent=11 // pred_region
          _
        $region24: #{cnn_rnn_ffnn_forward.2} parent=11 // pred_fallthru
          _
        // Predicated region
        $region25: #{cnn_rnn_ffnn_forward.2} parent=11 // pred_check
          %p194 = pneg %p123
        $region26: #{cnn_rnn_ffnn_forward.2} parent=11 // pred_check_branch
          %196 = sbr.rel (%p194) target = $region28
        $region27: #{cnn_rnn_ffnn_forward.2} parent=11 // pred_region
          %s198 = ssub.s32 2048, 2048
          %199 = vsyncadd [#allocation3], %s198
          %s200 = sshll.u32 [#allocation2], 4
          %s201 = int_to_ptr.vmem [resolvable:$true] %s200
          %206 = dma.hbm_to_vmem [thread:$0]  %s4, 2048, %s201, [#allocation3], 128, 128, 8
        $region28: #{cnn_rnn_ffnn_forward.2} parent=11 // pred_fallthru
          _
        // Predicated region
        $region29: #{cnn_rnn_ffnn_forward.2} parent=11 // pred_check
          %p207 = pneg %p144
        $region30: #{cnn_rnn_ffnn_forward.2} parent=11 // pred_check_branch
          %209 = sbr.rel (%p207) target = $region32
        $region31: #{cnn_rnn_ffnn_forward.2} parent=11 // pred_region
          _
        $region32: #{cnn_rnn_ffnn_forward.2} parent=11 // pred_fallthru
          _
      $region12: #{cnn_rnn_ffnn_forward.2} parent=5 // pred_fallthru
        _
      %p210 = scmp.lt.s32.totalorder %s13, 2
      // Predicated region
      $region33: #{cnn_rnn_ffnn_forward.2} parent=5 // pred_check
        %p211 = pneg %p210
      $region34: #{cnn_rnn_ffnn_forward.2} parent=5 // pred_check_branch
        %213 = sbr.rel (%p211) target = $region36
      $region35: #{cnn_rnn_ffnn_forward.2} parent=5 // pred_region
        // Predicated region
        $region37: #{cnn_rnn_ffnn_forward.2} parent=35 // pred_check
          %p214 = pneg %p33
        $region38: #{cnn_rnn_ffnn_forward.2} parent=35 // pred_check_branch
          %216 = sbr.rel (%p214) target = $region40
        $region39: #{cnn_rnn_ffnn_forward.2} parent=35 // pred_region
          %p217 = scmp.lt.s32.totalorder %s13, 1
          %s218 = scalar_select %p217, %s13, 1
          %s219 = smul.addr %s218, 3
          %s220 = smul.addr %s219, 8
          %s221 = scalar_lea.vmem %s0, %s220
        $region40: #{cnn_rnn_ffnn_forward.2} parent=35 // pred_fallthru
          _
      $region36: #{cnn_rnn_ffnn_forward.2} parent=5 // pred_fallthru
        _
      %p222 = scmp.le.s32.totalorder 1, %s13
      %p223 = scmp.lt.s32.totalorder %s13, 3
      %p224 = pnand %p222, %p223
      %p225 = pneg %p224
      // Predicated region
      $region41: #{cnn_rnn_ffnn_forward.2} parent=5 // pred_check
        _
      $region42: #{cnn_rnn_ffnn_forward.2} parent=5 // pred_check_branch
        %227 = sbr.rel (%p224) target = $region44
      $region43: #{cnn_rnn_ffnn_forward.2} parent=5 // pred_region
        %s228 = ssub.s32 %s13, 1
        // Predicated region
        $region45: #{cnn_rnn_ffnn_forward.2} parent=43 // pred_check
          %p229 = pneg %p123
        $region46: #{cnn_rnn_ffnn_forward.2} parent=43 // pred_check_branch
          %231 = sbr.rel (%p229) target = $region48
        $region47: #{cnn_rnn_ffnn_forward.2} parent=43 // pred_region
          %232 = dma.done [#allocation3], 2048
        $region48: #{cnn_rnn_ffnn_forward.2} parent=43 // pred_fallthru
          _
        %p233 = scmp.lt.s32.totalorder %s18, 1
        %s234 = scalar_select %p233, %s18, 1
        %s235 = smul.addr %s234, 3
        %s236 = smul.addr %s235, 8
        %s237 = scalar_lea.vmem %s0, %s236
        %p238 = pneg %p39
        %p239 = pneg %p36
        %p240 = pneg %p60
        %p241 = pneg %p57
        %p242 = pneg %p81
        %p243 = pneg %p78
        %p244 = pneg %p102
        %p245 = pneg %p99
        %p246 = pneg %p123
        %p247 = pneg %p120
        %p248 = pneg %p144
        %p249 = pneg %p141
        %p250 = pneg %p170
        %p251 = pneg %p167
        %p252 = scmp.lt.s32.totalorder %s18, 1
        %s253 = scalar_select %p252, %s18, 1
        %s254 = smul.addr %s253, 2
        %s255 = smul.addr %s254, 8
        %s256 = scalar_lea.vmem %s6, %s255
        %p257 = scmp.lt.s32.totalorder %s18, 1
        %s258 = scalar_select %p257, %s18, 1
        %s259 = smul.addr %s258, 3
        %s260 = smul.addr %s259, 8
        %s261 = scalar_lea.vmem %s0, %s260
        %p262 = scmp.lt.s32.totalorder %s18, 1
        %s263 = scalar_select %p262, %s18, 1
        %s264 = smul.addr %s263, 2
        %s265 = smul.addr %s264, 8
        %s266 = scalar_lea.vmem %s6, %s265
        %v268 = vld [vmem:[%s261] sm:$0xff]
        %v269 = vld [vmem:[%s261 + $0x8] sm:$0xff]
        %v270 = vld [vmem:[%s261 + $0x10] sm:$0xf]
        %v271 = vpack.c.bf16 %v268, %v268
        %v272 = vld [vmem:[%s1] sm:$0x3]
        %v273 = vpack.c.bf16 %v269, %v268
        %s274 = scalar_lea.vmem %s1, 2
        %v275 = vld [vmem:[%s274] sm:$0x3]
        %v277 = vshrl.u32 %v273, 16
        %v279 = vshll.u32 %v273, 16
        %v281 = vrot.slane %v279, 1
        %v282 = vor.u32 %v277, %v281
        %vm283 = vcmask 31744
        %v285 = vsel %vm283, %v282, 0
        %vm287 = vcmask 1041408
        %v289 = vsel %vm287, %v275, 0
        %291 = vmatprep.subr.bf16.mxu0 0
        %292 = vmatpush1.bf16.msra.mxu0 %v289
        %293 = vmatprep.subr.bf16.mxu0 0
        %294 = vmatpush1.bf16.msra.mxu0 0
        %295 = vmatprep.subr.bf16.mxu0 0
        %296 = vmatpush1.bf16.msra.mxu0 0
        %297 = vmatprep.subr.bf16.mxu0 0
        %298 = vmatpush1.bf16.msra.mxu0 0
        %299 = vmatprep.subr.bf16.mxu0 0
        %300 = vmatpush1.bf16.msra.mxu0 0
        %301 = vmatprep.subr.bf16.mxu0 0
        %302 = vmatpush1.bf16.msra.mxu0 0
        %303 = vmatprep.subr.bf16.mxu0 0
        %304 = vmatpush1.bf16.msra.mxu0 0
        %305 = vmatprep.subr.bf16.mxu0 0
        %306 = vmatpush1.bf16.msra.mxu0 0
        %307 = vmatprep.subr.bf16.mxu0 0
        %308 = vmatpush1.bf16.msra.mxu0 0
        %309 = vmatprep.subr.bf16.mxu0 0
        %310 = vmatpush1.bf16.msra.mxu0 0
        %311 = vmatprep.subr.bf16.mxu0 0
        %312 = vmatpush1.bf16.msra.mxu0 0
        %313 = vmatprep.subr.bf16.mxu0 0
        %314 = vmatpush1.bf16.msra.mxu0 0
        %315 = vmatprep.subr.bf16.mxu0 0
        %316 = vmatpush1.bf16.msra.mxu0 0
        %317 = vmatprep.subr.bf16.mxu0 0
        %318 = vmatpush1.bf16.msra.mxu0 0
        %319 = vmatprep.subr.bf16.mxu0 0
        %320 = vmatpush1.bf16.msra.mxu0 0
        %321 = vmatprep.subr.bf16.mxu0 0
        %322 = vmatpush1.bf16.msra.mxu0 0
        %323 = vmatprep.mubr.bf16.mxu0 0
        %324 = vmatmul.mubr.bf16.gmra.mrb[0].mxu0 %v285
        %v325 = vpop.f32.mrb[0].mxu0
        %v326 = vadd.f32 0.0, %v325
        %v327 = vpop.f32.mrb[0].mxu0
        %v328 = vpop.f32.mrb[0].mxu0
        %v329 = vpop.f32.mrb[0].mxu0
        %330 = vdwg.mxu0
        %v332 = vsel %vm283, %v271, 0
        %v335 = vsel %vm287, %v272, 0
        %337 = vmatprep.subr.bf16.mxu0 0
        %338 = vmatpush1.bf16.msra.mxu0 %v335
        %339 = vmatprep.subr.bf16.mxu0 0
        %340 = vmatpush1.bf16.msra.mxu0 0
        %341 = vmatprep.subr.bf16.mxu0 0
        %342 = vmatpush1.bf16.msra.mxu0 0
        %343 = vmatprep.subr.bf16.mxu0 0
        %344 = vmatpush1.bf16.msra.mxu0 0
        %345 = vmatprep.subr.bf16.mxu0 0
        %346 = vmatpush1.bf16.msra.mxu0 0
        %347 = vmatprep.subr.bf16.mxu0 0
        %348 = vmatpush1.bf16.msra.mxu0 0
        %349 = vmatprep.subr.bf16.mxu0 0
        %350 = vmatpush1.bf16.msra.mxu0 0
        %351 = vmatprep.subr.bf16.mxu0 0
        %352 = vmatpush1.bf16.msra.mxu0 0
        %353 = vmatprep.subr.bf16.mxu0 0
        %354 = vmatpush1.bf16.msra.mxu0 0
        %355 = vmatprep.subr.bf16.mxu0 0
        %356 = vmatpush1.bf16.msra.mxu0 0
        %357 = vmatprep.subr.bf16.mxu0 0
        %358 = vmatpush1.bf16.msra.mxu0 0
        %359 = vmatprep.subr.bf16.mxu0 0
        %360 = vmatpush1.bf16.msra.mxu0 0
        %361 = vmatprep.subr.bf16.mxu0 0
        %362 = vmatpush1.bf16.msra.mxu0 0
        %363 = vmatprep.subr.bf16.mxu0 0
        %364 = vmatpush1.bf16.msra.mxu0 0
        %365 = vmatprep.subr.bf16.mxu0 0
        %366 = vmatpush1.bf16.msra.mxu0 0
        %367 = vmatprep.subr.bf16.mxu0 0
        %368 = vmatpush1.bf16.msra.mxu0 0
        %369 = vmatprep.mubr.bf16.mxu0 0
        %370 = vmatmul.mubr.bf16.gmra.mrb[0].mxu0 %v332
        %v371 = vpop.f32.mrb[0].mxu0
        %v372 = vadd.f32 %v326, %v371
        %v373 = vpop.f32.mrb[0].mxu0
        %v374 = vpop.f32.mrb[0].mxu0
        %v375 = vpop.f32.mrb[0].mxu0
        %376 = vdwg.mxu0
        %s377 = scalar_lea.vmem %s1, 4
        %v378 = vld [vmem:[%s377] sm:$0x3]
        %v380 = vrot.slane %v273, 1
        %v382 = vsel %vm283, %v380, 0
        %v385 = vsel %vm287, %v378, 0
        %387 = vmatprep.subr.bf16.mxu0 0
        %388 = vmatpush1.bf16.msra.mxu0 %v385
        %389 = vmatprep.subr.bf16.mxu0 0
        %390 = vmatpush1.bf16.msra.mxu0 0
        %391 = vmatprep.subr.bf16.mxu0 0
        %392 = vmatpush1.bf16.msra.mxu0 0
        %393 = vmatprep.subr.bf16.mxu0 0
        %394 = vmatpush1.bf16.msra.mxu0 0
        %395 = vmatprep.subr.bf16.mxu0 0
        %396 = vmatpush1.bf16.msra.mxu0 0
        %397 = vmatprep.subr.bf16.mxu0 0
        %398 = vmatpush1.bf16.msra.mxu0 0
        %399 = vmatprep.subr.bf16.mxu0 0
        %400 = vmatpush1.bf16.msra.mxu0 0
        %401 = vmatprep.subr.bf16.mxu0 0
        %402 = vmatpush1.bf16.msra.mxu0 0
        %403 = vmatprep.subr.bf16.mxu0 0
        %404 = vmatpush1.bf16.msra.mxu0 0
        %405 = vmatprep.subr.bf16.mxu0 0
        %406 = vmatpush1.bf16.msra.mxu0 0
        %407 = vmatprep.subr.bf16.mxu0 0
        %408 = vmatpush1.bf16.msra.mxu0 0
        %409 = vmatprep.subr.bf16.mxu0 0
        %410 = vmatpush1.bf16.msra.mxu0 0
        %411 = vmatprep.subr.bf16.mxu0 0
        %412 = vmatpush1.bf16.msra.mxu0 0
        %413 = vmatprep.subr.bf16.mxu0 0
        %414 = vmatpush1.bf16.msra.mxu0 0
        %415 = vmatprep.subr.bf16.mxu0 0
        %416 = vmatpush1.bf16.msra.mxu0 0
        %417 = vmatprep.subr.bf16.mxu0 0
        %418 = vmatpush1.bf16.msra.mxu0 0
        %419 = vmatprep.mubr.bf16.mxu0 0
        %420 = vmatmul.mubr.bf16.gmra.mrb[0].mxu0 %v382
        %v421 = vpop.f32.mrb[0].mxu0
        %v422 = vadd.f32 0.0, %v421
        %v423 = vpop.f32.mrb[0].mxu0
        %v424 = vpop.f32.mrb[0].mxu0
        %v425 = vpop.f32.mrb[0].mxu0
        %426 = vdwg.mxu0
        %v427 = vadd.f32 %v372, %v422
        %s428 = scalar_lea.vmem %s1, 6
        %v429 = vld [vmem:[%s428] sm:$0x3]
        %v430 = vrot.slane %v277, 1
        %v431 = vrot.slane %v279, 2
        %v432 = vor.u32 %v430, %v431
        %v434 = vsel %vm283, %v432, 0
        %v437 = vsel %vm287, %v429, 0
        %439 = vmatprep.subr.bf16.mxu0 0
        %440 = vmatpush1.bf16.msra.mxu0 %v437
        %441 = vmatprep.subr.bf16.mxu0 0
        %442 = vmatpush1.bf16.msra.mxu0 0
        %443 = vmatprep.subr.bf16.mxu0 0
        %444 = vmatpush1.bf16.msra.mxu0 0
        %445 = vmatprep.subr.bf16.mxu0 0
        %446 = vmatpush1.bf16.msra.mxu0 0
        %447 = vmatprep.subr.bf16.mxu0 0
        %448 = vmatpush1.bf16.msra.mxu0 0
        %449 = vmatprep.subr.bf16.mxu0 0
        %450 = vmatpush1.bf16.msra.mxu0 0
        %451 = vmatprep.subr.bf16.mxu0 0
        %452 = vmatpush1.bf16.msra.mxu0 0
        %453 = vmatprep.subr.bf16.mxu0 0
        %454 = vmatpush1.bf16.msra.mxu0 0
        %455 = vmatprep.subr.bf16.mxu0 0
        %456 = vmatpush1.bf16.msra.mxu0 0
        %457 = vmatprep.subr.bf16.mxu0 0
        %458 = vmatpush1.bf16.msra.mxu0 0
        %459 = vmatprep.subr.bf16.mxu0 0
        %460 = vmatpush1.bf16.msra.mxu0 0
        %461 = vmatprep.subr.bf16.mxu0 0
        %462 = vmatpush1.bf16.msra.mxu0 0
        %463 = vmatprep.subr.bf16.mxu0 0
        %464 = vmatpush1.bf16.msra.mxu0 0
        %465 = vmatprep.subr.bf16.mxu0 0
        %466 = vmatpush1.bf16.msra.mxu0 0
        %467 = vmatprep.subr.bf16.mxu0 0
        %468 = vmatpush1.bf16.msra.mxu0 0
        %469 = vmatprep.subr.bf16.mxu0 0
        %470 = vmatpush1.bf16.msra.mxu0 0
        %471 = vmatprep.mubr.bf16.mxu0 0
        %472 = vmatmul.mubr.bf16.gmra.mrb[0].mxu0 %v434
        %v473 = vpop.f32.mrb[0].mxu0
        %v474 = vadd.f32 0.0, %v473
        %v475 = vpop.f32.mrb[0].mxu0
        %v476 = vpop.f32.mrb[0].mxu0
        %v477 = vpop.f32.mrb[0].mxu0
        %478 = vdwg.mxu0
        %v479 = vadd.f32 %v427, %v474
        %s480 = scalar_lea.vmem %s1, 8
        %v481 = vld [vmem:[%s480] sm:$0x3]
        %v482 = vrot.slane %v273, 2
        %v484 = vsel %vm283, %v482, 0
        %v487 = vsel %vm287, %v481, 0
        %489 = vmatprep.subr.bf16.mxu0 0
        %490 = vmatpush1.bf16.msra.mxu0 %v487
        %491 = vmatprep.subr.bf16.mxu0 0
        %492 = vmatpush1.bf16.msra.mxu0 0
        %493 = vmatprep.subr.bf16.mxu0 0
        %494 = vmatpush1.bf16.msra.mxu0 0
        %495 = vmatprep.subr.bf16.mxu0 0
        %496 = vmatpush1.bf16.msra.mxu0 0
        %497 = vmatprep.subr.bf16.mxu0 0
        %498 = vmatpush1.bf16.msra.mxu0 0
        %499 = vmatprep.subr.bf16.mxu0 0
        %500 = vmatpush1.bf16.msra.mxu0 0
        %501 = vmatprep.subr.bf16.mxu0 0
        %502 = vmatpush1.bf16.msra.mxu0 0
        %503 = vmatprep.subr.bf16.mxu0 0
        %504 = vmatpush1.bf16.msra.mxu0 0
        %505 = vmatprep.subr.bf16.mxu0 0
        %506 = vmatpush1.bf16.msra.mxu0 0
        %507 = vmatprep.subr.bf16.mxu0 0
        %508 = vmatpush1.bf16.msra.mxu0 0
        %509 = vmatprep.subr.bf16.mxu0 0
        %510 = vmatpush1.bf16.msra.mxu0 0
        %511 = vmatprep.subr.bf16.mxu0 0
        %512 = vmatpush1.bf16.msra.mxu0 0
        %513 = vmatprep.subr.bf16.mxu0 0
        %514 = vmatpush1.bf16.msra.mxu0 0
        %515 = vmatprep.subr.bf16.mxu0 0
        %516 = vmatpush1.bf16.msra.mxu0 0
        %517 = vmatprep.subr.bf16.mxu0 0
        %518 = vmatpush1.bf16.msra.mxu0 0
        %519 = vmatprep.subr.bf16.mxu0 0
        %520 = vmatpush1.bf16.msra.mxu0 0
        %521 = vmatprep.mubr.bf16.mxu0 0
        %522 = vmatmul.mubr.bf16.gmra.mrb[0].mxu0 %v484
        %v523 = vpop.f32.mrb[0].mxu0
        %v524 = vadd.f32 0.0, %v523
        %v525 = vpop.f32.mrb[0].mxu0
        %v526 = vpop.f32.mrb[0].mxu0
        %v527 = vpop.f32.mrb[0].mxu0
        %528 = vdwg.mxu0
        %v529 = vadd.f32 %v479, %v524
        %s530 = scalar_lea.vmem %s1, 10
        %v531 = vld [vmem:[%s530] sm:$0x3]
        %v532 = vrot.slane %v277, 2
        %v533 = vrot.slane %v279, 3
        %v534 = vor.u32 %v532, %v533
        %v536 = vsel %vm283, %v534, 0
        %v539 = vsel %vm287, %v531, 0
        %541 = vmatprep.subr.bf16.mxu0 0
        %542 = vmatpush1.bf16.msra.mxu0 %v539
        %543 = vmatprep.subr.bf16.mxu0 0
        %544 = vmatpush1.bf16.msra.mxu0 0
        %545 = vmatprep.subr.bf16.mxu0 0
        %546 = vmatpush1.bf16.msra.mxu0 0
        %547 = vmatprep.subr.bf16.mxu0 0
        %548 = vmatpush1.bf16.msra.mxu0 0
        %549 = vmatprep.subr.bf16.mxu0 0
        %550 = vmatpush1.bf16.msra.mxu0 0
        %551 = vmatprep.subr.bf16.mxu0 0
        %552 = vmatpush1.bf16.msra.mxu0 0
        %553 = vmatprep.subr.bf16.mxu0 0
        %554 = vmatpush1.bf16.msra.mxu0 0
        %555 = vmatprep.subr.bf16.mxu0 0
        %556 = vmatpush1.bf16.msra.mxu0 0
        %557 = vmatprep.subr.bf16.mxu0 0
        %558 = vmatpush1.bf16.msra.mxu0 0
        %559 = vmatprep.subr.bf16.mxu0 0
        %560 = vmatpush1.bf16.msra.mxu0 0
        %561 = vmatprep.subr.bf16.mxu0 0
        %562 = vmatpush1.bf16.msra.mxu0 0
        %563 = vmatprep.subr.bf16.mxu0 0
        %564 = vmatpush1.bf16.msra.mxu0 0
        %565 = vmatprep.subr.bf16.mxu0 0
        %566 = vmatpush1.bf16.msra.mxu0 0
        %567 = vmatprep.subr.bf16.mxu0 0
        %568 = vmatpush1.bf16.msra.mxu0 0
        %569 = vmatprep.subr.bf16.mxu0 0
        %570 = vmatpush1.bf16.msra.mxu0 0
        %571 = vmatprep.subr.bf16.mxu0 0
        %572 = vmatpush1.bf16.msra.mxu0 0
        %573 = vmatprep.mubr.bf16.mxu0 0
        %574 = vmatmul.mubr.bf16.gmra.mrb[0].mxu0 %v536
        %v575 = vpop.f32.mrb[0].mxu0
        %v576 = vadd.f32 0.0, %v575
        %v577 = vpop.f32.mrb[0].mxu0
        %v578 = vpop.f32.mrb[0].mxu0
        %v579 = vpop.f32.mrb[0].mxu0
        %580 = vdwg.mxu0
        %v581 = vadd.f32 %v529, %v576
        %s582 = scalar_lea.vmem %s1, 12
        %v583 = vld [vmem:[%s582] sm:$0x3]
        %v584 = vrot.slane %v273, 3
        %v586 = vsel %vm283, %v584, 0
        %v589 = vsel %vm287, %v583, 0
        %591 = vmatprep.subr.bf16.mxu0 0
        %592 = vmatpush1.bf16.msra.mxu0 %v589
        %593 = vmatprep.subr.bf16.mxu0 0
        %594 = vmatpush1.bf16.msra.mxu0 0
        %595 = vmatprep.subr.bf16.mxu0 0
        %596 = vmatpush1.bf16.msra.mxu0 0
        %597 = vmatprep.subr.bf16.mxu0 0
        %598 = vmatpush1.bf16.msra.mxu0 0
        %599 = vmatprep.subr.bf16.mxu0 0
        %600 = vmatpush1.bf16.msra.mxu0 0
        %601 = vmatprep.subr.bf16.mxu0 0
        %602 = vmatpush1.bf16.msra.mxu0 0
        %603 = vmatprep.subr.bf16.mxu0 0
        %604 = vmatpush1.bf16.msra.mxu0 0
        %605 = vmatprep.subr.bf16.mxu0 0
        %606 = vmatpush1.bf16.msra.mxu0 0
        %607 = vmatprep.subr.bf16.mxu0 0
        %608 = vmatpush1.bf16.msra.mxu0 0
        %609 = vmatprep.subr.bf16.mxu0 0
        %610 = vmatpush1.bf16.msra.mxu0 0
        %611 = vmatprep.subr.bf16.mxu0 0
        %612 = vmatpush1.bf16.msra.mxu0 0
        %613 = vmatprep.subr.bf16.mxu0 0
        %614 = vmatpush1.bf16.msra.mxu0 0
        %615 = vmatprep.subr.bf16.mxu0 0
        %616 = vmatpush1.bf16.msra.mxu0 0
        %617 = vmatprep.subr.bf16.mxu0 0
        %618 = vmatpush1.bf16.msra.mxu0 0
        %619 = vmatprep.subr.bf16.mxu0 0
        %620 = vmatpush1.bf16.msra.mxu0 0
        %621 = vmatprep.subr.bf16.mxu0 0
        %622 = vmatpush1.bf16.msra.mxu0 0
        %623 = vmatprep.mubr.bf16.mxu0 0
        %624 = vmatmul.mubr.bf16.gmra.mrb[0].mxu0 %v586
        %v625 = vpop.f32.mrb[0].mxu0
        %v626 = vadd.f32 0.0, %v625
        %v627 = vpop.f32.mrb[0].mxu0
        %v628 = vpop.f32.mrb[0].mxu0
        %v629 = vpop.f32.mrb[0].mxu0
        %630 = vdwg.mxu0
        %v631 = vadd.f32 %v581, %v626
        %s632 = scalar_lea.vmem %s1, 14
        %v633 = vld [vmem:[%s632] sm:$0x3]
        %v634 = vrot.slane %v277, 3
        %v635 = vrot.slane %v279, 4
        %v636 = vor.u32 %v634, %v635
        %v638 = vsel %vm283, %v636, 0
        %v641 = vsel %vm287, %v633, 0
        %643 = vmatprep.subr.bf16.mxu0 0
        %644 = vmatpush1.bf16.msra.mxu0 %v641
        %645 = vmatprep.subr.bf16.mxu0 0
        %646 = vmatpush1.bf16.msra.mxu0 0
        %647 = vmatprep.subr.bf16.mxu0 0
        %648 = vmatpush1.bf16.msra.mxu0 0
        %649 = vmatprep.subr.bf16.mxu0 0
        %650 = vmatpush1.bf16.msra.mxu0 0
        %651 = vmatprep.subr.bf16.mxu0 0
        %652 = vmatpush1.bf16.msra.mxu0 0
        %653 = vmatprep.subr.bf16.mxu0 0
        %654 = vmatpush1.bf16.msra.mxu0 0
        %655 = vmatprep.subr.bf16.mxu0 0
        %656 = vmatpush1.bf16.msra.mxu0 0
        %657 = vmatprep.subr.bf16.mxu0 0
        %658 = vmatpush1.bf16.msra.mxu0 0
        %659 = vmatprep.subr.bf16.mxu0 0
        %660 = vmatpush1.bf16.msra.mxu0 0
        %661 = vmatprep.subr.bf16.mxu0 0
        %662 = vmatpush1.bf16.msra.mxu0 0
        %663 = vmatprep.subr.bf16.mxu0 0
        %664 = vmatpush1.bf16.msra.mxu0 0
        %665 = vmatprep.subr.bf16.mxu0 0
        %666 = vmatpush1.bf16.msra.mxu0 0
        %667 = vmatprep.subr.bf16.mxu0 0
        %668 = vmatpush1.bf16.msra.mxu0 0
        %669 = vmatprep.subr.bf16.mxu0 0
        %670 = vmatpush1.bf16.msra.mxu0 0
        %671 = vmatprep.subr.bf16.mxu0 0
        %672 = vmatpush1.bf16.msra.mxu0 0
        %673 = vmatprep.subr.bf16.mxu0 0
        %674 = vmatpush1.bf16.msra.mxu0 0
        %675 = vmatprep.mubr.bf16.mxu0 0
        %676 = vmatmul.mubr.bf16.gmra.mrb[0].mxu0 %v638
        %v677 = vpop.f32.mrb[0].mxu0
        %v678 = vadd.f32 0.0, %v677
        %v679 = vpop.f32.mrb[0].mxu0
        %v680 = vpop.f32.mrb[0].mxu0
        %v681 = vpop.f32.mrb[0].mxu0
        %682 = vdwg.mxu0
        %v683 = vadd.f32 %v631, %v678
        %v684 = vpack.c.bf16 %v269, %v269
        %s685 = scalar_lea.vmem %s1, 16
        %v686 = vld [vmem:[%s685] sm:$0x3]
        %v688 = vsel %vm283, %v684, 0
        %v691 = vsel %vm287, %v686, 0
        %693 = vmatprep.subr.bf16.mxu0 0
        %694 = vmatpush1.bf16.msra.mxu0 %v691
        %695 = vmatprep.subr.bf16.mxu0 0
        %696 = vmatpush1.bf16.msra.mxu0 0
        %697 = vmatprep.subr.bf16.mxu0 0
        %698 = vmatpush1.bf16.msra.mxu0 0
        %699 = vmatprep.subr.bf16.mxu0 0
        %700 = vmatpush1.bf16.msra.mxu0 0
        %701 = vmatprep.subr.bf16.mxu0 0
        %702 = vmatpush1.bf16.msra.mxu0 0
        %703 = vmatprep.subr.bf16.mxu0 0
        %704 = vmatpush1.bf16.msra.mxu0 0
        %705 = vmatprep.subr.bf16.mxu0 0
        %706 = vmatpush1.bf16.msra.mxu0 0
        %707 = vmatprep.subr.bf16.mxu0 0
        %708 = vmatpush1.bf16.msra.mxu0 0
        %709 = vmatprep.subr.bf16.mxu0 0
        %710 = vmatpush1.bf16.msra.mxu0 0
        %711 = vmatprep.subr.bf16.mxu0 0
        %712 = vmatpush1.bf16.msra.mxu0 0
        %713 = vmatprep.subr.bf16.mxu0 0
        %714 = vmatpush1.bf16.msra.mxu0 0
        %715 = vmatprep.subr.bf16.mxu0 0
        %716 = vmatpush1.bf16.msra.mxu0 0
        %717 = vmatprep.subr.bf16.mxu0 0
        %718 = vmatpush1.bf16.msra.mxu0 0
        %719 = vmatprep.subr.bf16.mxu0 0
        %720 = vmatpush1.bf16.msra.mxu0 0
        %721 = vmatprep.subr.bf16.mxu0 0
        %722 = vmatpush1.bf16.msra.mxu0 0
        %723 = vmatprep.subr.bf16.mxu0 0
        %724 = vmatpush1.bf16.msra.mxu0 0
        %725 = vmatprep.mubr.bf16.mxu0 0
        %726 = vmatmul.mubr.bf16.gmra.mrb[0].mxu0 %v688
        %v727 = vpop.f32.mrb[0].mxu0
        %v728 = vadd.f32 0.0, %v727
        %v729 = vpop.f32.mrb[0].mxu0
        %v730 = vpop.f32.mrb[0].mxu0
        %v731 = vpop.f32.mrb[0].mxu0
        %732 = vdwg.mxu0
        %v733 = vadd.f32 %v683, %v728
        %v734 = vpack.c.bf16 %v270, %v269
        %s735 = scalar_lea.vmem %s1, 18
        %v736 = vld [vmem:[%s735] sm:$0x3]
        %v738 = vshrl.u32 %v734, 16
        %v740 = vshll.u32 %v734, 16
        %v742 = vrot.slane %v740, 1
        %v743 = vor.u32 %v738, %v742
        %v745 = vsel %vm283, %v743, 0
        %v748 = vsel %vm287, %v736, 0
        %750 = vmatprep.subr.bf16.mxu0 0
        %751 = vmatpush1.bf16.msra.mxu0 %v748
        %752 = vmatprep.subr.bf16.mxu0 0
        %753 = vmatpush1.bf16.msra.mxu0 0
        %754 = vmatprep.subr.bf16.mxu0 0
        %755 = vmatpush1.bf16.msra.mxu0 0
        %756 = vmatprep.subr.bf16.mxu0 0
        %757 = vmatpush1.bf16.msra.mxu0 0
        %758 = vmatprep.subr.bf16.mxu0 0
        %759 = vmatpush1.bf16.msra.mxu0 0
        %760 = vmatprep.subr.bf16.mxu0 0
        %761 = vmatpush1.bf16.msra.mxu0 0
        %762 = vmatprep.subr.bf16.mxu0 0
        %763 = vmatpush1.bf16.msra.mxu0 0
        %764 = vmatprep.subr.bf16.mxu0 0
        %765 = vmatpush1.bf16.msra.mxu0 0
        %766 = vmatprep.subr.bf16.mxu0 0
        %767 = vmatpush1.bf16.msra.mxu0 0
        %768 = vmatprep.subr.bf16.mxu0 0
        %769 = vmatpush1.bf16.msra.mxu0 0
        %770 = vmatprep.subr.bf16.mxu0 0
        %771 = vmatpush1.bf16.msra.mxu0 0
        %772 = vmatprep.subr.bf16.mxu0 0
        %773 = vmatpush1.bf16.msra.mxu0 0
        %774 = vmatprep.subr.bf16.mxu0 0
        %775 = vmatpush1.bf16.msra.mxu0 0
        %776 = vmatprep.subr.bf16.mxu0 0
        %777 = vmatpush1.bf16.msra.mxu0 0
        %778 = vmatprep.subr.bf16.mxu0 0
        %779 = vmatpush1.bf16.msra.mxu0 0
        %780 = vmatprep.subr.bf16.mxu0 0
        %781 = vmatpush1.bf16.msra.mxu0 0
        %782 = vmatprep.mubr.bf16.mxu0 0
        %783 = vmatmul.mubr.bf16.gmra.mrb[0].mxu0 %v745
        %v784 = vpop.f32.mrb[0].mxu0
        %v785 = vadd.f32 0.0, %v784
        %v786 = vpop.f32.mrb[0].mxu0
        %v787 = vpop.f32.mrb[0].mxu0
        %v788 = vpop.f32.mrb[0].mxu0
        %789 = vdwg.mxu0
        %v790 = vadd.f32 %v733, %v785
        %s791 = scalar_lea.vmem %s1, 20
        %v792 = vld [vmem:[%s791] sm:$0x3]
        %v794 = vrot.slane %v734, 1
        %v796 = vsel %vm283, %v794, 0
        %v799 = vsel %vm287, %v792, 0
        %801 = vmatprep.subr.bf16.mxu0 0
        %802 = vmatpush1.bf16.msra.mxu0 %v799
        %803 = vmatprep.subr.bf16.mxu0 0
        %804 = vmatpush1.bf16.msra.mxu0 0
        %805 = vmatprep.subr.bf16.mxu0 0
        %806 = vmatpush1.bf16.msra.mxu0 0
        %807 = vmatprep.subr.bf16.mxu0 0
        %808 = vmatpush1.bf16.msra.mxu0 0
        %809 = vmatprep.subr.bf16.mxu0 0
        %810 = vmatpush1.bf16.msra.mxu0 0
        %811 = vmatprep.subr.bf16.mxu0 0
        %812 = vmatpush1.bf16.msra.mxu0 0
        %813 = vmatprep.subr.bf16.mxu0 0
        %814 = vmatpush1.bf16.msra.mxu0 0
        %815 = vmatprep.subr.bf16.mxu0 0
        %816 = vmatpush1.bf16.msra.mxu0 0
        %817 = vmatprep.subr.bf16.mxu0 0
        %818 = vmatpush1.bf16.msra.mxu0 0
        %819 = vmatprep.subr.bf16.mxu0 0
        %820 = vmatpush1.bf16.msra.mxu0 0
        %821 = vmatprep.subr.bf16.mxu0 0
        %822 = vmatpush1.bf16.msra.mxu0 0
        %823 = vmatprep.subr.bf16.mxu0 0
        %824 = vmatpush1.bf16.msra.mxu0 0
        %825 = vmatprep.subr.bf16.mxu0 0
        %826 = vmatpush1.bf16.msra.mxu0 0
        %827 = vmatprep.subr.bf16.mxu0 0
        %828 = vmatpush1.bf16.msra.mxu0 0
        %829 = vmatprep.subr.bf16.mxu0 0
        %830 = vmatpush1.bf16.msra.mxu0 0
        %831 = vmatprep.subr.bf16.mxu0 0
        %832 = vmatpush1.bf16.msra.mxu0 0
        %833 = vmatprep.mubr.bf16.mxu0 0
        %834 = vmatmul.mubr.bf16.gmra.mrb[0].mxu0 %v796
        %v835 = vpop.f32.mrb[0].mxu0
        %v836 = vadd.f32 0.0, %v835
        %v837 = vpop.f32.mrb[0].mxu0
        %v838 = vpop.f32.mrb[0].mxu0
        %v839 = vpop.f32.mrb[0].mxu0
        %840 = vdwg.mxu0
        %v841 = vadd.f32 %v790, %v836
        %s842 = scalar_lea.vmem %s1, 22
        %v843 = vld [vmem:[%s842] sm:$0x3]
        %v844 = vrot.slane %v738, 1
        %v845 = vrot.slane %v740, 2
        %v846 = vor.u32 %v844, %v845
        %v848 = vsel %vm283, %v846, 0
        %v851 = vsel %vm287, %v843, 0
        %853 = vmatprep.subr.bf16.mxu0 0
        %854 = vmatpush1.bf16.msra.mxu0 %v851
        %855 = vmatprep.subr.bf16.mxu0 0
        %856 = vmatpush1.bf16.msra.mxu0 0
        %857 = vmatprep.subr.bf16.mxu0 0
        %858 = vmatpush1.bf16.msra.mxu0 0
        %859 = vmatprep.subr.bf16.mxu0 0
        %860 = vmatpush1.bf16.msra.mxu0 0
        %861 = vmatprep.subr.bf16.mxu0 0
        %862 = vmatpush1.bf16.msra.mxu0 0
        %863 = vmatprep.subr.bf16.mxu0 0
        %864 = vmatpush1.bf16.msra.mxu0 0
        %865 = vmatprep.subr.bf16.mxu0 0
        %866 = vmatpush1.bf16.msra.mxu0 0
        %867 = vmatprep.subr.bf16.mxu0 0
        %868 = vmatpush1.bf16.msra.mxu0 0
        %869 = vmatprep.subr.bf16.mxu0 0
        %870 = vmatpush1.bf16.msra.mxu0 0
        %871 = vmatprep.subr.bf16.mxu0 0
        %872 = vmatpush1.bf16.msra.mxu0 0
        %873 = vmatprep.subr.bf16.mxu0 0
        %874 = vmatpush1.bf16.msra.mxu0 0
        %875 = vmatprep.subr.bf16.mxu0 0
        %876 = vmatpush1.bf16.msra.mxu0 0
        %877 = vmatprep.subr.bf16.mxu0 0
        %878 = vmatpush1.bf16.msra.mxu0 0
        %879 = vmatprep.subr.bf16.mxu0 0
        %880 = vmatpush1.bf16.msra.mxu0 0
        %881 = vmatprep.subr.bf16.mxu0 0
        %882 = vmatpush1.bf16.msra.mxu0 0
        %883 = vmatprep.subr.bf16.mxu0 0
        %884 = vmatpush1.bf16.msra.mxu0 0
        %885 = vmatprep.mubr.bf16.mxu0 0
        %886 = vmatmul.mubr.bf16.gmra.mrb[0].mxu0 %v848
        %v887 = vpop.f32.mrb[0].mxu0
        %v888 = vadd.f32 0.0, %v887
        %v889 = vpop.f32.mrb[0].mxu0
        %v890 = vpop.f32.mrb[0].mxu0
        %v891 = vpop.f32.mrb[0].mxu0
        %892 = vdwg.mxu0
        %v893 = vadd.f32 %v841, %v888
        %s894 = scalar_lea.vmem %s1, 24
        %v895 = vld [vmem:[%s894] sm:$0x3]
        %v896 = vrot.slane %v734, 2
        %v898 = vsel %vm283, %v896, 0
        %v901 = vsel %vm287, %v895, 0
        %903 = vmatprep.subr.bf16.mxu0 0
        %904 = vmatpush1.bf16.msra.mxu0 %v901
        %905 = vmatprep.subr.bf16.mxu0 0
        %906 = vmatpush1.bf16.msra.mxu0 0
        %907 = vmatprep.subr.bf16.mxu0 0
        %908 = vmatpush1.bf16.msra.mxu0 0
        %909 = vmatprep.subr.bf16.mxu0 0
        %910 = vmatpush1.bf16.msra.mxu0 0
        %911 = vmatprep.subr.bf16.mxu0 0
        %912 = vmatpush1.bf16.msra.mxu0 0
        %913 = vmatprep.subr.bf16.mxu0 0
        %914 = vmatpush1.bf16.msra.mxu0 0
        %915 = vmatprep.subr.bf16.mxu0 0
        %916 = vmatpush1.bf16.msra.mxu0 0
        %917 = vmatprep.subr.bf16.mxu0 0
        %918 = vmatpush1.bf16.msra.mxu0 0
        %919 = vmatprep.subr.bf16.mxu0 0
        %920 = vmatpush1.bf16.msra.mxu0 0
        %921 = vmatprep.subr.bf16.mxu0 0
        %922 = vmatpush1.bf16.msra.mxu0 0
        %923 = vmatprep.subr.bf16.mxu0 0
        %924 = vmatpush1.bf16.msra.mxu0 0
        %925 = vmatprep.subr.bf16.mxu0 0
        %926 = vmatpush1.bf16.msra.mxu0 0
        %927 = vmatprep.subr.bf16.mxu0 0
        %928 = vmatpush1.bf16.msra.mxu0 0
        %929 = vmatprep.subr.bf16.mxu0 0
        %930 = vmatpush1.bf16.msra.mxu0 0
        %931 = vmatprep.subr.bf16.mxu0 0
        %932 = vmatpush1.bf16.msra.mxu0 0
        %933 = vmatprep.subr.bf16.mxu0 0
        %934 = vmatpush1.bf16.msra.mxu0 0
        %935 = vmatprep.mubr.bf16.mxu0 0
        %936 = vmatmul.mubr.bf16.gmra.mrb[0].mxu0 %v898
        %v937 = vpop.f32.mrb[0].mxu0
        %v938 = vadd.f32 0.0, %v937
        %v939 = vpop.f32.mrb[0].mxu0
        %v940 = vpop.f32.mrb[0].mxu0
        %v941 = vpop.f32.mrb[0].mxu0
        %942 = vdwg.mxu0
        %v943 = vadd.f32 %v893, %v938
        %v944 = vld [vmem:[%s2] sm:$0x1]
        %v946 = vlaneseq
        %v947 = vshrl.u32 %v946, 7
        %v948 = vsub.s32 0, %v947
        %v949 = vrot.slane %v944, %v948
        %v951 = vadd.f32 %v943, %v949
        %v952 = vmax.f32 %v951, 0.0
        %v953 = vld [vmem:[%s3] sm:$0xf]
        %v954 = vpack.c.bf16 %v952, %v952
        %v955 = vld [vmem:[#allocation2] sm:$0xff]
        %v956 = vld [vmem:[#allocation2 + $0x8] sm:$0xff]
        %v957 = vld [vmem:[#allocation2 + $0x10] sm:$0xff]
        %v958 = vld [vmem:[#allocation2 + $0x18] sm:$0xff]
        %v959 = vld [vmem:[#allocation2 + $0x20] sm:$0xff]
        %v960 = vld [vmem:[#allocation2 + $0x28] sm:$0xff]
        %v961 = vld [vmem:[#allocation2 + $0x30] sm:$0xff]
        %v962 = vld [vmem:[#allocation2 + $0x38] sm:$0xff]
        %v963 = vld [vmem:[#allocation2 + $0x40] sm:$0xff]
        %v964 = vld [vmem:[#allocation2 + $0x48] sm:$0xff]
        %v965 = vld [vmem:[#allocation2 + $0x50] sm:$0xff]
        %v966 = vld [vmem:[#allocation2 + $0x58] sm:$0xff]
        %v967 = vld [vmem:[#allocation2 + $0x60] sm:$0xff]
        %v968 = vld [vmem:[#allocation2 + $0x68] sm:$0xff]
        %v969 = vld [vmem:[#allocation2 + $0x70] sm:$0xff]
        %v970 = vld [vmem:[#allocation2 + $0x78] sm:$0xff]
        %v987 = vunpack.c.l.b16 %v955
        %v988 = vunpack.c.h.b16 %v955
        %v989 = vunpack.c.l.b16 %v956
        %v990 = vunpack.c.h.b16 %v956
        %v991 = vunpack.c.l.b16 %v957
        %v992 = vunpack.c.h.b16 %v957
        %v993 = vunpack.c.l.b16 %v958
        %v994 = vunpack.c.h.b16 %v958
        %v995 = vunpack.c.l.b16 %v959
        %v996 = vunpack.c.h.b16 %v959
        %v997 = vunpack.c.l.b16 %v960
        %v998 = vunpack.c.h.b16 %v960
        %v999 = vunpack.c.l.b16 %v961
        %v1000 = vunpack.c.h.b16 %v961
        %v1001 = vunpack.c.l.b16 %v962
        %v1002 = vunpack.c.h.b16 %v962
        %v1003 = vunpack.c.l.b16 %v963
        %v1004 = vunpack.c.h.b16 %v963
        %v1005 = vunpack.c.l.b16 %v964
        %v1006 = vunpack.c.h.b16 %v964
        %v1007 = vunpack.c.l.b16 %v965
        %v1008 = vunpack.c.h.b16 %v965
        %v1009 = vunpack.c.l.b16 %v966
        %v1010 = vunpack.c.h.b16 %v966
        %v1011 = vunpack.c.l.b16 %v967
        %v1012 = vunpack.c.h.b16 %v967
        %v1013 = vunpack.c.l.b16 %v968
        %v1014 = vunpack.c.h.b16 %v968
        %v1015 = vunpack.c.l.b16 %v969
        %v1016 = vunpack.c.h.b16 %v969
        %v1017 = vunpack.c.l.b16 %v970
        %v1018 = vunpack.c.h.b16 %v970
        %v1019 = vpack.c.b16 %v989, %v987
        %v1020 = vpack.c.b16 %v990, %v988
        %v1021 = vpack.c.b16 %v993, %v991
        %v1022 = vpack.c.b16 %v994, %v992
        %v1023 = vpack.c.b16 %v997, %v995
        %v1024 = vpack.c.b16 %v998, %v996
        %v1025 = vpack.c.b16 %v1001, %v999
        %v1026 = vpack.c.b16 %v1002, %v1000
        %v1027 = vpack.c.b16 %v1005, %v1003
        %v1028 = vpack.c.b16 %v1006, %v1004
        %v1029 = vpack.c.b16 %v1009, %v1007
        %v1030 = vpack.c.b16 %v1010, %v1008
        %v1031 = vpack.c.b16 %v1013, %v1011
        %v1032 = vpack.c.b16 %v1014, %v1012
        %v1033 = vpack.c.b16 %v1017, %v1015
        %v1034 = vpack.c.b16 %v1018, %v1016
        %1051 = vmatprep.subr.bf16.mxu0 %v1020
        %1052 = vmatpush1.bf16.msra.mxu0 %v1019
        %1053 = vmatprep.subr.bf16.mxu0 %v1022
        %1054 = vmatpush1.bf16.msra.mxu0 %v1021
        %1055 = vmatprep.subr.bf16.mxu0 %v1024
        %1056 = vmatpush1.bf16.msra.mxu0 %v1023
        %1057 = vmatprep.subr.bf16.mxu0 %v1026
        %1058 = vmatpush1.bf16.msra.mxu0 %v1025
        %1059 = vmatprep.subr.bf16.mxu0 %v1028
        %1060 = vmatpush1.bf16.msra.mxu0 %v1027
        %1061 = vmatprep.subr.bf16.mxu0 %v1030
        %1062 = vmatpush1.bf16.msra.mxu0 %v1029
        %1063 = vmatprep.subr.bf16.mxu0 %v1032
        %1064 = vmatpush1.bf16.msra.mxu0 %v1031
        %1065 = vmatprep.subr.bf16.mxu0 %v1034
        %1066 = vmatpush1.bf16.msra.mxu0 %v1033
        %1067 = vmatprep.subr.bf16.mxu0 0
        %1068 = vmatpush1.bf16.msra.mxu0 0
        %1069 = vmatprep.subr.bf16.mxu0 0
        %1070 = vmatpush1.bf16.msra.mxu0 0
        %1071 = vmatprep.subr.bf16.mxu0 0
        %1072 = vmatpush1.bf16.msra.mxu0 0
        %1073 = vmatprep.subr.bf16.mxu0 0
        %1074 = vmatpush1.bf16.msra.mxu0 0
        %1075 = vmatprep.subr.bf16.mxu0 0
        %1076 = vmatpush1.bf16.msra.mxu0 0
        %1077 = vmatprep.subr.bf16.mxu0 0
        %1078 = vmatpush1.bf16.msra.mxu0 0
        %1079 = vmatprep.subr.bf16.mxu0 0
        %1080 = vmatpush1.bf16.msra.mxu0 0
        %1081 = vmatprep.subr.bf16.mxu0 0
        %1082 = vmatpush1.bf16.msra.mxu0 0
        %1083 = vmatprep.mubr.bf16.mxu0 0
        %1084 = vmatmul.mubr.bf16.gmra.mrb[0].mxu0 %v954
        %v1085 = vpop.f32.mrb[0].mxu0
        %v1086 = vadd.f32 0.0, %v1085
        %v1087 = vpop.f32.mrb[0].mxu0
        %v1088 = vadd.f32 0.0, %v1087
        %v1089 = vpop.f32.mrb[0].mxu0
        %v1090 = vpop.f32.mrb[0].mxu0
        %1091 = vdwg.mxu0
        %v1094 = vunpack.c.l.s4 1983009808
        %v1095 = vunpack.c.0.s8 %v1094
        %v1096 = vlaneseq
        %v1097 = vshrl.u32 %v1096, 7
        %v1098 = vsub.s32 %v1095, %v1097
        %v1099 = vrot.slane %v953, %v1098
        %v1100 = vcombine.high %v1099, %v1099
        %v1102 = vsel %vm287, %v1099, 0
        %v1105 = vsel %vm287, %v1100, 0
        %1107 = vmatprep.subr.bf16.mxu0 %v1105
        %1108 = vmatpush1.bf16.msra.mxu0 %v1102
        %1109 = vmatprep.subr.bf16.mxu0 0
        %1110 = vmatpush1.bf16.msra.mxu0 0
        %1111 = vmatprep.subr.bf16.mxu0 0
        %1112 = vmatpush1.bf16.msra.mxu0 0
        %1113 = vmatprep.subr.bf16.mxu0 0
        %1114 = vmatpush1.bf16.msra.mxu0 0
        %1115 = vmatprep.subr.bf16.mxu0 0
        %1116 = vmatpush1.bf16.msra.mxu0 0
        %1117 = vmatprep.subr.bf16.mxu0 0
        %1118 = vmatpush1.bf16.msra.mxu0 0
        %1119 = vmatprep.subr.bf16.mxu0 0
        %1120 = vmatpush1.bf16.msra.mxu0 0
        %1121 = vmatprep.subr.bf16.mxu0 0
        %1122 = vmatpush1.bf16.msra.mxu0 0
        %1123 = vmatprep.subr.bf16.mxu0 0
        %1124 = vmatpush1.bf16.msra.mxu0 0
        %1125 = vmatprep.subr.bf16.mxu0 0
        %1126 = vmatpush1.bf16.msra.mxu0 0
        %1127 = vmatprep.subr.bf16.mxu0 0
        %1128 = vmatpush1.bf16.msra.mxu0 0
        %1129 = vmatprep.subr.bf16.mxu0 0
        %1130 = vmatpush1.bf16.msra.mxu0 0
        %1131 = vmatprep.subr.bf16.mxu0 0
        %1132 = vmatpush1.bf16.msra.mxu0 0
        %1133 = vmatprep.subr.bf16.mxu0 0
        %1134 = vmatpush1.bf16.msra.mxu0 0
        %1135 = vmatprep.subr.bf16.mxu0 0
        %1136 = vmatpush1.bf16.msra.mxu0 0
        %1137 = vmatprep.subr.bf16.mxu0 0
        %1138 = vmatpush1.bf16.msra.mxu0 0
        %1139 = vmatprep.mubr.bf16.mxu0 0
        %1140 = vmatmul.mubr.bf16.gmra.mrb[0].mxu0 %v586
        %v1141 = vpop.f32.mrb[0].mxu0
        %v1142 = vadd.f32 %v1086, %v1141
        %v1143 = vpop.f32.mrb[0].mxu0
        %v1144 = vadd.f32 %v1088, %v1143
        %v1145 = vpop.f32.mrb[0].mxu0
        %v1146 = vpop.f32.mrb[0].mxu0
        %1147 = vdwg.mxu0
        %v1148 = vld [vmem:[%s5] sm:$0x3]
        %v1150 = vlaneseq
        %v1151 = vshrl.u32 %v1150, 7
        %v1152 = vsub.s32 0, %v1151
        %v1153 = vrot.slane %v1148, %v1152
        %v1154 = vlaneseq
        %v1155 = vshrl.u32 %v1154, 7
        %v1156 = vsub.s32 1, %v1155
        %v1157 = vrot.slane %v1148, %v1156
        %v1160 = vadd.f32 %v1142, %v1153
        %v1161 = vadd.f32 %v1144, %v1157
        %1162 = vst [vmem:[%s266] sm:$0xff] %v1160
        %1163 = vst [vmem:[%s266 + $0x8] sm:$0xff] %v1161
        %p1164 = scmp.lt.s32.totalorder %s18, 1
        %s1165 = scalar_select %p1164, %s18, 1
        %s1166 = smul.addr %s1165, 2
        %s1167 = smul.addr %s1166, 8
        %s1168 = scalar_lea.vmem %s6, %s1167
        // Predicated region
        $region49: #{cnn_rnn_ffnn_forward.2} parent=43 // pred_check
          %p1169 = pneg %p167
        $region50: #{cnn_rnn_ffnn_forward.2} parent=43 // pred_check_branch
          %1171 = sbr.rel (%p1169) target = $region52
        $region51: #{cnn_rnn_ffnn_forward.2} parent=43 // pred_region
          _
        $region52: #{cnn_rnn_ffnn_forward.2} parent=43 // pred_fallthru
          _
      $region44: #{cnn_rnn_ffnn_forward.2} parent=5 // pred_fallthru
        _
      %p1172 = scmp.le.s32.totalorder 2, %s13
      // Predicated region
      $region53: #{cnn_rnn_ffnn_forward.2} parent=5 // pred_check
        %p1173 = pneg %p1172
      $region54: #{cnn_rnn_ffnn_forward.2} parent=5 // pred_check_branch
        %1175 = sbr.rel (%p1173) target = $region56
      $region55: #{cnn_rnn_ffnn_forward.2} parent=5 // pred_region
        %s1176 = ssub.s32 %s13, 2
        // Predicated region
        $region57: #{cnn_rnn_ffnn_forward.2} parent=55 // pred_check
          %p1177 = pneg %p173
        $region58: #{cnn_rnn_ffnn_forward.2} parent=55 // pred_check_branch
          %1179 = sbr.rel (%p1177) target = $region60
        $region59: #{cnn_rnn_ffnn_forward.2} parent=55 // pred_region
          %p1180 = scmp.lt.s32.totalorder %s19, 1
          %s1181 = scalar_select %p1180, %s19, 1
          %s1182 = smul.addr %s1181, 2
          %s1183 = smul.addr %s1182, 8
          %s1184 = scalar_lea.vmem %s6, %s1183
        $region60: #{cnn_rnn_ffnn_forward.2} parent=55 // pred_fallthru
          _
      $region56: #{cnn_rnn_ffnn_forward.2} parent=5 // pred_fallthru
        _
    $region6: #{cnn_rnn_ffnn_forward.2} parent=1 // loop_footer
      %s17 = sadd.s32 1, %s13
    $region7: #{cnn_rnn_ffnn_forward.2} parent=1 // loop_footer_branch
      %12 = sbr.rel target = $region3
    $region8: #{cnn_rnn_ffnn_forward.2} parent=1 // loop_exit
      _
    %1185 = vsyncpa [#allocation3], 1
    %s1186 = scalar_lea.sflag [#allocation3], 1
    %1187 = vsyncpa %s1186, 1

// kernel: cnn_rnn_ffnn_forward.3
$region0: #{cnn_rnn_ffnn_forward.3}
  #allocation0 [shape = 'u32[]', space=smem, size = 0x4, offset = 0x4, fixed_abs, tag = 'smem constant byte address 0x4 - core index']
  #allocation1 [shape = 'u32[144,128]{1,0:T(1,128)}', space=vmem, size = 0x12000, scoped, tag = 'internal scratch']
  #allocation2 [shape = 'f32[1,1]{1,0:T(1,128)S(1)}', space=vmem, size = 0x200, scoped, tag = 'scoped memory for cnn_rnn_ffnn_forward.3']
  %s0 = inlined_call_operand.vmem [shape: f32[2,8,256], index: 0, kind: input, shape index: {}]
  %s1 = inlined_call_operand.vmem [shape: bf16[64,256], index: 1, kind: input, shape index: {}]
  %s2 = inlined_call_operand.vmem [shape: bf16[64,256], index: 2, kind: input, shape index: {}]
  %s3 = inlined_call_operand.vmem [shape: f32[1,256], index: 3, kind: input, shape index: {}]
  %s4 = inlined_call_operand.vmem [shape: bf16[64,256], index: 4, kind: input, shape index: {}]
  %s5 = inlined_call_operand.vmem [shape: bf16[64,16], index: 5, kind: input, shape index: {}]
  %s6 = inlined_call_operand.vmem [shape: f32[1,16], index: 6, kind: input, shape index: {}]
  %s7 = inlined_call_operand.vmem [shape: bf16[16,1], index: 7, kind: input, shape index: {}]
  %s8 = inlined_call_operand.<no memory space> [shape: f32[1,1], index: 8, kind: input, shape index: {}]
  %s9 = inlined_call_operand.vmem [shape: f32[2,1], index: 9, kind: output, shape index: {}]
  %s10 = sld [smem:[#allocation0]]
  $region46: #{cnn_rnn_ffnn_forward.3} parent=0
    _
  %s12 = ssub.s32 1, %s10
  %s13 = scalar_select 0, %s12, %s10
  %v14 = vstv %s8
  %15 = vst [vmem:[#allocation2] sm:$0x1] %v14
  // Predicated region
  $region2: #{cnn_rnn_ffnn_forward.3} parent=0 // pred_check
    _
  $region3: #{cnn_rnn_ffnn_forward.3} parent=0 // pred_check_branch
    %17 = sbr.rel (0) target = $region5
  $region4: #{cnn_rnn_ffnn_forward.3} parent=0 // pred_region
    _
  $region5: #{cnn_rnn_ffnn_forward.3} parent=0 // pred_fallthru
    _
  // Predicated region
  $region6: #{cnn_rnn_ffnn_forward.3} parent=0 // pred_check
    _
  $region7: #{cnn_rnn_ffnn_forward.3} parent=0 // pred_check_branch
    %19 = sbr.rel (0) target = $region9
  $region8: #{cnn_rnn_ffnn_forward.3} parent=0 // pred_region
    _
  $region9: #{cnn_rnn_ffnn_forward.3} parent=0 // pred_fallthru
    _
  // Predicated region
  $region10: #{cnn_rnn_ffnn_forward.3} parent=0 // pred_check
    _
  $region11: #{cnn_rnn_ffnn_forward.3} parent=0 // pred_check_branch
    %21 = sbr.rel (0) target = $region13
  $region12: #{cnn_rnn_ffnn_forward.3} parent=0 // pred_region
    _
  $region13: #{cnn_rnn_ffnn_forward.3} parent=0 // pred_fallthru
    _
  // Predicated region
  $region14: #{cnn_rnn_ffnn_forward.3} parent=0 // pred_check
    _
  $region15: #{cnn_rnn_ffnn_forward.3} parent=0 // pred_check_branch
    %23 = sbr.rel (0) target = $region17
  $region16: #{cnn_rnn_ffnn_forward.3} parent=0 // pred_region
    _
  $region17: #{cnn_rnn_ffnn_forward.3} parent=0 // pred_fallthru
    _
  // Predicated region
  $region18: #{cnn_rnn_ffnn_forward.3} parent=0 // pred_check
    _
  $region19: #{cnn_rnn_ffnn_forward.3} parent=0 // pred_check_branch
    %25 = sbr.rel (0) target = $region21
  $region20: #{cnn_rnn_ffnn_forward.3} parent=0 // pred_region
    _
  $region21: #{cnn_rnn_ffnn_forward.3} parent=0 // pred_fallthru
    _
  // Predicated region
  $region22: #{cnn_rnn_ffnn_forward.3} parent=0 // pred_check
    _
  $region23: #{cnn_rnn_ffnn_forward.3} parent=0 // pred_check_branch
    %27 = sbr.rel (0) target = $region25
  $region24: #{cnn_rnn_ffnn_forward.3} parent=0 // pred_region
    _
  $region25: #{cnn_rnn_ffnn_forward.3} parent=0 // pred_fallthru
    _
  // Predicated region
  $region26: #{cnn_rnn_ffnn_forward.3} parent=0 // pred_check
    _
  $region27: #{cnn_rnn_ffnn_forward.3} parent=0 // pred_check_branch
    %29 = sbr.rel (0) target = $region29
  $region28: #{cnn_rnn_ffnn_forward.3} parent=0 // pred_region
    _
  $region29: #{cnn_rnn_ffnn_forward.3} parent=0 // pred_fallthru
    _
  // Predicated region
  $region30: #{cnn_rnn_ffnn_forward.3} parent=0 // pred_check
    _
  $region31: #{cnn_rnn_ffnn_forward.3} parent=0 // pred_check_branch
    %31 = sbr.rel (0) target = $region33
  $region32: #{cnn_rnn_ffnn_forward.3} parent=0 // pred_region
    _
  $region33: #{cnn_rnn_ffnn_forward.3} parent=0 // pred_fallthru
    _
  // Predicated region
  $region34: #{cnn_rnn_ffnn_forward.3} parent=0 // pred_check
    _
  $region35: #{cnn_rnn_ffnn_forward.3} parent=0 // pred_check_branch
    %33 = sbr.rel (0) target = $region37
  $region36: #{cnn_rnn_ffnn_forward.3} parent=0 // pred_region
    _
  $region37: #{cnn_rnn_ffnn_forward.3} parent=0 // pred_fallthru
    _
  %v35 = vld [vmem:[%s0] sm:$0xff]
  %v36 = vld [vmem:[%s0 + $0x8] sm:$0xff]
  %s37 = scalar_lea.vmem %s0, 16
  %v38 = vld [vmem:[%s37] sm:$0xff]
  %v39 = vld [vmem:[%s37 + $0x8] sm:$0xff]
  %v40 = vld [vmem:[%s1] sm:$0xff]
  %v41 = vld [vmem:[%s1 + $0x8] sm:$0xff]
  %v42 = vld [vmem:[%s1 + $0x10] sm:$0xff]
  %v43 = vld [vmem:[%s1 + $0x18] sm:$0xff]
  %v44 = vld [vmem:[%s1 + $0x20] sm:$0xff]
  %v45 = vld [vmem:[%s1 + $0x28] sm:$0xff]
  %v46 = vld [vmem:[%s1 + $0x30] sm:$0xff]
  %v47 = vld [vmem:[%s1 + $0x38] sm:$0xff]
  %v56 = vunpack.c.l.b16 %v40
  %v57 = vunpack.c.h.b16 %v40
  %v58 = vunpack.c.l.b16 %v41
  %v59 = vunpack.c.h.b16 %v41
  %v60 = vunpack.c.l.b16 %v42
  %v61 = vunpack.c.h.b16 %v42
  %v62 = vunpack.c.l.b16 %v43
  %v63 = vunpack.c.h.b16 %v43
  %v64 = vunpack.c.l.b16 %v44
  %v65 = vunpack.c.h.b16 %v44
  %v66 = vunpack.c.l.b16 %v45
  %v67 = vunpack.c.h.b16 %v45
  %v68 = vunpack.c.l.b16 %v46
  %v69 = vunpack.c.h.b16 %v46
  %v70 = vunpack.c.l.b16 %v47
  %v71 = vunpack.c.h.b16 %v47
  %v72 = vpack.c.b16 %v58, %v56
  %v73 = vpack.c.b16 %v59, %v57
  %v74 = vpack.c.b16 %v62, %v60
  %v75 = vpack.c.b16 %v63, %v61
  %v76 = vpack.c.b16 %v66, %v64
  %v77 = vpack.c.b16 %v67, %v65
  %v78 = vpack.c.b16 %v70, %v68
  %v79 = vpack.c.b16 %v71, %v69
  %vm88 = vcmask 523264
  %v90 = vsel %vm88, 0, 0
  %92 = vmatprep.subr.bf16.mxu0 %v73
  %93 = vmatpush1.bf16.msra.mxu0 %v72
  %94 = vmatprep.subr.bf16.mxu0 %v75
  %95 = vmatpush1.bf16.msra.mxu0 %v74
  %96 = vmatprep.subr.bf16.mxu0 %v77
  %97 = vmatpush1.bf16.msra.mxu0 %v76
  %98 = vmatprep.subr.bf16.mxu0 %v79
  %99 = vmatpush1.bf16.msra.mxu0 %v78
  %100 = vmatprep.subr.bf16.mxu0 0
  %101 = vmatpush1.bf16.msra.mxu0 0
  %102 = vmatprep.subr.bf16.mxu0 0
  %103 = vmatpush1.bf16.msra.mxu0 0
  %104 = vmatprep.subr.bf16.mxu0 0
  %105 = vmatpush1.bf16.msra.mxu0 0
  %106 = vmatprep.subr.bf16.mxu0 0
  %107 = vmatpush1.bf16.msra.mxu0 0
  %108 = vmatprep.subr.bf16.mxu0 0
  %109 = vmatpush1.bf16.msra.mxu0 0
  %110 = vmatprep.subr.bf16.mxu0 0
  %111 = vmatpush1.bf16.msra.mxu0 0
  %112 = vmatprep.subr.bf16.mxu0 0
  %113 = vmatpush1.bf16.msra.mxu0 0
  %114 = vmatprep.subr.bf16.mxu0 0
  %115 = vmatpush1.bf16.msra.mxu0 0
  %116 = vmatprep.subr.bf16.mxu0 0
  %117 = vmatpush1.bf16.msra.mxu0 0
  %118 = vmatprep.subr.bf16.mxu0 0
  %119 = vmatpush1.bf16.msra.mxu0 0
  %120 = vmatprep.subr.bf16.mxu0 0
  %121 = vmatpush1.bf16.msra.mxu0 0
  %122 = vmatprep.subr.bf16.mxu0 0
  %123 = vmatpush1.bf16.msra.mxu0 0
  %124 = vmatprep.mubr.bf16.mxu0 0
  %125 = vmatmul.mubr.bf16.gmra.mrb[0].mxu0 %v90
  %v126 = vpop.f32.mrb[0].mxu0
  %v127 = vadd.f32 0.0, %v126
  %v128 = vpop.f32.mrb[0].mxu0
  %v129 = vadd.f32 0.0, %v128
  %v130 = vpop.f32.mrb[0].mxu0
  %v131 = vpop.f32.mrb[0].mxu0
  %132 = vdwg.mxu0
  %v134 = vrot.slane %v38, 7
  %vm136 = vcmask 1040384
  %v137 = vsel %vm136, %v35, %v134
  %v138 = vadd.f32 %v137, %v127
  %v139 = vxor.u32 %v138, 2147483648
  %v140 = vmul.f32 %v139, 1.442695
  %v141 = vpow.pop %v140
  %v142 = vadd.f32 %v141, 1.0
  %v143 = vrcp.pop %v142
  %v144 = vmul.f32 1.0, %v143
  %v145 = vtanh.pop %v138
  %v146 = vmul.f32 %v144, 0.0
  %148 = vrot.lane.b32.xlu0 %v145, 64
  %v149 = vpop.permute.xlu0 %148
  %v151 = vmul.f32 %v144, %v149
  %153 = vrot.lane.b32.xlu0 %v151, 32
  %v154 = vpop.permute.xlu0 %153
  %v156 = vadd.f32 %v146, %v154
  %v157 = vtanh.pop %v156
  %159 = vrot.lane.b32.xlu0 %v157, 64
  %v160 = vpop.permute.xlu0 %159
  %v162 = vmul.f32 %v144, %v160
  %v164 = vrot.slane %v36, 7
  %v167 = vrot.slane %v39, 6
  %v169 = vsel %vm136, %v164, %v167
  %v170 = vadd.f32 %v169, %v129
  %v171 = vxor.u32 %v170, 2147483648
  %v172 = vmul.f32 %v171, 1.442695
  %v173 = vpow.pop %v172
  %v174 = vadd.f32 %v173, 1.0
  %v175 = vrcp.pop %v174
  %v176 = vmul.f32 1.0, %v175
  %v177 = vtanh.pop %v170
  %v178 = vmul.f32 %v176, 0.0
  %180 = vrot.lane.b32.xlu0 %v177, 64
  %v181 = vpop.permute.xlu0 %180
  %v183 = vmul.f32 %v176, %v181
  %185 = vrot.lane.b32.xlu0 %v183, 32
  %v186 = vpop.permute.xlu0 %185
  %v188 = vadd.f32 %v178, %v186
  %v189 = vtanh.pop %v188
  %191 = vrot.lane.b32.xlu0 %v189, 64
  %v192 = vpop.permute.xlu0 %191
  %v194 = vmul.f32 %v176, %v192
  %196 = vrot.lane.b32.xlu0 %v162, 32
  %v197 = vpop.permute.xlu0 %196
  %200 = vrot.lane.b32.xlu0 %v194, 64
  %v201 = vpop.permute.xlu0 %200
  %vm203 = vcmask 261120
  %v204 = vsel %vm203, %v197, %v201
  %v205 = vpack.c.bf16 %v204, %v204
  %v207 = vsel %vm88, %v205, 0
  %209 = vmatprep.subr.bf16.mxu0 %v73
  %210 = vmatpush1.bf16.msra.mxu0 %v72
  %211 = vmatprep.subr.bf16.mxu0 %v75
  %212 = vmatpush1.bf16.msra.mxu0 %v74
  %213 = vmatprep.subr.bf16.mxu0 %v77
  %214 = vmatpush1.bf16.msra.mxu0 %v76
  %215 = vmatprep.subr.bf16.mxu0 %v79
  %216 = vmatpush1.bf16.msra.mxu0 %v78
  %217 = vmatprep.subr.bf16.mxu0 0
  %218 = vmatpush1.bf16.msra.mxu0 0
  %219 = vmatprep.subr.bf16.mxu0 0
  %220 = vmatpush1.bf16.msra.mxu0 0
  %221 = vmatprep.subr.bf16.mxu0 0
  %222 = vmatpush1.bf16.msra.mxu0 0
  %223 = vmatprep.subr.bf16.mxu0 0
  %224 = vmatpush1.bf16.msra.mxu0 0
  %225 = vmatprep.subr.bf16.mxu0 0
  %226 = vmatpush1.bf16.msra.mxu0 0
  %227 = vmatprep.subr.bf16.mxu0 0
  %228 = vmatpush1.bf16.msra.mxu0 0
  %229 = vmatprep.subr.bf16.mxu0 0
  %230 = vmatpush1.bf16.msra.mxu0 0
  %231 = vmatprep.subr.bf16.mxu0 0
  %232 = vmatpush1.bf16.msra.mxu0 0
  %233 = vmatprep.subr.bf16.mxu0 0
  %234 = vmatpush1.bf16.msra.mxu0 0
  %235 = vmatprep.subr.bf16.mxu0 0
  %236 = vmatpush1.bf16.msra.mxu0 0
  %237 = vmatprep.subr.bf16.mxu0 0
  %238 = vmatpush1.bf16.msra.mxu0 0
  %239 = vmatprep.subr.bf16.mxu0 0
  %240 = vmatpush1.bf16.msra.mxu0 0
  %241 = vmatprep.mubr.bf16.mxu0 0
  %242 = vmatmul.mubr.bf16.gmra.mrb[0].mxu0 %v207
  %v243 = vpop.f32.mrb[0].mxu0
  %v244 = vadd.f32 0.0, %v243
  %v245 = vpop.f32.mrb[0].mxu0
  %v246 = vadd.f32 0.0, %v245
  %v247 = vpop.f32.mrb[0].mxu0
  %v248 = vpop.f32.mrb[0].mxu0
  %249 = vdwg.mxu0
  %v251 = vrot.slane %v35, 1
  %v253 = vsel %vm136, %v251, %v38
  %v254 = vadd.f32 %v253, %v244
  %v255 = vxor.u32 %v254, 2147483648
  %v256 = vmul.f32 %v255, 1.442695
  %v257 = vpow.pop %v256
  %v258 = vadd.f32 %v257, 1.0
  %v259 = vrcp.pop %v258
  %v260 = vmul.f32 1.0, %v259
  %v261 = vtanh.pop %v254
  %v262 = vmul.f32 %v260, %v156
  %264 = vrot.lane.b32.xlu0 %v261, 64
  %v265 = vpop.permute.xlu0 %264
  %v267 = vmul.f32 %v260, %v265
  %269 = vrot.lane.b32.xlu0 %v267, 32
  %v270 = vpop.permute.xlu0 %269
  %v272 = vadd.f32 %v262, %v270
  %v273 = vtanh.pop %v272
  %275 = vrot.lane.b32.xlu0 %v273, 64
  %v276 = vpop.permute.xlu0 %275
  %v278 = vmul.f32 %v260, %v276
  %v279 = vrot.slane %v36, 6
  %v281 = vrot.slane %v39, 5
  %v283 = vsel %vm136, %v279, %v281
  %v284 = vadd.f32 %v283, %v246
  %v285 = vxor.u32 %v284, 2147483648
  %v286 = vmul.f32 %v285, 1.442695
  %v287 = vpow.pop %v286
  %v288 = vadd.f32 %v287, 1.0
  %v289 = vrcp.pop %v288
  %v290 = vmul.f32 1.0, %v289
  %v291 = vtanh.pop %v284
  %v292 = vmul.f32 %v290, %v188
  %294 = vrot.lane.b32.xlu0 %v291, 64
  %v295 = vpop.permute.xlu0 %294
  %v297 = vmul.f32 %v290, %v295
  %299 = vrot.lane.b32.xlu0 %v297, 32
  %v300 = vpop.permute.xlu0 %299
  %v302 = vadd.f32 %v292, %v300
  %v303 = vtanh.pop %v302
  %305 = vrot.lane.b32.xlu0 %v303, 64
  %v306 = vpop.permute.xlu0 %305
  %v308 = vmul.f32 %v290, %v306
  %310 = vrot.lane.b32.xlu0 %v278, 32
  %v311 = vpop.permute.xlu0 %310
  %314 = vrot.lane.b32.xlu0 %v308, 64
  %v315 = vpop.permute.xlu0 %314
  %v317 = vsel %vm203, %v311, %v315
  %v318 = vpack.c.bf16 %v317, %v317
  %v320 = vsel %vm88, %v318, 0
  %322 = vmatprep.subr.bf16.mxu0 %v73
  %323 = vmatpush1.bf16.msra.mxu0 %v72
  %324 = vmatprep.subr.bf16.mxu0 %v75
  %325 = vmatpush1.bf16.msra.mxu0 %v74
  %326 = vmatprep.subr.bf16.mxu0 %v77
  %327 = vmatpush1.bf16.msra.mxu0 %v76
  %328 = vmatprep.subr.bf16.mxu0 %v79
  %329 = vmatpush1.bf16.msra.mxu0 %v78
  %330 = vmatprep.subr.bf16.mxu0 0
  %331 = vmatpush1.bf16.msra.mxu0 0
  %332 = vmatprep.subr.bf16.mxu0 0
  %333 = vmatpush1.bf16.msra.mxu0 0
  %334 = vmatprep.subr.bf16.mxu0 0
  %335 = vmatpush1.bf16.msra.mxu0 0
  %336 = vmatprep.subr.bf16.mxu0 0
  %337 = vmatpush1.bf16.msra.mxu0 0
  %338 = vmatprep.subr.bf16.mxu0 0
  %339 = vmatpush1.bf16.msra.mxu0 0
  %340 = vmatprep.subr.bf16.mxu0 0
  %341 = vmatpush1.bf16.msra.mxu0 0
  %342 = vmatprep.subr.bf16.mxu0 0
  %343 = vmatpush1.bf16.msra.mxu0 0
  %344 = vmatprep.subr.bf16.mxu0 0
  %345 = vmatpush1.bf16.msra.mxu0 0
  %346 = vmatprep.subr.bf16.mxu0 0
  %347 = vmatpush1.bf16.msra.mxu0 0
  %348 = vmatprep.subr.bf16.mxu0 0
  %349 = vmatpush1.bf16.msra.mxu0 0
  %350 = vmatprep.subr.bf16.mxu0 0
  %351 = vmatpush1.bf16.msra.mxu0 0
  %352 = vmatprep.subr.bf16.mxu0 0
  %353 = vmatpush1.bf16.msra.mxu0 0
  %354 = vmatprep.mubr.bf16.mxu0 0
  %355 = vmatmul.mubr.bf16.gmra.mrb[0].mxu0 %v320
  %v356 = vpop.f32.mrb[0].mxu0
  %v357 = vadd.f32 0.0, %v356
  %v358 = vpop.f32.mrb[0].mxu0
  %v359 = vadd.f32 0.0, %v358
  %v360 = vpop.f32.mrb[0].mxu0
  %v361 = vpop.f32.mrb[0].mxu0
  %362 = vdwg.mxu0
  %v363 = vrot.slane %v35, 2
  %v365 = vrot.slane %v38, 1
  %v367 = vsel %vm136, %v363, %v365
  %v368 = vadd.f32 %v367, %v357
  %v369 = vxor.u32 %v368, 2147483648
  %v370 = vmul.f32 %v369, 1.442695
  %v371 = vpow.pop %v370
  %v372 = vadd.f32 %v371, 1.0
  %v373 = vrcp.pop %v372
  %v374 = vmul.f32 1.0, %v373
  %v375 = vtanh.pop %v368
  %v376 = vmul.f32 %v374, %v272
  %378 = vrot.lane.b32.xlu0 %v375, 64
  %v379 = vpop.permute.xlu0 %378
  %v381 = vmul.f32 %v374, %v379
  %383 = vrot.lane.b32.xlu0 %v381, 32
  %v384 = vpop.permute.xlu0 %383
  %v386 = vadd.f32 %v376, %v384
  %v387 = vtanh.pop %v386
  %389 = vrot.lane.b32.xlu0 %v387, 64
  %v390 = vpop.permute.xlu0 %389
  %v392 = vmul.f32 %v374, %v390
  %v393 = vrot.slane %v36, 5
  %v395 = vrot.slane %v39, 4
  %v397 = vsel %vm136, %v393, %v395
  %v398 = vadd.f32 %v397, %v359
  %v399 = vxor.u32 %v398, 2147483648
  %v400 = vmul.f32 %v399, 1.442695
  %v401 = vpow.pop %v400
  %v402 = vadd.f32 %v401, 1.0
  %v403 = vrcp.pop %v402
  %v404 = vmul.f32 1.0, %v403
  %v405 = vtanh.pop %v398
  %v406 = vmul.f32 %v404, %v302
  %408 = vrot.lane.b32.xlu0 %v405, 64
  %v409 = vpop.permute.xlu0 %408
  %v411 = vmul.f32 %v404, %v409
  %413 = vrot.lane.b32.xlu0 %v411, 32
  %v414 = vpop.permute.xlu0 %413
  %v416 = vadd.f32 %v406, %v414
  %v417 = vtanh.pop %v416
  %419 = vrot.lane.b32.xlu0 %v417, 64
  %v420 = vpop.permute.xlu0 %419
  %v422 = vmul.f32 %v404, %v420
  %424 = vrot.lane.b32.xlu0 %v392, 32
  %v425 = vpop.permute.xlu0 %424
  %428 = vrot.lane.b32.xlu0 %v422, 64
  %v429 = vpop.permute.xlu0 %428
  %v431 = vsel %vm203, %v425, %v429
  %v432 = vpack.c.bf16 %v431, %v431
  %v434 = vsel %vm88, %v432, 0
  %436 = vmatprep.subr.bf16.mxu0 %v73
  %437 = vmatpush1.bf16.msra.mxu0 %v72
  %438 = vmatprep.subr.bf16.mxu0 %v75
  %439 = vmatpush1.bf16.msra.mxu0 %v74
  %440 = vmatprep.subr.bf16.mxu0 %v77
  %441 = vmatpush1.bf16.msra.mxu0 %v76
  %442 = vmatprep.subr.bf16.mxu0 %v79
  %443 = vmatpush1.bf16.msra.mxu0 %v78
  %444 = vmatprep.subr.bf16.mxu0 0
  %445 = vmatpush1.bf16.msra.mxu0 0
  %446 = vmatprep.subr.bf16.mxu0 0
  %447 = vmatpush1.bf16.msra.mxu0 0
  %448 = vmatprep.subr.bf16.mxu0 0
  %449 = vmatpush1.bf16.msra.mxu0 0
  %450 = vmatprep.subr.bf16.mxu0 0
  %451 = vmatpush1.bf16.msra.mxu0 0
  %452 = vmatprep.subr.bf16.mxu0 0
  %453 = vmatpush1.bf16.msra.mxu0 0
  %454 = vmatprep.subr.bf16.mxu0 0
  %455 = vmatpush1.bf16.msra.mxu0 0
  %456 = vmatprep.subr.bf16.mxu0 0
  %457 = vmatpush1.bf16.msra.mxu0 0
  %458 = vmatprep.subr.bf16.mxu0 0
  %459 = vmatpush1.bf16.msra.mxu0 0
  %460 = vmatprep.subr.bf16.mxu0 0
  %461 = vmatpush1.bf16.msra.mxu0 0
  %462 = vmatprep.subr.bf16.mxu0 0
  %463 = vmatpush1.bf16.msra.mxu0 0
  %464 = vmatprep.subr.bf16.mxu0 0
  %465 = vmatpush1.bf16.msra.mxu0 0
  %466 = vmatprep.subr.bf16.mxu0 0
  %467 = vmatpush1.bf16.msra.mxu0 0
  %468 = vmatprep.mubr.bf16.mxu0 0
  %469 = vmatmul.mubr.bf16.gmra.mrb[0].mxu0 %v434
  %v470 = vpop.f32.mrb[0].mxu0
  %v471 = vadd.f32 0.0, %v470
  %v472 = vpop.f32.mrb[0].mxu0
  %v473 = vadd.f32 0.0, %v472
  %v474 = vpop.f32.mrb[0].mxu0
  %v475 = vpop.f32.mrb[0].mxu0
  %476 = vdwg.mxu0
  %v477 = vrot.slane %v35, 3
  %v479 = vrot.slane %v38, 2
  %v481 = vsel %vm136, %v477, %v479
  %v482 = vadd.f32 %v481, %v471
  %v483 = vxor.u32 %v482, 2147483648
  %v484 = vmul.f32 %v483, 1.442695
  %v485 = vpow.pop %v484
  %v486 = vadd.f32 %v485, 1.0
  %v487 = vrcp.pop %v486
  %v488 = vmul.f32 1.0, %v487
  %v489 = vtanh.pop %v482
  %v490 = vmul.f32 %v488, %v386
  %492 = vrot.lane.b32.xlu0 %v489, 64
  %v493 = vpop.permute.xlu0 %492
  %v495 = vmul.f32 %v488, %v493
  %497 = vrot.lane.b32.xlu0 %v495, 32
  %v498 = vpop.permute.xlu0 %497
  %v500 = vadd.f32 %v490, %v498
  %v501 = vtanh.pop %v500
  %503 = vrot.lane.b32.xlu0 %v501, 64
  %v504 = vpop.permute.xlu0 %503
  %v506 = vmul.f32 %v488, %v504
  %v507 = vrot.slane %v36, 4
  %v509 = vrot.slane %v39, 3
  %v511 = vsel %vm136, %v507, %v509
  %v512 = vadd.f32 %v511, %v473
  %v513 = vxor.u32 %v512, 2147483648
  %v514 = vmul.f32 %v513, 1.442695
  %v515 = vpow.pop %v514
  %v516 = vadd.f32 %v515, 1.0
  %v517 = vrcp.pop %v516
  %v518 = vmul.f32 1.0, %v517
  %v519 = vtanh.pop %v512
  %v520 = vmul.f32 %v518, %v416
  %522 = vrot.lane.b32.xlu0 %v519, 64
  %v523 = vpop.permute.xlu0 %522
  %v525 = vmul.f32 %v518, %v523
  %527 = vrot.lane.b32.xlu0 %v525, 32
  %v528 = vpop.permute.xlu0 %527
  %v530 = vadd.f32 %v520, %v528
  %v531 = vtanh.pop %v530
  %533 = vrot.lane.b32.xlu0 %v531, 64
  %v534 = vpop.permute.xlu0 %533
  %v536 = vmul.f32 %v518, %v534
  %538 = vrot.lane.b32.xlu0 %v506, 32
  %v539 = vpop.permute.xlu0 %538
  %542 = vrot.lane.b32.xlu0 %v536, 64
  %v543 = vpop.permute.xlu0 %542
  %v545 = vsel %vm203, %v539, %v543
  %v546 = vpack.c.bf16 %v545, %v545
  %v548 = vsel %vm88, %v546, 0
  %550 = vmatprep.subr.bf16.mxu0 %v73
  %551 = vmatpush1.bf16.msra.mxu0 %v72
  %552 = vmatprep.subr.bf16.mxu0 %v75
  %553 = vmatpush1.bf16.msra.mxu0 %v74
  %554 = vmatprep.subr.bf16.mxu0 %v77
  %555 = vmatpush1.bf16.msra.mxu0 %v76
  %556 = vmatprep.subr.bf16.mxu0 %v79
  %557 = vmatpush1.bf16.msra.mxu0 %v78
  %558 = vmatprep.subr.bf16.mxu0 0
  %559 = vmatpush1.bf16.msra.mxu0 0
  %560 = vmatprep.subr.bf16.mxu0 0
  %561 = vmatpush1.bf16.msra.mxu0 0
  %562 = vmatprep.subr.bf16.mxu0 0
  %563 = vmatpush1.bf16.msra.mxu0 0
  %564 = vmatprep.subr.bf16.mxu0 0
  %565 = vmatpush1.bf16.msra.mxu0 0
  %566 = vmatprep.subr.bf16.mxu0 0
  %567 = vmatpush1.bf16.msra.mxu0 0
  %568 = vmatprep.subr.bf16.mxu0 0
  %569 = vmatpush1.bf16.msra.mxu0 0
  %570 = vmatprep.subr.bf16.mxu0 0
  %571 = vmatpush1.bf16.msra.mxu0 0
  %572 = vmatprep.subr.bf16.mxu0 0
  %573 = vmatpush1.bf16.msra.mxu0 0
  %574 = vmatprep.subr.bf16.mxu0 0
  %575 = vmatpush1.bf16.msra.mxu0 0
  %576 = vmatprep.subr.bf16.mxu0 0
  %577 = vmatpush1.bf16.msra.mxu0 0
  %578 = vmatprep.subr.bf16.mxu0 0
  %579 = vmatpush1.bf16.msra.mxu0 0
  %580 = vmatprep.subr.bf16.mxu0 0
  %581 = vmatpush1.bf16.msra.mxu0 0
  %582 = vmatprep.mubr.bf16.mxu0 0
  %583 = vmatmul.mubr.bf16.gmra.mrb[0].mxu0 %v548
  %v584 = vpop.f32.mrb[0].mxu0
  %v585 = vadd.f32 0.0, %v584
  %v586 = vpop.f32.mrb[0].mxu0
  %v587 = vadd.f32 0.0, %v586
  %v588 = vpop.f32.mrb[0].mxu0
  %v589 = vpop.f32.mrb[0].mxu0
  %590 = vdwg.mxu0
  %v591 = vrot.slane %v35, 4
  %v593 = vrot.slane %v38, 3
  %v595 = vsel %vm136, %v591, %v593
  %v596 = vadd.f32 %v595, %v585
  %v597 = vxor.u32 %v596, 2147483648
  %v598 = vmul.f32 %v597, 1.442695
  %v599 = vpow.pop %v598
  %v600 = vadd.f32 %v599, 1.0
  %v601 = vrcp.pop %v600
  %v602 = vmul.f32 1.0, %v601
  %v603 = vtanh.pop %v596
  %v604 = vmul.f32 %v602, %v500
  %606 = vrot.lane.b32.xlu0 %v603, 64
  %v607 = vpop.permute.xlu0 %606
  %v609 = vmul.f32 %v602, %v607
  %611 = vrot.lane.b32.xlu0 %v609, 32
  %v612 = vpop.permute.xlu0 %611
  %v614 = vadd.f32 %v604, %v612
  %v615 = vtanh.pop %v614
  %617 = vrot.lane.b32.xlu0 %v615, 64
  %v618 = vpop.permute.xlu0 %617
  %v620 = vmul.f32 %v602, %v618
  %v621 = vrot.slane %v36, 3
  %v623 = vrot.slane %v39, 2
  %v625 = vsel %vm136, %v621, %v623
  %v626 = vadd.f32 %v625, %v587
  %v627 = vxor.u32 %v626, 2147483648
  %v628 = vmul.f32 %v627, 1.442695
  %v629 = vpow.pop %v628
  %v630 = vadd.f32 %v629, 1.0
  %v631 = vrcp.pop %v630
  %v632 = vmul.f32 1.0, %v631
  %v633 = vtanh.pop %v626
  %v634 = vmul.f32 %v632, %v530
  %636 = vrot.lane.b32.xlu0 %v633, 64
  %v637 = vpop.permute.xlu0 %636
  %v639 = vmul.f32 %v632, %v637
  %641 = vrot.lane.b32.xlu0 %v639, 32
  %v642 = vpop.permute.xlu0 %641
  %v644 = vadd.f32 %v634, %v642
  %v645 = vtanh.pop %v644
  %647 = vrot.lane.b32.xlu0 %v645, 64
  %v648 = vpop.permute.xlu0 %647
  %v650 = vmul.f32 %v632, %v648
  %652 = vrot.lane.b32.xlu0 %v620, 32
  %v653 = vpop.permute.xlu0 %652
  %656 = vrot.lane.b32.xlu0 %v650, 64
  %v657 = vpop.permute.xlu0 %656
  %v659 = vsel %vm203, %v653, %v657
  %v660 = vpack.c.bf16 %v659, %v659
  %v662 = vsel %vm88, %v660, 0
  %664 = vmatprep.subr.bf16.mxu0 %v73
  %665 = vmatpush1.bf16.msra.mxu0 %v72
  %666 = vmatprep.subr.bf16.mxu0 %v75
  %667 = vmatpush1.bf16.msra.mxu0 %v74
  %668 = vmatprep.subr.bf16.mxu0 %v77
  %669 = vmatpush1.bf16.msra.mxu0 %v76
  %670 = vmatprep.subr.bf16.mxu0 %v79
  %671 = vmatpush1.bf16.msra.mxu0 %v78
  %672 = vmatprep.subr.bf16.mxu0 0
  %673 = vmatpush1.bf16.msra.mxu0 0
  %674 = vmatprep.subr.bf16.mxu0 0
  %675 = vmatpush1.bf16.msra.mxu0 0
  %676 = vmatprep.subr.bf16.mxu0 0
  %677 = vmatpush1.bf16.msra.mxu0 0
  %678 = vmatprep.subr.bf16.mxu0 0
  %679 = vmatpush1.bf16.msra.mxu0 0
  %680 = vmatprep.subr.bf16.mxu0 0
  %681 = vmatpush1.bf16.msra.mxu0 0
  %682 = vmatprep.subr.bf16.mxu0 0
  %683 = vmatpush1.bf16.msra.mxu0 0
  %684 = vmatprep.subr.bf16.mxu0 0
  %685 = vmatpush1.bf16.msra.mxu0 0
  %686 = vmatprep.subr.bf16.mxu0 0
  %687 = vmatpush1.bf16.msra.mxu0 0
  %688 = vmatprep.subr.bf16.mxu0 0
  %689 = vmatpush1.bf16.msra.mxu0 0
  %690 = vmatprep.subr.bf16.mxu0 0
  %691 = vmatpush1.bf16.msra.mxu0 0
  %692 = vmatprep.subr.bf16.mxu0 0
  %693 = vmatpush1.bf16.msra.mxu0 0
  %694 = vmatprep.subr.bf16.mxu0 0
  %695 = vmatpush1.bf16.msra.mxu0 0
  %696 = vmatprep.mubr.bf16.mxu0 0
  %697 = vmatmul.mubr.bf16.gmra.mrb[0].mxu0 %v662
  %v698 = vpop.f32.mrb[0].mxu0
  %v699 = vadd.f32 0.0, %v698
  %v700 = vpop.f32.mrb[0].mxu0
  %v701 = vadd.f32 0.0, %v700
  %v702 = vpop.f32.mrb[0].mxu0
  %v703 = vpop.f32.mrb[0].mxu0
  %704 = vdwg.mxu0
  %v705 = vrot.slane %v35, 5
  %v707 = vrot.slane %v38, 4
  %v709 = vsel %vm136, %v705, %v707
  %v710 = vadd.f32 %v709, %v699
  %v711 = vxor.u32 %v710, 2147483648
  %v712 = vmul.f32 %v711, 1.442695
  %v713 = vpow.pop %v712
  %v714 = vadd.f32 %v713, 1.0
  %v715 = vrcp.pop %v714
  %v716 = vmul.f32 1.0, %v715
  %v717 = vtanh.pop %v710
  %v718 = vmul.f32 %v716, %v614
  %720 = vrot.lane.b32.xlu0 %v717, 64
  %v721 = vpop.permute.xlu0 %720
  %v723 = vmul.f32 %v716, %v721
  %725 = vrot.lane.b32.xlu0 %v723, 32
  %v726 = vpop.permute.xlu0 %725
  %v728 = vadd.f32 %v718, %v726
  %v729 = vtanh.pop %v728
  %731 = vrot.lane.b32.xlu0 %v729, 64
  %v732 = vpop.permute.xlu0 %731
  %v734 = vmul.f32 %v716, %v732
  %v735 = vrot.slane %v36, 2
  %v737 = vrot.slane %v39, 1
  %v739 = vsel %vm136, %v735, %v737
  %v740 = vadd.f32 %v739, %v701
  %v741 = vxor.u32 %v740, 2147483648
  %v742 = vmul.f32 %v741, 1.442695
  %v743 = vpow.pop %v742
  %v744 = vadd.f32 %v743, 1.0
  %v745 = vrcp.pop %v744
  %v746 = vmul.f32 1.0, %v745
  %v747 = vtanh.pop %v740
  %v748 = vmul.f32 %v746, %v644
  %750 = vrot.lane.b32.xlu0 %v747, 64
  %v751 = vpop.permute.xlu0 %750
  %v753 = vmul.f32 %v746, %v751
  %755 = vrot.lane.b32.xlu0 %v753, 32
  %v756 = vpop.permute.xlu0 %755
  %v758 = vadd.f32 %v748, %v756
  %v759 = vtanh.pop %v758
  %761 = vrot.lane.b32.xlu0 %v759, 64
  %v762 = vpop.permute.xlu0 %761
  %v764 = vmul.f32 %v746, %v762
  %766 = vrot.lane.b32.xlu0 %v734, 32
  %v767 = vpop.permute.xlu0 %766
  %770 = vrot.lane.b32.xlu0 %v764, 64
  %v771 = vpop.permute.xlu0 %770
  %v773 = vsel %vm203, %v767, %v771
  %v774 = vpack.c.bf16 %v773, %v773
  %v776 = vsel %vm88, %v774, 0
  %778 = vmatprep.subr.bf16.mxu0 %v73
  %779 = vmatpush1.bf16.msra.mxu0 %v72
  %780 = vmatprep.subr.bf16.mxu0 %v75
  %781 = vmatpush1.bf16.msra.mxu0 %v74
  %782 = vmatprep.subr.bf16.mxu0 %v77
  %783 = vmatpush1.bf16.msra.mxu0 %v76
  %784 = vmatprep.subr.bf16.mxu0 %v79
  %785 = vmatpush1.bf16.msra.mxu0 %v78
  %786 = vmatprep.subr.bf16.mxu0 0
  %787 = vmatpush1.bf16.msra.mxu0 0
  %788 = vmatprep.subr.bf16.mxu0 0
  %789 = vmatpush1.bf16.msra.mxu0 0
  %790 = vmatprep.subr.bf16.mxu0 0
  %791 = vmatpush1.bf16.msra.mxu0 0
  %792 = vmatprep.subr.bf16.mxu0 0
  %793 = vmatpush1.bf16.msra.mxu0 0
  %794 = vmatprep.subr.bf16.mxu0 0
  %795 = vmatpush1.bf16.msra.mxu0 0
  %796 = vmatprep.subr.bf16.mxu0 0
  %797 = vmatpush1.bf16.msra.mxu0 0
  %798 = vmatprep.subr.bf16.mxu0 0
  %799 = vmatpush1.bf16.msra.mxu0 0
  %800 = vmatprep.subr.bf16.mxu0 0
  %801 = vmatpush1.bf16.msra.mxu0 0
  %802 = vmatprep.subr.bf16.mxu0 0
  %803 = vmatpush1.bf16.msra.mxu0 0
  %804 = vmatprep.subr.bf16.mxu0 0
  %805 = vmatpush1.bf16.msra.mxu0 0
  %806 = vmatprep.subr.bf16.mxu0 0
  %807 = vmatpush1.bf16.msra.mxu0 0
  %808 = vmatprep.subr.bf16.mxu0 0
  %809 = vmatpush1.bf16.msra.mxu0 0
  %810 = vmatprep.mubr.bf16.mxu0 0
  %811 = vmatmul.mubr.bf16.gmra.mrb[0].mxu0 %v776
  %v812 = vpop.f32.mrb[0].mxu0
  %v813 = vadd.f32 0.0, %v812
  %v814 = vpop.f32.mrb[0].mxu0
  %v815 = vadd.f32 0.0, %v814
  %v816 = vpop.f32.mrb[0].mxu0
  %v817 = vpop.f32.mrb[0].mxu0
  %818 = vdwg.mxu0
  %v819 = vrot.slane %v35, 6
  %v821 = vrot.slane %v38, 5
  %v823 = vsel %vm136, %v819, %v821
  %v824 = vadd.f32 %v823, %v813
  %v825 = vxor.u32 %v824, 2147483648
  %v826 = vmul.f32 %v825, 1.442695
  %v827 = vpow.pop %v826
  %v828 = vadd.f32 %v827, 1.0
  %v829 = vrcp.pop %v828
  %v830 = vmul.f32 1.0, %v829
  %v831 = vtanh.pop %v824
  %v832 = vmul.f32 %v830, %v728
  %834 = vrot.lane.b32.xlu0 %v831, 64
  %v835 = vpop.permute.xlu0 %834
  %v837 = vmul.f32 %v830, %v835
  %839 = vrot.lane.b32.xlu0 %v837, 32
  %v840 = vpop.permute.xlu0 %839
  %v842 = vadd.f32 %v832, %v840
  %v843 = vtanh.pop %v842
  %845 = vrot.lane.b32.xlu0 %v843, 64
  %v846 = vpop.permute.xlu0 %845
  %v848 = vmul.f32 %v830, %v846
  %v849 = vrot.slane %v36, 1
  %v851 = vsel %vm136, %v849, %v39
  %v852 = vadd.f32 %v851, %v815
  %v853 = vxor.u32 %v852, 2147483648
  %v854 = vmul.f32 %v853, 1.442695
  %v855 = vpow.pop %v854
  %v856 = vadd.f32 %v855, 1.0
  %v857 = vrcp.pop %v856
  %v858 = vmul.f32 1.0, %v857
  %v859 = vtanh.pop %v852
  %v860 = vmul.f32 %v858, %v758
  %862 = vrot.lane.b32.xlu0 %v859, 64
  %v863 = vpop.permute.xlu0 %862
  %v865 = vmul.f32 %v858, %v863
  %867 = vrot.lane.b32.xlu0 %v865, 32
  %v868 = vpop.permute.xlu0 %867
  %v870 = vadd.f32 %v860, %v868
  %v871 = vtanh.pop %v870
  %873 = vrot.lane.b32.xlu0 %v871, 64
  %v874 = vpop.permute.xlu0 %873
  %v876 = vmul.f32 %v858, %v874
  %878 = vrot.lane.b32.xlu0 %v848, 32
  %v879 = vpop.permute.xlu0 %878
  %882 = vrot.lane.b32.xlu0 %v876, 64
  %v883 = vpop.permute.xlu0 %882
  %v885 = vsel %vm203, %v879, %v883
  %v886 = vpack.c.bf16 %v885, %v885
  %v888 = vsel %vm88, %v886, 0
  %890 = vmatprep.subr.bf16.mxu0 %v73
  %891 = vmatpush1.bf16.msra.mxu0 %v72
  %892 = vmatprep.subr.bf16.mxu0 %v75
  %893 = vmatpush1.bf16.msra.mxu0 %v74
  %894 = vmatprep.subr.bf16.mxu0 %v77
  %895 = vmatpush1.bf16.msra.mxu0 %v76
  %896 = vmatprep.subr.bf16.mxu0 %v79
  %897 = vmatpush1.bf16.msra.mxu0 %v78
  %898 = vmatprep.subr.bf16.mxu0 0
  %899 = vmatpush1.bf16.msra.mxu0 0
  %900 = vmatprep.subr.bf16.mxu0 0
  %901 = vmatpush1.bf16.msra.mxu0 0
  %902 = vmatprep.subr.bf16.mxu0 0
  %903 = vmatpush1.bf16.msra.mxu0 0
  %904 = vmatprep.subr.bf16.mxu0 0
  %905 = vmatpush1.bf16.msra.mxu0 0
  %906 = vmatprep.subr.bf16.mxu0 0
  %907 = vmatpush1.bf16.msra.mxu0 0
  %908 = vmatprep.subr.bf16.mxu0 0
  %909 = vmatpush1.bf16.msra.mxu0 0
  %910 = vmatprep.subr.bf16.mxu0 0
  %911 = vmatpush1.bf16.msra.mxu0 0
  %912 = vmatprep.subr.bf16.mxu0 0
  %913 = vmatpush1.bf16.msra.mxu0 0
  %914 = vmatprep.subr.bf16.mxu0 0
  %915 = vmatpush1.bf16.msra.mxu0 0
  %916 = vmatprep.subr.bf16.mxu0 0
  %917 = vmatpush1.bf16.msra.mxu0 0
  %918 = vmatprep.subr.bf16.mxu0 0
  %919 = vmatpush1.bf16.msra.mxu0 0
  %920 = vmatprep.subr.bf16.mxu0 0
  %921 = vmatpush1.bf16.msra.mxu0 0
  %922 = vmatprep.mubr.bf16.mxu0 0
  %923 = vmatmul.mubr.bf16.gmra.mrb[0].mxu0 %v888
  %v924 = vpop.f32.mrb[0].mxu0
  %v925 = vadd.f32 0.0, %v924
  %v926 = vpop.f32.mrb[0].mxu0
  %v927 = vadd.f32 0.0, %v926
  %v928 = vpop.f32.mrb[0].mxu0
  %v929 = vpop.f32.mrb[0].mxu0
  %930 = vdwg.mxu0
  %v931 = vrot.slane %v35, 7
  %v933 = vrot.slane %v38, 6
  %v935 = vsel %vm136, %v931, %v933
  %v936 = vadd.f32 %v935, %v925
  %v937 = vxor.u32 %v936, 2147483648
  %v938 = vmul.f32 %v937, 1.442695
  %v939 = vpow.pop %v938
  %v940 = vadd.f32 %v939, 1.0
  %v941 = vrcp.pop %v940
  %v942 = vmul.f32 1.0, %v941
  %v943 = vtanh.pop %v936
  %v944 = vmul.f32 %v942, %v842
  %946 = vrot.lane.b32.xlu0 %v943, 64
  %v947 = vpop.permute.xlu0 %946
  %v949 = vmul.f32 %v942, %v947
  %951 = vrot.lane.b32.xlu0 %v949, 32
  %v952 = vpop.permute.xlu0 %951
  %v954 = vadd.f32 %v944, %v952
  %v955 = vtanh.pop %v954
  %957 = vrot.lane.b32.xlu0 %v955, 64
  %v958 = vpop.permute.xlu0 %957
  %v960 = vmul.f32 %v942, %v958
  %v961 = vrot.slane %v39, 7
  %v963 = vsel %vm136, %v36, %v961
  %v964 = vadd.f32 %v963, %v927
  %v965 = vxor.u32 %v964, 2147483648
  %v966 = vmul.f32 %v965, 1.442695
  %v967 = vpow.pop %v966
  %v968 = vadd.f32 %v967, 1.0
  %v969 = vrcp.pop %v968
  %v970 = vmul.f32 1.0, %v969
  %v971 = vtanh.pop %v964
  %v972 = vmul.f32 %v970, %v870
  %974 = vrot.lane.b32.xlu0 %v971, 64
  %v975 = vpop.permute.xlu0 %974
  %v977 = vmul.f32 %v970, %v975
  %979 = vrot.lane.b32.xlu0 %v977, 32
  %v980 = vpop.permute.xlu0 %979
  %v982 = vadd.f32 %v972, %v980
  %v983 = vtanh.pop %v982
  %985 = vrot.lane.b32.xlu0 %v983, 64
  %v986 = vpop.permute.xlu0 %985
  %v988 = vmul.f32 %v970, %v986
  %990 = vrot.lane.b32.xlu0 %v988, 64
  %v991 = vpop.permute.xlu0 %990
  %v993 = vsel %vm203, %v197, %v991
  %v994 = vsel %vm203, %v311, %v883
  %v995 = vsel %vm203, %v425, %v771
  %v996 = vsel %vm203, %v539, %v657
  %v997 = vsel %vm203, %v653, %v543
  %v998 = vsel %vm203, %v767, %v429
  %v999 = vsel %vm203, %v879, %v315
  %1001 = vrot.lane.b32.xlu0 %v960, 32
  %v1002 = vpop.permute.xlu0 %1001
  %v1004 = vsel %vm203, %v1002, %v201
  %v1006 = vrot.slane %v994, 6
  %v1009 = vrot.slane %v995, 4
  %v1012 = vrot.slane %v996, 2
  %v1015 = vrot.slane %v998, 6
  %v1018 = vrot.slane %v999, 4
  %v1021 = vrot.slane %v1004, 2
  %vm1023 = vcmask 1041408
  %v1024 = vsel %vm1023, %v993, %v1006
  %vm1025 = vcmask 1043456
  %v1026 = vsel %vm1025, %v1024, %v1009
  %vm1027 = vcmask 1045504
  %v1028 = vsel %vm1027, %v1026, %v1012
  %v1029 = vsel %vm1023, %v997, %v1015
  %v1030 = vsel %vm1025, %v1029, %v1018
  %v1031 = vsel %vm1027, %v1030, %v1021
  %v1032 = vpack.c.bf16 %v1031, %v1028
  %v1033 = vld [vmem:[%s2] sm:$0xff]
  %v1034 = vld [vmem:[%s2 + $0x8] sm:$0xff]
  %v1035 = vld [vmem:[%s2 + $0x10] sm:$0xff]
  %v1036 = vld [vmem:[%s2 + $0x18] sm:$0xff]
  %v1037 = vld [vmem:[%s2 + $0x20] sm:$0xff]
  %v1038 = vld [vmem:[%s2 + $0x28] sm:$0xff]
  %v1039 = vld [vmem:[%s2 + $0x30] sm:$0xff]
  %v1040 = vld [vmem:[%s2 + $0x38] sm:$0xff]
  %v1041 = vld [vmem:[%s3] sm:$0x3]
  %v1043 = vlaneseq
  %v1044 = vshrl.u32 %v1043, 7
  %v1045 = vsub.s32 0, %v1044
  %v1046 = vrot.slane %v1041, %v1045
  %v1047 = vlaneseq
  %v1048 = vshrl.u32 %v1047, 7
  %v1049 = vsub.s32 1, %v1048
  %v1050 = vrot.slane %v1041, %v1049
  %v1061 = vunpack.c.l.b16 %v1033
  %v1062 = vunpack.c.h.b16 %v1033
  %v1063 = vunpack.c.l.b16 %v1034
  %v1064 = vunpack.c.h.b16 %v1034
  %v1065 = vunpack.c.l.b16 %v1035
  %v1066 = vunpack.c.h.b16 %v1035
  %v1067 = vunpack.c.l.b16 %v1036
  %v1068 = vunpack.c.h.b16 %v1036
  %v1069 = vunpack.c.l.b16 %v1037
  %v1070 = vunpack.c.h.b16 %v1037
  %v1071 = vunpack.c.l.b16 %v1038
  %v1072 = vunpack.c.h.b16 %v1038
  %v1073 = vunpack.c.l.b16 %v1039
  %v1074 = vunpack.c.h.b16 %v1039
  %v1075 = vunpack.c.l.b16 %v1040
  %v1076 = vunpack.c.h.b16 %v1040
  %v1077 = vpack.c.b16 %v1063, %v1061
  %v1078 = vpack.c.b16 %v1064, %v1062
  %v1079 = vpack.c.b16 %v1067, %v1065
  %v1080 = vpack.c.b16 %v1068, %v1066
  %v1081 = vpack.c.b16 %v1071, %v1069
  %v1082 = vpack.c.b16 %v1072, %v1070
  %v1083 = vpack.c.b16 %v1075, %v1073
  %v1084 = vpack.c.b16 %v1076, %v1074
  %v1094 = vsel %vm88, %v1032, 0
  %1096 = vmatprep.subr.bf16.mxu0 %v1078
  %1097 = vmatpush1.bf16.msra.mxu0 %v1077
  %1098 = vmatprep.subr.bf16.mxu0 %v1080
  %1099 = vmatpush1.bf16.msra.mxu0 %v1079
  %1100 = vmatprep.subr.bf16.mxu0 %v1082
  %1101 = vmatpush1.bf16.msra.mxu0 %v1081
  %1102 = vmatprep.subr.bf16.mxu0 %v1084
  %1103 = vmatpush1.bf16.msra.mxu0 %v1083
  %1104 = vmatprep.subr.bf16.mxu0 0
  %1105 = vmatpush1.bf16.msra.mxu0 0
  %1106 = vmatprep.subr.bf16.mxu0 0
  %1107 = vmatpush1.bf16.msra.mxu0 0
  %1108 = vmatprep.subr.bf16.mxu0 0
  %1109 = vmatpush1.bf16.msra.mxu0 0
  %1110 = vmatprep.subr.bf16.mxu0 0
  %1111 = vmatpush1.bf16.msra.mxu0 0
  %1112 = vmatprep.subr.bf16.mxu0 0
  %1113 = vmatpush1.bf16.msra.mxu0 0
  %1114 = vmatprep.subr.bf16.mxu0 0
  %1115 = vmatpush1.bf16.msra.mxu0 0
  %1116 = vmatprep.subr.bf16.mxu0 0
  %1117 = vmatpush1.bf16.msra.mxu0 0
  %1118 = vmatprep.subr.bf16.mxu0 0
  %1119 = vmatpush1.bf16.msra.mxu0 0
  %1120 = vmatprep.subr.bf16.mxu0 0
  %1121 = vmatpush1.bf16.msra.mxu0 0
  %1122 = vmatprep.subr.bf16.mxu0 0
  %1123 = vmatpush1.bf16.msra.mxu0 0
  %1124 = vmatprep.subr.bf16.mxu0 0
  %1125 = vmatpush1.bf16.msra.mxu0 0
  %1126 = vmatprep.subr.bf16.mxu0 0
  %1127 = vmatpush1.bf16.msra.mxu0 0
  %1128 = vmatprep.mubr.bf16.mxu0 0
  %1129 = vmatmul.mubr.bf16.gmra.mrb[0].mxu0 %v1094
  %v1130 = vpop.f32.mrb[0].mxu0
  %v1131 = vadd.f32 %v1046, %v1130
  %v1132 = vpop.f32.mrb[0].mxu0
  %v1133 = vpop.f32.mrb[0].mxu0
  %v1134 = vadd.f32 %v1046, %v1133
  %v1135 = vpop.f32.mrb[0].mxu0
  %v1136 = vadd.f32 %v1050, %v1135
  %1137 = vdwg.mxu0
  %v1138 = vld [vmem:[%s4] sm:$0xff]
  %v1139 = vld [vmem:[%s4 + $0x8] sm:$0xff]
  %v1140 = vld [vmem:[%s4 + $0x10] sm:$0xff]
  %v1141 = vld [vmem:[%s4 + $0x18] sm:$0xff]
  %v1142 = vld [vmem:[%s4 + $0x20] sm:$0xff]
  %v1143 = vld [vmem:[%s4 + $0x28] sm:$0xff]
  %v1144 = vld [vmem:[%s4 + $0x30] sm:$0xff]
  %v1145 = vld [vmem:[%s4 + $0x38] sm:$0xff]
  %v1154 = vunpack.c.l.b16 %v1138
  %v1155 = vunpack.c.h.b16 %v1138
  %v1156 = vunpack.c.l.b16 %v1139
  %v1157 = vunpack.c.h.b16 %v1139
  %v1158 = vunpack.c.l.b16 %v1140
  %v1159 = vunpack.c.h.b16 %v1140
  %v1160 = vunpack.c.l.b16 %v1141
  %v1161 = vunpack.c.h.b16 %v1141
  %v1162 = vunpack.c.l.b16 %v1142
  %v1163 = vunpack.c.h.b16 %v1142
  %v1164 = vunpack.c.l.b16 %v1143
  %v1165 = vunpack.c.h.b16 %v1143
  %v1166 = vunpack.c.l.b16 %v1144
  %v1167 = vunpack.c.h.b16 %v1144
  %v1168 = vunpack.c.l.b16 %v1145
  %v1169 = vunpack.c.h.b16 %v1145
  %v1170 = vpack.c.b16 %v1156, %v1154
  %v1171 = vpack.c.b16 %v1157, %v1155
  %v1172 = vpack.c.b16 %v1160, %v1158
  %v1173 = vpack.c.b16 %v1161, %v1159
  %v1174 = vpack.c.b16 %v1164, %v1162
  %v1175 = vpack.c.b16 %v1165, %v1163
  %v1176 = vpack.c.b16 %v1168, %v1166
  %v1177 = vpack.c.b16 %v1169, %v1167
  %1186 = vmatprep.subr.bf16.mxu0 %v1171
  %1187 = vmatpush1.bf16.msra.mxu0 %v1170
  %1188 = vmatprep.subr.bf16.mxu0 %v1173
  %1189 = vmatpush1.bf16.msra.mxu0 %v1172
  %1190 = vmatprep.subr.bf16.mxu0 %v1175
  %1191 = vmatpush1.bf16.msra.mxu0 %v1174
  %1192 = vmatprep.subr.bf16.mxu0 %v1177
  %1193 = vmatpush1.bf16.msra.mxu0 %v1176
  %1194 = vmatprep.subr.bf16.mxu0 0
  %1195 = vmatpush1.bf16.msra.mxu0 0
  %1196 = vmatprep.subr.bf16.mxu0 0
  %1197 = vmatpush1.bf16.msra.mxu0 0
  %1198 = vmatprep.subr.bf16.mxu0 0
  %1199 = vmatpush1.bf16.msra.mxu0 0
  %1200 = vmatprep.subr.bf16.mxu0 0
  %1201 = vmatpush1.bf16.msra.mxu0 0
  %1202 = vmatprep.subr.bf16.mxu0 0
  %1203 = vmatpush1.bf16.msra.mxu0 0
  %1204 = vmatprep.subr.bf16.mxu0 0
  %1205 = vmatpush1.bf16.msra.mxu0 0
  %1206 = vmatprep.subr.bf16.mxu0 0
  %1207 = vmatpush1.bf16.msra.mxu0 0
  %1208 = vmatprep.subr.bf16.mxu0 0
  %1209 = vmatpush1.bf16.msra.mxu0 0
  %1210 = vmatprep.subr.bf16.mxu0 0
  %1211 = vmatpush1.bf16.msra.mxu0 0
  %1212 = vmatprep.subr.bf16.mxu0 0
  %1213 = vmatpush1.bf16.msra.mxu0 0
  %1214 = vmatprep.subr.bf16.mxu0 0
  %1215 = vmatpush1.bf16.msra.mxu0 0
  %1216 = vmatprep.subr.bf16.mxu0 0
  %1217 = vmatpush1.bf16.msra.mxu0 0
  %1218 = vmatprep.mubr.bf16.mxu0 0
  %1219 = vmatmul.mubr.bf16.gmra.mrb[0].mxu0 %v90
  %v1220 = vpop.f32.mrb[0].mxu0
  %v1221 = vadd.f32 0.0, %v1220
  %v1222 = vpop.f32.mrb[0].mxu0
  %v1223 = vadd.f32 0.0, %v1222
  %v1224 = vpop.f32.mrb[0].mxu0
  %v1225 = vpop.f32.mrb[0].mxu0
  %1226 = vdwg.mxu0
  %v1227 = vadd.f32 %v1131, %v1221
  %v1229 = vrot.slane %v1223, 2
  %v1231 = vadd.f32 %v1136, %v1229
  %v1232 = vxor.u32 %v1227, 2147483648
  %v1233 = vmul.f32 %v1232, 1.442695
  %v1234 = vpow.pop %v1233
  %v1235 = vadd.f32 %v1234, 1.0
  %v1236 = vrcp.pop %v1235
  %v1237 = vmul.f32 1.0, %v1236
  %v1238 = vtanh.pop %v1227
  %v1239 = vmul.f32 %v1237, 0.0
  %1241 = vrot.lane.b32.xlu0 %v1238, 64
  %v1242 = vpop.permute.xlu0 %1241
  %v1244 = vmul.f32 %v1237, %v1242
  %1246 = vrot.lane.b32.xlu0 %v1244, 32
  %v1247 = vpop.permute.xlu0 %1246
  %v1249 = vadd.f32 %v1239, %v1247
  %v1250 = vtanh.pop %v1249
  %1252 = vrot.lane.b32.xlu0 %v1250, 64
  %v1253 = vpop.permute.xlu0 %1252
  %v1255 = vmul.f32 %v1237, %v1253
  %v1256 = vxor.u32 %v1231, 2147483648
  %v1257 = vmul.f32 %v1256, 1.442695
  %v1258 = vpow.pop %v1257
  %v1259 = vadd.f32 %v1258, 1.0
  %v1260 = vrcp.pop %v1259
  %v1261 = vmul.f32 1.0, %v1260
  %v1262 = vtanh.pop %v1231
  %v1263 = vmul.f32 %v1261, 0.0
  %1265 = vrot.lane.b32.xlu0 %v1262, 64
  %v1266 = vpop.permute.xlu0 %1265
  %v1268 = vmul.f32 %v1261, %v1266
  %1270 = vrot.lane.b32.xlu0 %v1268, 32
  %v1271 = vpop.permute.xlu0 %1270
  %v1273 = vadd.f32 %v1263, %v1271
  %v1274 = vtanh.pop %v1273
  %1276 = vrot.lane.b32.xlu0 %v1274, 64
  %v1277 = vpop.permute.xlu0 %1276
  %v1279 = vmul.f32 %v1261, %v1277
  %1281 = vrot.lane.b32.xlu0 %v1255, 32
  %v1282 = vpop.permute.xlu0 %1281
  %v1285 = vrot.slane %v1279, 6
  %1286 = vrot.lane.b32.xlu0 %v1285, 64
  %v1287 = vpop.permute.xlu0 %1286
  %v1289 = vsel %vm203, %v1282, %v1287
  %v1290 = vpack.c.bf16 %v1289, %v1289
  %v1292 = vsel %vm88, %v1290, 0
  %1294 = vmatprep.subr.bf16.mxu0 %v1171
  %1295 = vmatpush1.bf16.msra.mxu0 %v1170
  %1296 = vmatprep.subr.bf16.mxu0 %v1173
  %1297 = vmatpush1.bf16.msra.mxu0 %v1172
  %1298 = vmatprep.subr.bf16.mxu0 %v1175
  %1299 = vmatpush1.bf16.msra.mxu0 %v1174
  %1300 = vmatprep.subr.bf16.mxu0 %v1177
  %1301 = vmatpush1.bf16.msra.mxu0 %v1176
  %1302 = vmatprep.subr.bf16.mxu0 0
  %1303 = vmatpush1.bf16.msra.mxu0 0
  %1304 = vmatprep.subr.bf16.mxu0 0
  %1305 = vmatpush1.bf16.msra.mxu0 0
  %1306 = vmatprep.subr.bf16.mxu0 0
  %1307 = vmatpush1.bf16.msra.mxu0 0
  %1308 = vmatprep.subr.bf16.mxu0 0
  %1309 = vmatpush1.bf16.msra.mxu0 0
  %1310 = vmatprep.subr.bf16.mxu0 0
  %1311 = vmatpush1.bf16.msra.mxu0 0
  %1312 = vmatprep.subr.bf16.mxu0 0
  %1313 = vmatpush1.bf16.msra.mxu0 0
  %1314 = vmatprep.subr.bf16.mxu0 0
  %1315 = vmatpush1.bf16.msra.mxu0 0
  %1316 = vmatprep.subr.bf16.mxu0 0
  %1317 = vmatpush1.bf16.msra.mxu0 0
  %1318 = vmatprep.subr.bf16.mxu0 0
  %1319 = vmatpush1.bf16.msra.mxu0 0
  %1320 = vmatprep.subr.bf16.mxu0 0
  %1321 = vmatpush1.bf16.msra.mxu0 0
  %1322 = vmatprep.subr.bf16.mxu0 0
  %1323 = vmatpush1.bf16.msra.mxu0 0
  %1324 = vmatprep.subr.bf16.mxu0 0
  %1325 = vmatpush1.bf16.msra.mxu0 0
  %1326 = vmatprep.mubr.bf16.mxu0 0
  %1327 = vmatmul.mubr.bf16.gmra.mrb[0].mxu0 %v1292
  %v1328 = vpop.f32.mrb[0].mxu0
  %v1329 = vadd.f32 0.0, %v1328
  %v1330 = vpop.f32.mrb[0].mxu0
  %v1331 = vadd.f32 0.0, %v1330
  %v1332 = vpop.f32.mrb[0].mxu0
  %v1333 = vpop.f32.mrb[0].mxu0
  %1334 = vdwg.mxu0
  %v1336 = vrot.slane %v1329, 6
  %v1338 = vadd.f32 %v1131, %v1336
  %v1340 = vrot.slane %v1331, 4
  %v1342 = vadd.f32 %v1136, %v1340
  %v1343 = vxor.u32 %v1338, 2147483648
  %v1344 = vmul.f32 %v1343, 1.442695
  %v1345 = vpow.pop %v1344
  %v1346 = vadd.f32 %v1345, 1.0
  %v1347 = vrcp.pop %v1346
  %v1348 = vmul.f32 1.0, %v1347
  %v1349 = vtanh.pop %v1338
  %v1351 = vrot.slane %v1249, 6
  %v1353 = vmul.f32 %v1348, %v1351
  %1355 = vrot.lane.b32.xlu0 %v1349, 64
  %v1356 = vpop.permute.xlu0 %1355
  %v1358 = vmul.f32 %v1348, %v1356
  %1360 = vrot.lane.b32.xlu0 %v1358, 32
  %v1361 = vpop.permute.xlu0 %1360
  %v1363 = vadd.f32 %v1353, %v1361
  %v1364 = vtanh.pop %v1363
  %1366 = vrot.lane.b32.xlu0 %v1364, 64
  %v1367 = vpop.permute.xlu0 %1366
  %v1369 = vmul.f32 %v1348, %v1367
  %v1370 = vxor.u32 %v1342, 2147483648
  %v1371 = vmul.f32 %v1370, 1.442695
  %v1372 = vpow.pop %v1371
  %v1373 = vadd.f32 %v1372, 1.0
  %v1374 = vrcp.pop %v1373
  %v1375 = vmul.f32 1.0, %v1374
  %v1376 = vtanh.pop %v1342
  %v1378 = vrot.slane %v1273, 2
  %v1380 = vmul.f32 %v1375, %v1378
  %1382 = vrot.lane.b32.xlu0 %v1376, 64
  %v1383 = vpop.permute.xlu0 %1382
  %v1385 = vmul.f32 %v1375, %v1383
  %1387 = vrot.lane.b32.xlu0 %v1385, 32
  %v1388 = vpop.permute.xlu0 %1387
  %v1390 = vadd.f32 %v1380, %v1388
  %v1391 = vtanh.pop %v1390
  %1393 = vrot.lane.b32.xlu0 %v1391, 64
  %v1394 = vpop.permute.xlu0 %1393
  %v1396 = vmul.f32 %v1375, %v1394
  %1398 = vrot.lane.b32.xlu0 %v1369, 32
  %v1399 = vpop.permute.xlu0 %1398
  %v1402 = vrot.slane %v1396, 2
  %1403 = vrot.lane.b32.xlu0 %v1402, 64
  %v1404 = vpop.permute.xlu0 %1403
  %v1406 = vsel %vm203, %v1399, %v1404
  %v1407 = vpack.c.bf16 %v1406, %v1406
  %v1409 = vrot.slane %v1407, 1
  %v1411 = vsel %vm88, %v1409, 0
  %1413 = vmatprep.subr.bf16.mxu0 %v1171
  %1414 = vmatpush1.bf16.msra.mxu0 %v1170
  %1415 = vmatprep.subr.bf16.mxu0 %v1173
  %1416 = vmatpush1.bf16.msra.mxu0 %v1172
  %1417 = vmatprep.subr.bf16.mxu0 %v1175
  %1418 = vmatpush1.bf16.msra.mxu0 %v1174
  %1419 = vmatprep.subr.bf16.mxu0 %v1177
  %1420 = vmatpush1.bf16.msra.mxu0 %v1176
  %1421 = vmatprep.subr.bf16.mxu0 0
  %1422 = vmatpush1.bf16.msra.mxu0 0
  %1423 = vmatprep.subr.bf16.mxu0 0
  %1424 = vmatpush1.bf16.msra.mxu0 0
  %1425 = vmatprep.subr.bf16.mxu0 0
  %1426 = vmatpush1.bf16.msra.mxu0 0
  %1427 = vmatprep.subr.bf16.mxu0 0
  %1428 = vmatpush1.bf16.msra.mxu0 0
  %1429 = vmatprep.subr.bf16.mxu0 0
  %1430 = vmatpush1.bf16.msra.mxu0 0
  %1431 = vmatprep.subr.bf16.mxu0 0
  %1432 = vmatpush1.bf16.msra.mxu0 0
  %1433 = vmatprep.subr.bf16.mxu0 0
  %1434 = vmatpush1.bf16.msra.mxu0 0
  %1435 = vmatprep.subr.bf16.mxu0 0
  %1436 = vmatpush1.bf16.msra.mxu0 0
  %1437 = vmatprep.subr.bf16.mxu0 0
  %1438 = vmatpush1.bf16.msra.mxu0 0
  %1439 = vmatprep.subr.bf16.mxu0 0
  %1440 = vmatpush1.bf16.msra.mxu0 0
  %1441 = vmatprep.subr.bf16.mxu0 0
  %1442 = vmatpush1.bf16.msra.mxu0 0
  %1443 = vmatprep.subr.bf16.mxu0 0
  %1444 = vmatpush1.bf16.msra.mxu0 0
  %1445 = vmatprep.mubr.bf16.mxu0 0
  %1446 = vmatmul.mubr.bf16.gmra.mrb[0].mxu0 %v1411
  %v1447 = vpop.f32.mrb[0].mxu0
  %v1448 = vadd.f32 0.0, %v1447
  %v1449 = vpop.f32.mrb[0].mxu0
  %v1450 = vadd.f32 0.0, %v1449
  %v1451 = vpop.f32.mrb[0].mxu0
  %v1452 = vpop.f32.mrb[0].mxu0
  %1453 = vdwg.mxu0
  %v1455 = vrot.slane %v1448, 4
  %v1457 = vadd.f32 %v1131, %v1455
  %v1459 = vrot.slane %v1450, 6
  %v1461 = vadd.f32 %v1136, %v1459
  %v1462 = vxor.u32 %v1457, 2147483648
  %v1463 = vmul.f32 %v1462, 1.442695
  %v1464 = vpow.pop %v1463
  %v1465 = vadd.f32 %v1464, 1.0
  %v1466 = vrcp.pop %v1465
  %v1467 = vmul.f32 1.0, %v1466
  %v1468 = vtanh.pop %v1457
  %v1470 = vrot.slane %v1363, 6
  %v1472 = vmul.f32 %v1467, %v1470
  %1474 = vrot.lane.b32.xlu0 %v1468, 64
  %v1475 = vpop.permute.xlu0 %1474
  %v1477 = vmul.f32 %v1467, %v1475
  %1479 = vrot.lane.b32.xlu0 %v1477, 32
  %v1480 = vpop.permute.xlu0 %1479
  %v1482 = vadd.f32 %v1472, %v1480
  %v1483 = vtanh.pop %v1482
  %1485 = vrot.lane.b32.xlu0 %v1483, 64
  %v1486 = vpop.permute.xlu0 %1485
  %v1488 = vmul.f32 %v1467, %v1486
  %v1489 = vxor.u32 %v1461, 2147483648
  %v1490 = vmul.f32 %v1489, 1.442695
  %v1491 = vpow.pop %v1490
  %v1492 = vadd.f32 %v1491, 1.0
  %v1493 = vrcp.pop %v1492
  %v1494 = vmul.f32 1.0, %v1493
  %v1495 = vtanh.pop %v1461
  %v1497 = vrot.slane %v1390, 2
  %v1499 = vmul.f32 %v1494, %v1497
  %1501 = vrot.lane.b32.xlu0 %v1495, 64
  %v1502 = vpop.permute.xlu0 %1501
  %v1504 = vmul.f32 %v1494, %v1502
  %1506 = vrot.lane.b32.xlu0 %v1504, 32
  %v1507 = vpop.permute.xlu0 %1506
  %v1509 = vadd.f32 %v1499, %v1507
  %v1510 = vtanh.pop %v1509
  %1512 = vrot.lane.b32.xlu0 %v1510, 64
  %v1513 = vpop.permute.xlu0 %1512
  %v1515 = vmul.f32 %v1494, %v1513
  %1517 = vrot.lane.b32.xlu0 %v1488, 32
  %v1518 = vpop.permute.xlu0 %1517
  %v1521 = vrot.slane %v1515, 6
  %1522 = vrot.lane.b32.xlu0 %v1521, 64
  %v1523 = vpop.permute.xlu0 %1522
  %v1525 = vsel %vm203, %v1518, %v1523
  %v1526 = vpack.c.bf16 %v1525, %v1525
  %v1528 = vrot.slane %v1526, 2
  %v1530 = vsel %vm88, %v1528, 0
  %1532 = vmatprep.subr.bf16.mxu0 %v1171
  %1533 = vmatpush1.bf16.msra.mxu0 %v1170
  %1534 = vmatprep.subr.bf16.mxu0 %v1173
  %1535 = vmatpush1.bf16.msra.mxu0 %v1172
  %1536 = vmatprep.subr.bf16.mxu0 %v1175
  %1537 = vmatpush1.bf16.msra.mxu0 %v1174
  %1538 = vmatprep.subr.bf16.mxu0 %v1177
  %1539 = vmatpush1.bf16.msra.mxu0 %v1176
  %1540 = vmatprep.subr.bf16.mxu0 0
  %1541 = vmatpush1.bf16.msra.mxu0 0
  %1542 = vmatprep.subr.bf16.mxu0 0
  %1543 = vmatpush1.bf16.msra.mxu0 0
  %1544 = vmatprep.subr.bf16.mxu0 0
  %1545 = vmatpush1.bf16.msra.mxu0 0
  %1546 = vmatprep.subr.bf16.mxu0 0
  %1547 = vmatpush1.bf16.msra.mxu0 0
  %1548 = vmatprep.subr.bf16.mxu0 0
  %1549 = vmatpush1.bf16.msra.mxu0 0
  %1550 = vmatprep.subr.bf16.mxu0 0
  %1551 = vmatpush1.bf16.msra.mxu0 0
  %1552 = vmatprep.subr.bf16.mxu0 0
  %1553 = vmatpush1.bf16.msra.mxu0 0
  %1554 = vmatprep.subr.bf16.mxu0 0
  %1555 = vmatpush1.bf16.msra.mxu0 0
  %1556 = vmatprep.subr.bf16.mxu0 0
  %1557 = vmatpush1.bf16.msra.mxu0 0
  %1558 = vmatprep.subr.bf16.mxu0 0
  %1559 = vmatpush1.bf16.msra.mxu0 0
  %1560 = vmatprep.subr.bf16.mxu0 0
  %1561 = vmatpush1.bf16.msra.mxu0 0
  %1562 = vmatprep.subr.bf16.mxu0 0
  %1563 = vmatpush1.bf16.msra.mxu0 0
  %1564 = vmatprep.mubr.bf16.mxu0 0
  %1565 = vmatmul.mubr.bf16.gmra.mrb[0].mxu0 %v1530
  %v1566 = vpop.f32.mrb[0].mxu0
  %v1567 = vadd.f32 0.0, %v1566
  %v1568 = vpop.f32.mrb[0].mxu0
  %v1569 = vadd.f32 0.0, %v1568
  %v1570 = vpop.f32.mrb[0].mxu0
  %v1571 = vpop.f32.mrb[0].mxu0
  %1572 = vdwg.mxu0
  %v1574 = vrot.slane %v1567, 2
  %v1576 = vadd.f32 %v1131, %v1574
  %v1577 = vadd.f32 %v1136, %v1569
  %v1578 = vxor.u32 %v1576, 2147483648
  %v1579 = vmul.f32 %v1578, 1.442695
  %v1580 = vpow.pop %v1579
  %v1581 = vadd.f32 %v1580, 1.0
  %v1582 = vrcp.pop %v1581
  %v1583 = vmul.f32 1.0, %v1582
  %v1584 = vtanh.pop %v1576
  %v1586 = vrot.slane %v1482, 6
  %v1588 = vmul.f32 %v1583, %v1586
  %1590 = vrot.lane.b32.xlu0 %v1584, 64
  %v1591 = vpop.permute.xlu0 %1590
  %v1593 = vmul.f32 %v1583, %v1591
  %1595 = vrot.lane.b32.xlu0 %v1593, 32
  %v1596 = vpop.permute.xlu0 %1595
  %v1598 = vadd.f32 %v1588, %v1596
  %v1599 = vtanh.pop %v1598
  %1601 = vrot.lane.b32.xlu0 %v1599, 64
  %v1602 = vpop.permute.xlu0 %1601
  %v1604 = vmul.f32 %v1583, %v1602
  %v1605 = vxor.u32 %v1577, 2147483648
  %v1606 = vmul.f32 %v1605, 1.442695
  %v1607 = vpow.pop %v1606
  %v1608 = vadd.f32 %v1607, 1.0
  %v1609 = vrcp.pop %v1608
  %v1610 = vmul.f32 1.0, %v1609
  %v1611 = vtanh.pop %v1577
  %v1613 = vrot.slane %v1509, 2
  %v1615 = vmul.f32 %v1610, %v1613
  %1617 = vrot.lane.b32.xlu0 %v1611, 64
  %v1618 = vpop.permute.xlu0 %1617
  %v1620 = vmul.f32 %v1610, %v1618
  %1622 = vrot.lane.b32.xlu0 %v1620, 32
  %v1623 = vpop.permute.xlu0 %1622
  %v1625 = vadd.f32 %v1615, %v1623
  %v1626 = vtanh.pop %v1625
  %1628 = vrot.lane.b32.xlu0 %v1626, 64
  %v1629 = vpop.permute.xlu0 %1628
  %v1631 = vmul.f32 %v1610, %v1629
  %1633 = vrot.lane.b32.xlu0 %v1604, 32
  %v1634 = vpop.permute.xlu0 %1633
  %v1637 = vrot.slane %v1631, 2
  %1638 = vrot.lane.b32.xlu0 %v1637, 64
  %v1639 = vpop.permute.xlu0 %1638
  %v1641 = vsel %vm203, %v1634, %v1639
  %v1642 = vpack.c.bf16 %v1641, %v1641
  %v1644 = vrot.slane %v1642, 3
  %v1646 = vsel %vm88, %v1644, 0
  %1648 = vmatprep.subr.bf16.mxu0 %v1171
  %1649 = vmatpush1.bf16.msra.mxu0 %v1170
  %1650 = vmatprep.subr.bf16.mxu0 %v1173
  %1651 = vmatpush1.bf16.msra.mxu0 %v1172
  %1652 = vmatprep.subr.bf16.mxu0 %v1175
  %1653 = vmatpush1.bf16.msra.mxu0 %v1174
  %1654 = vmatprep.subr.bf16.mxu0 %v1177
  %1655 = vmatpush1.bf16.msra.mxu0 %v1176
  %1656 = vmatprep.subr.bf16.mxu0 0
  %1657 = vmatpush1.bf16.msra.mxu0 0
  %1658 = vmatprep.subr.bf16.mxu0 0
  %1659 = vmatpush1.bf16.msra.mxu0 0
  %1660 = vmatprep.subr.bf16.mxu0 0
  %1661 = vmatpush1.bf16.msra.mxu0 0
  %1662 = vmatprep.subr.bf16.mxu0 0
  %1663 = vmatpush1.bf16.msra.mxu0 0
  %1664 = vmatprep.subr.bf16.mxu0 0
  %1665 = vmatpush1.bf16.msra.mxu0 0
  %1666 = vmatprep.subr.bf16.mxu0 0
  %1667 = vmatpush1.bf16.msra.mxu0 0
  %1668 = vmatprep.subr.bf16.mxu0 0
  %1669 = vmatpush1.bf16.msra.mxu0 0
  %1670 = vmatprep.subr.bf16.mxu0 0
  %1671 = vmatpush1.bf16.msra.mxu0 0
  %1672 = vmatprep.subr.bf16.mxu0 0
  %1673 = vmatpush1.bf16.msra.mxu0 0
  %1674 = vmatprep.subr.bf16.mxu0 0
  %1675 = vmatpush1.bf16.msra.mxu0 0
  %1676 = vmatprep.subr.bf16.mxu0 0
  %1677 = vmatpush1.bf16.msra.mxu0 0
  %1678 = vmatprep.subr.bf16.mxu0 0
  %1679 = vmatpush1.bf16.msra.mxu0 0
  %1680 = vmatprep.mubr.bf16.mxu0 0
  %1681 = vmatmul.mubr.bf16.gmra.mrb[0].mxu0 %v1646
  %v1682 = vpop.f32.mrb[0].mxu0
  %v1683 = vadd.f32 0.0, %v1682
  %v1684 = vpop.f32.mrb[0].mxu0
  %v1685 = vpop.f32.mrb[0].mxu0
  %v1686 = vpop.f32.mrb[0].mxu0
  %1687 = vdwg.mxu0
  %v1688 = vadd.f32 %v1134, %v1683
  %v1689 = vxor.u32 %v1688, 2147483648
  %v1690 = vmul.f32 %v1689, 1.442695
  %v1691 = vpow.pop %v1690
  %v1692 = vadd.f32 %v1691, 1.0
  %v1693 = vrcp.pop %v1692
  %v1694 = vmul.f32 1.0, %v1693
  %v1695 = vtanh.pop %v1688
  %v1697 = vrot.slane %v1598, 6
  %v1699 = vmul.f32 %v1694, %v1697
  %1701 = vrot.lane.b32.xlu0 %v1695, 64
  %v1702 = vpop.permute.xlu0 %1701
  %v1704 = vmul.f32 %v1694, %v1702
  %1706 = vrot.lane.b32.xlu0 %v1704, 32
  %v1707 = vpop.permute.xlu0 %1706
  %v1709 = vadd.f32 %v1699, %v1707
  %v1710 = vtanh.pop %v1709
  %1712 = vrot.lane.b32.xlu0 %v1710, 64
  %v1713 = vpop.permute.xlu0 %1712
  %v1715 = vmul.f32 %v1694, %v1713
  %1717 = vrot.lane.b32.xlu0 %v1715, 32
  %v1718 = vpop.permute.xlu0 %1717
  %1720 = vrot.lane.b32.xlu0 %v1631, 64
  %v1721 = vpop.permute.xlu0 %1720
  %v1723 = vsel %vm203, %v1718, %v1721
  %v1724 = vpack.c.bf16 %v1723, %v1723
  %v1725 = vld [vmem:[%s5] sm:$0xf]
  %v1726 = vld [vmem:[%s5 + $0x4] sm:$0xf]
  %v1727 = vld [vmem:[%s5 + $0x8] sm:$0xf]
  %v1728 = vld [vmem:[%s5 + $0xc] sm:$0xf]
  %v1729 = vld [vmem:[%s5 + $0x10] sm:$0xf]
  %v1730 = vld [vmem:[%s5 + $0x14] sm:$0xf]
  %v1731 = vld [vmem:[%s5 + $0x18] sm:$0xf]
  %v1732 = vld [vmem:[%s5 + $0x1c] sm:$0xf]
  %v1733 = vld [vmem:[%s6] sm:$0x1]
  %v1735 = vlaneseq
  %v1736 = vshrl.u32 %v1735, 7
  %v1737 = vsub.s32 0, %v1736
  %v1738 = vrot.slane %v1733, %v1737
  %v1748 = vunpack.c.l.b16 %v1725
  %v1749 = vunpack.c.l.b16 %v1726
  %v1750 = vunpack.c.l.b16 %v1727
  %v1751 = vunpack.c.l.b16 %v1728
  %v1752 = vunpack.c.l.b16 %v1729
  %v1753 = vunpack.c.l.b16 %v1730
  %v1754 = vunpack.c.l.b16 %v1731
  %v1755 = vunpack.c.l.b16 %v1732
  %v1756 = vpack.c.b16 %v1749, %v1748
  %v1757 = vpack.c.b16 %v1751, %v1750
  %v1758 = vpack.c.b16 %v1753, %v1752
  %v1759 = vpack.c.b16 %v1755, %v1754
  %v1765 = vsel %vm88, %v1724, 0
  %1767 = vmatprep.subr.bf16.mxu0 0
  %1768 = vmatpush1.bf16.msra.mxu0 %v1756
  %1769 = vmatprep.subr.bf16.mxu0 0
  %1770 = vmatpush1.bf16.msra.mxu0 %v1757
  %1771 = vmatprep.subr.bf16.mxu0 0
  %1772 = vmatpush1.bf16.msra.mxu0 %v1758
  %1773 = vmatprep.subr.bf16.mxu0 0
  %1774 = vmatpush1.bf16.msra.mxu0 %v1759
  %1775 = vmatprep.subr.bf16.mxu0 0
  %1776 = vmatpush1.bf16.msra.mxu0 0
  %1777 = vmatprep.subr.bf16.mxu0 0
  %1778 = vmatpush1.bf16.msra.mxu0 0
  %1779 = vmatprep.subr.bf16.mxu0 0
  %1780 = vmatpush1.bf16.msra.mxu0 0
  %1781 = vmatprep.subr.bf16.mxu0 0
  %1782 = vmatpush1.bf16.msra.mxu0 0
  %1783 = vmatprep.subr.bf16.mxu0 0
  %1784 = vmatpush1.bf16.msra.mxu0 0
  %1785 = vmatprep.subr.bf16.mxu0 0
  %1786 = vmatpush1.bf16.msra.mxu0 0
  %1787 = vmatprep.subr.bf16.mxu0 0
  %1788 = vmatpush1.bf16.msra.mxu0 0
  %1789 = vmatprep.subr.bf16.mxu0 0
  %1790 = vmatpush1.bf16.msra.mxu0 0
  %1791 = vmatprep.subr.bf16.mxu0 0
  %1792 = vmatpush1.bf16.msra.mxu0 0
  %1793 = vmatprep.subr.bf16.mxu0 0
  %1794 = vmatpush1.bf16.msra.mxu0 0
  %1795 = vmatprep.subr.bf16.mxu0 0
  %1796 = vmatpush1.bf16.msra.mxu0 0
  %1797 = vmatprep.subr.bf16.mxu0 0
  %1798 = vmatpush1.bf16.msra.mxu0 0
  %1799 = vmatprep.mubr.bf16.mxu0 0
  %1800 = vmatmul.mubr.bf16.gmra.mrb[0].mxu0 %v1765
  %v1801 = vpop.f32.mrb[0].mxu0
  %v1802 = vadd.f32 %v1738, %v1801
  %v1803 = vpop.f32.mrb[0].mxu0
  %v1804 = vpop.f32.mrb[0].mxu0
  %v1805 = vpop.f32.mrb[0].mxu0
  %1806 = vdwg.mxu0
  %v1807 = vmax.f32 %v1802, 0.0
  %v1808 = vpack.c.bf16 %v1807, %v1807
  %v1809 = vld [vmem:[%s7] sm:$0xf]
  %v1810 = vld [vmem:[%s7 + $0x4] sm:$0xf]
  %v1811 = vld [vmem:[#allocation2] sm:$0x1]
  %v1813 = vlaneseq
  %v1814 = vshrl.u32 %v1813, 7
  %v1815 = vsub.s32 0, %v1814
  %v1816 = vrot.slane %v1811, %v1815
  %v1820 = vunpack.c.l.b16 %v1809
  %v1821 = vunpack.c.l.b16 %v1810
  %v1822 = vpack.c.b16 %v1821, %v1820
  %vm1824 = vcmask 130048
  %v1826 = vsel %vm1824, %v1808, 0
  %1828 = vmatprep.subr.bf16.mxu0 0
  %1829 = vmatpush1.bf16.msra.mxu0 %v1822
  %1830 = vmatprep.subr.bf16.mxu0 0
  %1831 = vmatpush1.bf16.msra.mxu0 0
  %1832 = vmatprep.subr.bf16.mxu0 0
  %1833 = vmatpush1.bf16.msra.mxu0 0
  %1834 = vmatprep.subr.bf16.mxu0 0
  %1835 = vmatpush1.bf16.msra.mxu0 0
  %1836 = vmatprep.subr.bf16.mxu0 0
  %1837 = vmatpush1.bf16.msra.mxu0 0
  %1838 = vmatprep.subr.bf16.mxu0 0
  %1839 = vmatpush1.bf16.msra.mxu0 0
  %1840 = vmatprep.subr.bf16.mxu0 0
  %1841 = vmatpush1.bf16.msra.mxu0 0
  %1842 = vmatprep.subr.bf16.mxu0 0
  %1843 = vmatpush1.bf16.msra.mxu0 0
  %1844 = vmatprep.subr.bf16.mxu0 0
  %1845 = vmatpush1.bf16.msra.mxu0 0
  %1846 = vmatprep.subr.bf16.mxu0 0
  %1847 = vmatpush1.bf16.msra.mxu0 0
  %1848 = vmatprep.subr.bf16.mxu0 0
  %1849 = vmatpush1.bf16.msra.mxu0 0
  %1850 = vmatprep.subr.bf16.mxu0 0
  %1851 = vmatpush1.bf16.msra.mxu0 0
  %1852 = vmatprep.subr.bf16.mxu0 0
  %1853 = vmatpush1.bf16.msra.mxu0 0
  %1854 = vmatprep.subr.bf16.mxu0 0
  %1855 = vmatpush1.bf16.msra.mxu0 0
  %1856 = vmatprep.subr.bf16.mxu0 0
  %1857 = vmatpush1.bf16.msra.mxu0 0
  %1858 = vmatprep.subr.bf16.mxu0 0
  %1859 = vmatpush1.bf16.msra.mxu0 0
  %1860 = vmatprep.mubr.bf16.mxu0 0
  %1861 = vmatmul.mubr.bf16.gmra.mrb[0].mxu0 %v1826
  %v1862 = vpop.f32.mrb[0].mxu0
  %v1863 = vadd.f32 %v1816, %v1862
  %v1864 = vpop.f32.mrb[0].mxu0
  %v1865 = vpop.f32.mrb[0].mxu0
  %v1866 = vpop.f32.mrb[0].mxu0
  %1867 = vdwg.mxu0
  %v1868 = vxor.u32 %v1863, 2147483648
  %v1869 = vmul.f32 %v1868, 1.442695
  %v1870 = vpow.pop %v1869
  %v1871 = vadd.f32 %v1870, 1.0
  %v1872 = vrcp.pop %v1871
  %v1873 = vmul.f32 1.0, %v1872
  %vm1874 = vcmask 1024
  %1875 = vst.msk [vmem:[%s9] sm:$0x3] %vm1874, %v1873
  // Predicated region
  $region38: #{cnn_rnn_ffnn_forward.3} parent=0 // pred_check
    _
  $region39: #{cnn_rnn_ffnn_forward.3} parent=0 // pred_check_branch
    %1877 = sbr.rel (0) target = $region41
  $region40: #{cnn_rnn_ffnn_forward.3} parent=0 // pred_region
    _
  $region41: #{cnn_rnn_ffnn_forward.3} parent=0 // pred_fallthru
    _
  // Predicated region
  $region42: #{cnn_rnn_ffnn_forward.3} parent=0 // pred_check
    _
  $region43: #{cnn_rnn_ffnn_forward.3} parent=0 // pred_check_branch
    %1879 = sbr.rel (0) target = $region45
  $region44: #{cnn_rnn_ffnn_forward.3} parent=0 // pred_region
    _
  $region45: #{cnn_rnn_ffnn_forward.3} parent=0 // pred_fallthru
    _

</llo_original>
